<compile_context>
chip_gen: v6e
topology: v6e:2x2x1
jax: 0.10.0
libtpu: 0.0.40
codegen_flags: <defaults>
</compile_context>

<pallas_src>
import jax
import jax.numpy as jnp
from jax import lax
from jax.experimental import pallas as pl
from jax.experimental.pallas import tpu as pltpu

KSIZE = 3
EPS = 1e-5


def resblock_kernel(x_ref, wm_ref, wr_ref, s2_ref, b1_ref, b2_ref, o_ref,
                    xpad_ref):
    """One batch element per grid step.

    x_ref    : (1, H, W+2, Cin)  bf16  NHWC input, W already zero-padded by 1
    wm_ref   : (9, Cin, Cout)    bf16  3x3 conv weights * s1 (BN1 folded)
    wr_ref   : (Cin, Cout)       bf16  1x1 residual conv weights * s2 (BN2 folded)
    s2_ref   : (1, Cout)         f32   BN2 scale (applied to the ReLU'd main path)
    b1_ref   : (1, Cout)         f32   BN1 folded shift
    b2_ref   : (1, Cout)         f32   BN2 folded shift
    o_ref    : (1, H, W, Cout)   f32
    xpad_ref : (H+2, W+2, Cin)   f32   VMEM scratch holding the fully padded image
    """
    _, H, W, Cout = o_ref.shape
    Cin = x_ref.shape[3]
    Wp = W + 2

    # Build the spatially padded image in VMEM. The W halo columns arrive
    # already zeroed from the wrapper (fused with the layout copy); only the
    # two H halo rows need zeroing here. Rewritten every step so it stays
    # correct when the batch axis is sharded across TensorCores.
    xpad_ref[0:1, :, :] = jnp.zeros((1, Wp, Cin), jnp.float32)
    xpad_ref[H + 1:H + 2, :, :] = jnp.zeros((1, Wp, Cin), jnp.float32)
    xpad_ref[1:H + 1, :, :] = x_ref[0].astype(jnp.float32)

    # 3x3 conv as 9 shifted (H*W, Cin) @ (Cin, Cout) bf16 matmuls on the MXU,
    # accumulated in f32. The center tap's patch is exactly the unpadded input,
    # so the 1x1 residual conv reuses it (no second activation load).
    acc = None
    res = None
    for ky in range(KSIZE):
        for kx in range(KSIZE):
            patch = xpad_ref[ky:ky + H, kx:kx + W, :]
            patch = patch.reshape(H * W, Cin).astype(jnp.bfloat16)
            term = jnp.dot(patch, wm_ref[ky * KSIZE + kx],
                           preferred_element_type=jnp.float32)
            acc = term if acc is None else acc + term
            if ky == 1 and kx == 1:
                res = jnp.dot(patch, wr_ref[...],
                              preferred_element_type=jnp.float32)

    # f32 epilogue (BN shifts + ReLUs); scales already folded into the weights
    # except the s2 applied to the ReLU'd main branch (cannot cross the ReLU).
    main = jnp.maximum(acc + b1_ref[...], 0.0)
    y = jnp.maximum(main * s2_ref[...] + res + b2_ref[...], 0.0)
    o_ref[0] = y.reshape(H, W, Cout).astype(o_ref.dtype)


def resblock_forward(x_nchw, params):
    B, Cin, H, W = x_nchw.shape
    Cout = params["w_main"].shape[0]

    # Fold BatchNorm (eval mode) into scale/shift.
    s1 = params["bn1_gamma"] / jnp.sqrt(params["bn1_var"] + EPS)
    b1 = params["bn1_beta"] - params["bn1_mean"] * s1
    s2 = params["bn2_gamma"] / jnp.sqrt(params["bn2_var"] + EPS)
    b2 = params["bn2_beta"] - params["bn2_mean"] * s2

    # Fold BN scales into the conv weights (per output channel), cast to bf16.
    # (Cout, Cin, 3, 3) -> (3, 3, Cin, Cout) -> (9, Cin, Cout)
    wm = jnp.transpose(params["w_main"], (2, 3, 1, 0)) * s1
    wm = wm.reshape(KSIZE * KSIZE, Cin, Cout).astype(jnp.bfloat16)
    wr = (jnp.transpose(params["w_res"], (2, 3, 1, 0)).reshape(Cin, Cout)
          * s2).astype(jnp.bfloat16)

    s2v = s2.reshape(1, Cout).astype(jnp.float32)
    b1v = b1.reshape(1, Cout).astype(jnp.float32)
    b2v = b2.reshape(1, Cout).astype(jnp.float32)

    # NCHW -> NHWC, bf16, pad only W by 1 on each side. Transpose + pad +
    # convert fuse into a single XLA copy, so this is the only HBM round trip
    # of the activation before the kernel reads it (H halo is done in-kernel).
    x = jnp.transpose(x_nchw, (0, 2, 3, 1))
    x = jnp.pad(x, ((0, 0), (0, 0), (1, 1), (0, 0))).astype(jnp.bfloat16)

    out_nhwc = pl.pallas_call(
        resblock_kernel,
        out_shape=jax.ShapeDtypeStruct((B, H, W, Cout), jnp.float32),
        grid=(B,),
        in_specs=[
            pl.BlockSpec((1, H, W + 2, Cin), lambda b: (b, 0, 0, 0)),
            pl.BlockSpec((KSIZE * KSIZE, Cin, Cout), lambda b: (0, 0, 0)),
            pl.BlockSpec((Cin, Cout), lambda b: (0, 0)),
            pl.BlockSpec((1, Cout), lambda b: (0, 0)),
            pl.BlockSpec((1, Cout), lambda b: (0, 0)),
            pl.BlockSpec((1, Cout), lambda b: (0, 0)),
        ],
        out_specs=pl.BlockSpec((1, H, W, Cout), lambda b: (b, 0, 0, 0)),
        scratch_shapes=[pltpu.VMEM((H + 2, W + 2, Cin), jnp.float32)],
        compiler_params=pltpu.CompilerParams(
            dimension_semantics=("parallel",)),
    )(x, wm, wr, s2v, b1v, b2v)

    # NHWC -> NCHW to match PyTorch.
    return jnp.transpose(out_nhwc, (0, 3, 1, 2))


def resblock_reference(x, params):
    """Pure-JAX (XLA) f32 reference in NCHW for correctness checking."""
    dn = lax.conv_dimension_numbers(x.shape, params["w_main"].shape,
                                    ("NCHW", "OIHW", "NCHW"))
    main = lax.conv_general_dilated(x, params["w_main"], (1, 1),
                                    ((1, 1), (1, 1)), dimension_numbers=dn)
    s1 = (params["bn1_gamma"] / jnp.sqrt(params["bn1_var"] + EPS))
    b1 = params["bn1_beta"] - params["bn1_mean"] * s1
    main = jnp.maximum(main * s1.reshape(1, -1, 1, 1) + b1.reshape(1, -1, 1, 1), 0.0)

    res = lax.conv_general_dilated(x, params["w_res"], (1, 1),
                                   ((0, 0), (0, 0)), dimension_numbers=dn)

    s2 = (params["bn2_gamma"] / jnp.sqrt(params["bn2_var"] + EPS))
    b2 = params["bn2_beta"] - params["bn2_mean"] * s2
    y = (main + res) * s2.reshape(1, -1, 1, 1) + b2.reshape(1, -1, 1, 1)
    return jnp.maximum(y, 0.0)


def init_params(key, in_channels, out_channels):
    ks = jax.random.split(key, 8)
    p = {
        # Conv2d(in, out, 3, stride=1, padding=1, bias=False)  (bias off: BN follows)
        "w_main": 0.1 * jax.random.normal(ks[0], (out_channels, in_channels, 3, 3),
                                          jnp.float32),
        # res_conv: Conv2d(in, out, 1, bias=False)  (in != out -> res_path=True)
        "w_res": 0.1 * jax.random.normal(ks[1], (out_channels, in_channels, 1, 1),
                                         jnp.float32),
        # BN inside Conv2dNormActivation
        "bn1_gamma": 1.0 + 0.1 * jax.random.normal(ks[2], (out_channels,), jnp.float32),
        "bn1_beta": 0.1 * jax.random.normal(ks[3], (out_channels,), jnp.float32),
        "bn1_mean": 0.05 * jax.random.normal(ks[4], (out_channels,), jnp.float32),
        "bn1_var": 1.0 + 0.1 * jax.random.uniform(ks[5], (out_channels,), jnp.float32),
        # BN in self.res
        "bn2_gamma": 1.0 + 0.1 * jax.random.normal(ks[6], (out_channels,), jnp.float32),
        "bn2_beta": 0.1 * jax.random.normal(ks[7], (out_channels,), jnp.float32),
        "bn2_mean": jnp.zeros((out_channels,), jnp.float32),
        "bn2_var": jnp.ones((out_channels,), jnp.float32),
    }
    return p


if __name__ == "__main__":
    key = jax.random.PRNGKey(0)
    k_x, k_p = jax.random.split(key)

    B, Cin, Cout, H, W = 2, 4, 8, 16, 16
    x = jax.random.normal(k_x, (B, Cin, H, W), jnp.float32)   # NCHW, like PyTorch
    params = init_params(k_p, Cin, Cout)

    out = resblock_forward(x, params)
    out = jax.block_until_ready(out)

    ref = resblock_reference(x, params)
    assert out.shape == (B, Cout, H, W)
    # Tolerance loosened vs. the f32 version because matmul operands are bf16.
    assert jnp.allclose(out, ref, atol=2e-2, rtol=2e-2), "mismatch vs reference"

    print("KERNEL_OK")
</pallas_src>

<mosaic_0001>
module attributes {stable_mosaic.version = 11 : i64} {
  func.func @resblock_kernel(%arg0: i32, %arg1: memref<1x16x18x4xbf16, #tpu.memory_space<vmem>>, %arg2: memref<9x4x8xbf16, #tpu.memory_space<vmem>>, %arg3: memref<4x8xbf16, #tpu.memory_space<vmem>>, %arg4: memref<1x8xf32, #tpu.memory_space<vmem>>, %arg5: memref<1x8xf32, #tpu.memory_space<vmem>>, %arg6: memref<1x8xf32, #tpu.memory_space<vmem>>, %arg7: memref<1x16x16x8xf32, #tpu.memory_space<vmem>>, %arg8: memref<18x18x4xf32, #tpu.memory_space<vmem>>) attributes {dimension_semantics = [#tpu.dimension_semantics<parallel>], iteration_bounds = array<i64: 2>, scalar_prefetch = 0 : i64, scratch_operands = 1 : i64, tpu.core_type = #tpu.core_type<tc>, window_params = [{transform_indices = @transform_0, window_bounds = array<i64: 1, 16, 18, 4>}, {pipeline_mode = #tpu.pipeline_mode<synchronous>, transform_indices = @transform_1, window_bounds = array<i64: 9, 4, 8>}, {pipeline_mode = #tpu.pipeline_mode<synchronous>, transform_indices = @transform_2, window_bounds = array<i64: 4, 8>}, {pipeline_mode = #tpu.pipeline_mode<synchronous>, transform_indices = @transform_3, window_bounds = array<i64: 1, 8>}, {pipeline_mode = #tpu.pipeline_mode<synchronous>, transform_indices = @transform_4, window_bounds = array<i64: 1, 8>}, {pipeline_mode = #tpu.pipeline_mode<synchronous>, transform_indices = @transform_5, window_bounds = array<i64: 1, 8>}, {transform_indices = @transform_6, window_bounds = array<i64: 1, 16, 16, 8>}]} {
    %cst = arith.constant 0.000000e+00 : f32
    %0 = vector.broadcast %cst : f32 to vector<1x18x4xf32>
    %c0 = arith.constant 0 : index
    %c0_0 = arith.constant 0 : index
    %c0_1 = arith.constant 0 : index
    %1 = vector.load %arg8[%c0, %c0_0, %c0_1] : memref<18x18x4xf32, #tpu.memory_space<vmem>>, vector<1x18x4xf32>
    tpu.vector_store %arg8[%c0, %c0_0, %c0_1], %0 {strides = array<i32>} : memref<18x18x4xf32, #tpu.memory_space<vmem>>, vector<1x18x4xf32>,
    %cst_2 = arith.constant 0.000000e+00 : f32
    %2 = vector.broadcast %cst_2 : f32 to vector<1x18x4xf32>
    %c17 = arith.constant 17 : index
    %c0_3 = arith.constant 0 : index
    %c0_4 = arith.constant 0 : index
    %3 = vector.load %arg8[%c17, %c0_3, %c0_4] : memref<18x18x4xf32, #tpu.memory_space<vmem>>, vector<1x18x4xf32>
    tpu.vector_store %arg8[%c17, %c0_3, %c0_4], %2 {strides = array<i32>} : memref<18x18x4xf32, #tpu.memory_space<vmem>>, vector<1x18x4xf32>,
    %c0_5 = arith.constant 0 : index
    %c0_6 = arith.constant 0 : index
    %c0_7 = arith.constant 0 : index
    %c0_8 = arith.constant 0 : index
    %4 = vector.load %arg1[%c0_5, %c0_6, %c0_7, %c0_8] : memref<1x16x18x4xbf16, #tpu.memory_space<vmem>>, vector<1x16x18x4xbf16>
    %5 = vector.shape_cast %4 : vector<1x16x18x4xbf16> to vector<16x18x4xbf16>
    %6 = arith.extf %5 : vector<16x18x4xbf16> to vector<16x18x4xf32>
    %c1 = arith.constant 1 : index
    %c0_9 = arith.constant 0 : index
    %c0_10 = arith.constant 0 : index
    %7 = vector.load %arg8[%c1, %c0_9, %c0_10] : memref<18x18x4xf32, #tpu.memory_space<vmem>>, vector<16x18x4xf32>
    tpu.vector_store %arg8[%c1, %c0_9, %c0_10], %6 {strides = array<i32>} : memref<18x18x4xf32, #tpu.memory_space<vmem>>, vector<16x18x4xf32>,
    %c0_11 = arith.constant 0 : index
    %c0_12 = arith.constant 0 : index
    %c0_13 = arith.constant 0 : index
    %8 = vector.load %arg8[%c0_11, %c0_12, %c0_13] : memref<18x18x4xf32, #tpu.memory_space<vmem>>, vector<16x16x4xf32>
    %9 = vector.shape_cast %8 : vector<16x16x4xf32> to vector<256x4xf32>
    %10 = arith.truncf %9 : vector<256x4xf32> to vector<256x4xbf16>
    %c0_14 = arith.constant 0 : index
    %c0_15 = arith.constant 0 : index
    %c0_16 = arith.constant 0 : index
    %11 = vector.load %arg2[%c0_14, %c0_15, %c0_16] : memref<9x4x8xbf16, #tpu.memory_space<vmem>>, vector<1x4x8xbf16>
    %12 = vector.shape_cast %11 : vector<1x4x8xbf16> to vector<4x8xbf16>
    %cst_17 = arith.constant dense<0.000000e+00> : vector<256x8xf32>
    %13 = tpu.matmul %10, %12, %cst_17 {dimension_numbers = #tpu.dot_dimension_numbers<[1], [0], [0], [1], [0, 0, 1, 1], [], []>} : vector<256x4xbf16>, vector<4x8xbf16>, vector<256x8xf32> -> vector<256x8xf32>
    %c0_18 = arith.constant 0 : index
    %c1_19 = arith.constant 1 : index
    %c0_20 = arith.constant 0 : index
    %14 = vector.load %arg8[%c0_18, %c1_19, %c0_20] : memref<18x18x4xf32, #tpu.memory_space<vmem>>, vector<16x16x4xf32>
    %15 = vector.shape_cast %14 : vector<16x16x4xf32> to vector<256x4xf32>
    %16 = arith.truncf %15 : vector<256x4xf32> to vector<256x4xbf16>
    %c1_21 = arith.constant 1 : index
    %c0_22 = arith.constant 0 : index
    %c0_23 = arith.constant 0 : index
    %17 = vector.load %arg2[%c1_21, %c0_22, %c0_23] : memref<9x4x8xbf16, #tpu.memory_space<vmem>>, vector<1x4x8xbf16>
    %18 = vector.shape_cast %17 : vector<1x4x8xbf16> to vector<4x8xbf16>
    %cst_24 = arith.constant dense<0.000000e+00> : vector<256x8xf32>
    %19 = tpu.matmul %16, %18, %cst_24 {dimension_numbers = #tpu.dot_dimension_numbers<[1], [0], [0], [1], [0, 0, 1, 1], [], []>} : vector<256x4xbf16>, vector<4x8xbf16>, vector<256x8xf32> -> vector<256x8xf32>
    %20 = arith.addf %13, %19 : vector<256x8xf32>
    %c0_25 = arith.constant 0 : index
    %c2 = arith.constant 2 : index
    %c0_26 = arith.constant 0 : index
    %21 = vector.load %arg8[%c0_25, %c2, %c0_26] : memref<18x18x4xf32, #tpu.memory_space<vmem>>, vector<16x16x4xf32>
    %22 = vector.shape_cast %21 : vector<16x16x4xf32> to vector<256x4xf32>
    %23 = arith.truncf %22 : vector<256x4xf32> to vector<256x4xbf16>
    %c2_27 = arith.constant 2 : index
    %c0_28 = arith.constant 0 : index
    %c0_29 = arith.constant 0 : index
    %24 = vector.load %arg2[%c2_27, %c0_28, %c0_29] : memref<9x4x8xbf16, #tpu.memory_space<vmem>>, vector<1x4x8xbf16>
    %25 = vector.shape_cast %24 : vector<1x4x8xbf16> to vector<4x8xbf16>
    %cst_30 = arith.constant dense<0.000000e+00> : vector<256x8xf32>
    %26 = tpu.matmul %23, %25, %cst_30 {dimension_numbers = #tpu.dot_dimension_numbers<[1], [0], [0], [1], [0, 0, 1, 1], [], []>} : vector<256x4xbf16>, vector<4x8xbf16>, vector<256x8xf32> -> vector<256x8xf32>
    %27 = arith.addf %20, %26 : vector<256x8xf32>
    %c1_31 = arith.constant 1 : index
    %c0_32 = arith.constant 0 : index
    %c0_33 = arith.constant 0 : index
    %28 = vector.load %arg8[%c1_31, %c0_32, %c0_33] : memref<18x18x4xf32, #tpu.memory_space<vmem>>, vector<16x16x4xf32>
    %29 = vector.shape_cast %28 : vector<16x16x4xf32> to vector<256x4xf32>
    %30 = arith.truncf %29 : vector<256x4xf32> to vector<256x4xbf16>
    %c3 = arith.constant 3 : index
    %c0_34 = arith.constant 0 : index
    %c0_35 = arith.constant 0 : index
    %31 = vector.load %arg2[%c3, %c0_34, %c0_35] : memref<9x4x8xbf16, #tpu.memory_space<vmem>>, vector<1x4x8xbf16>
    %32 = vector.shape_cast %31 : vector<1x4x8xbf16> to vector<4x8xbf16>
    %cst_36 = arith.constant dense<0.000000e+00> : vector<256x8xf32>
    %33 = tpu.matmul %30, %32, %cst_36 {dimension_numbers = #tpu.dot_dimension_numbers<[1], [0], [0], [1], [0, 0, 1, 1], [], []>} : vector<256x4xbf16>, vector<4x8xbf16>, vector<256x8xf32> -> vector<256x8xf32>
    %34 = arith.addf %27, %33 : vector<256x8xf32>
    %c1_37 = arith.constant 1 : index
    %c1_38 = arith.constant 1 : index
    %c0_39 = arith.constant 0 : index
    %35 = vector.load %arg8[%c1_37, %c1_38, %c0_39] : memref<18x18x4xf32, #tpu.memory_space<vmem>>, vector<16x16x4xf32>
    %36 = vector.shape_cast %35 : vector<16x16x4xf32> to vector<256x4xf32>
    %37 = arith.truncf %36 : vector<256x4xf32> to vector<256x4xbf16>
    %c4 = arith.constant 4 : index
    %c0_40 = arith.constant 0 : index
    %c0_41 = arith.constant 0 : index
    %38 = vector.load %arg2[%c4, %c0_40, %c0_41] : memref<9x4x8xbf16, #tpu.memory_space<vmem>>, vector<1x4x8xbf16>
    %39 = vector.shape_cast %38 : vector<1x4x8xbf16> to vector<4x8xbf16>
    %cst_42 = arith.constant dense<0.000000e+00> : vector<256x8xf32>
    %40 = tpu.matmul %37, %39, %cst_42 {dimension_numbers = #tpu.dot_dimension_numbers<[1], [0], [0], [1], [0, 0, 1, 1], [], []>} : vector<256x4xbf16>, vector<4x8xbf16>, vector<256x8xf32> -> vector<256x8xf32>
    %41 = arith.addf %34, %40 : vector<256x8xf32>
    %c0_43 = arith.constant 0 : index
    %c0_44 = arith.constant 0 : index
    %42 = vector.load %arg3[%c0_43, %c0_44] : memref<4x8xbf16, #tpu.memory_space<vmem>>, vector<4x8xbf16>
    %cst_45 = arith.constant dense<0.000000e+00> : vector<256x8xf32>
    %43 = tpu.matmul %37, %42, %cst_45 {dimension_numbers = #tpu.dot_dimension_numbers<[1], [0], [0], [1], [0, 0, 1, 1], [], []>} : vector<256x4xbf16>, vector<4x8xbf16>, vector<256x8xf32> -> vector<256x8xf32>
    %c1_46 = arith.constant 1 : index
    %c2_47 = arith.constant 2 : index
    %c0_48 = arith.constant 0 : index
    %44 = vector.load %arg8[%c1_46, %c2_47, %c0_48] : memref<18x18x4xf32, #tpu.memory_space<vmem>>, vector<16x16x4xf32>
    %45 = vector.shape_cast %44 : vector<16x16x4xf32> to vector<256x4xf32>
    %46 = arith.truncf %45 : vector<256x4xf32> to vector<256x4xbf16>
    %c5 = arith.constant 5 : index
    %c0_49 = arith.constant 0 : index
    %c0_50 = arith.constant 0 : index
    %47 = vector.load %arg2[%c5, %c0_49, %c0_50] : memref<9x4x8xbf16, #tpu.memory_space<vmem>>, vector<1x4x8xbf16>
    %48 = vector.shape_cast %47 : vector<1x4x8xbf16> to vector<4x8xbf16>
    %cst_51 = arith.constant dense<0.000000e+00> : vector<256x8xf32>
    %49 = tpu.matmul %46, %48, %cst_51 {dimension_numbers = #tpu.dot_dimension_numbers<[1], [0], [0], [1], [0, 0, 1, 1], [], []>} : vector<256x4xbf16>, vector<4x8xbf16>, vector<256x8xf32> -> vector<256x8xf32>
    %50 = arith.addf %41, %49 : vector<256x8xf32>
    %c2_52 = arith.constant 2 : index
    %c0_53 = arith.constant 0 : index
    %c0_54 = arith.constant 0 : index
    %51 = vector.load %arg8[%c2_52, %c0_53, %c0_54] : memref<18x18x4xf32, #tpu.memory_space<vmem>>, vector<16x16x4xf32>
    %52 = vector.shape_cast %51 : vector<16x16x4xf32> to vector<256x4xf32>
    %53 = arith.truncf %52 : vector<256x4xf32> to vector<256x4xbf16>
    %c6 = arith.constant 6 : index
    %c0_55 = arith.constant 0 : index
    %c0_56 = arith.constant 0 : index
    %54 = vector.load %arg2[%c6, %c0_55, %c0_56] : memref<9x4x8xbf16, #tpu.memory_space<vmem>>, vector<1x4x8xbf16>
    %55 = vector.shape_cast %54 : vector<1x4x8xbf16> to vector<4x8xbf16>
    %cst_57 = arith.constant dense<0.000000e+00> : vector<256x8xf32>
    %56 = tpu.matmul %53, %55, %cst_57 {dimension_numbers = #tpu.dot_dimension_numbers<[1], [0], [0], [1], [0, 0, 1, 1], [], []>} : vector<256x4xbf16>, vector<4x8xbf16>, vector<256x8xf32> -> vector<256x8xf32>
    %57 = arith.addf %50, %56 : vector<256x8xf32>
    %c2_58 = arith.constant 2 : index
    %c1_59 = arith.constant 1 : index
    %c0_60 = arith.constant 0 : index
    %58 = vector.load %arg8[%c2_58, %c1_59, %c0_60] : memref<18x18x4xf32, #tpu.memory_space<vmem>>, vector<16x16x4xf32>
    %59 = vector.shape_cast %58 : vector<16x16x4xf32> to vector<256x4xf32>
    %60 = arith.truncf %59 : vector<256x4xf32> to vector<256x4xbf16>
    %c7 = arith.constant 7 : index
    %c0_61 = arith.constant 0 : index
    %c0_62 = arith.constant 0 : index
    %61 = vector.load %arg2[%c7, %c0_61, %c0_62] : memref<9x4x8xbf16, #tpu.memory_space<vmem>>, vector<1x4x8xbf16>
    %62 = vector.shape_cast %61 : vector<1x4x8xbf16> to vector<4x8xbf16>
    %cst_63 = arith.constant dense<0.000000e+00> : vector<256x8xf32>
    %63 = tpu.matmul %60, %62, %cst_63 {dimension_numbers = #tpu.dot_dimension_numbers<[1], [0], [0], [1], [0, 0, 1, 1], [], []>} : vector<256x4xbf16>, vector<4x8xbf16>, vector<256x8xf32> -> vector<256x8xf32>
    %64 = arith.addf %57, %63 : vector<256x8xf32>
    %c2_64 = arith.constant 2 : index
    %c2_65 = arith.constant 2 : index
    %c0_66 = arith.constant 0 : index
    %65 = vector.load %arg8[%c2_64, %c2_65, %c0_66] : memref<18x18x4xf32, #tpu.memory_space<vmem>>, vector<16x16x4xf32>
    %66 = vector.shape_cast %65 : vector<16x16x4xf32> to vector<256x4xf32>
    %67 = arith.truncf %66 : vector<256x4xf32> to vector<256x4xbf16>
    %c8 = arith.constant 8 : index
    %c0_67 = arith.constant 0 : index
    %c0_68 = arith.constant 0 : index
    %68 = vector.load %arg2[%c8, %c0_67, %c0_68] : memref<9x4x8xbf16, #tpu.memory_space<vmem>>, vector<1x4x8xbf16>
    %69 = vector.shape_cast %68 : vector<1x4x8xbf16> to vector<4x8xbf16>
    %cst_69 = arith.constant dense<0.000000e+00> : vector<256x8xf32>
    %70 = tpu.matmul %67, %69, %cst_69 {dimension_numbers = #tpu.dot_dimension_numbers<[1], [0], [0], [1], [0, 0, 1, 1], [], []>} : vector<256x4xbf16>, vector<4x8xbf16>, vector<256x8xf32> -> vector<256x8xf32>
    %71 = arith.addf %64, %70 : vector<256x8xf32>
    %c0_70 = arith.constant 0 : index
    %c0_71 = arith.constant 0 : index
    %72 = vector.load %arg5[%c0_70, %c0_71] : memref<1x8xf32, #tpu.memory_space<vmem>>, vector<1x8xf32>
    %73 = vector.broadcast %72 : vector<1x8xf32> to vector<256x8xf32>
    %74 = arith.addf %71, %73 : vector<256x8xf32>
    %cst_72 = arith.constant 0.000000e+00 : f32
    %75 = vector.broadcast %cst_72 : f32 to vector<256x8xf32>
    %76 = arith.maximumf %74, %75 : vector<256x8xf32>
    %c0_73 = arith.constant 0 : index
    %c0_74 = arith.constant 0 : index
    %77 = vector.load %arg4[%c0_73, %c0_74] : memref<1x8xf32, #tpu.memory_space<vmem>>, vector<1x8xf32>
    %78 = vector.broadcast %77 : vector<1x8xf32> to vector<256x8xf32>
    %79 = arith.mulf %76, %78 : vector<256x8xf32>
    %80 = arith.addf %79, %43 : vector<256x8xf32>
    %c0_75 = arith.constant 0 : index
    %c0_76 = arith.constant 0 : index
    %81 = vector.load %arg6[%c0_75, %c0_76] : memref<1x8xf32, #tpu.memory_space<vmem>>, vector<1x8xf32>
    %82 = vector.broadcast %81 : vector<1x8xf32> to vector<256x8xf32>
    %83 = arith.addf %80, %82 : vector<256x8xf32>
    %cst_77 = arith.constant 0.000000e+00 : f32
    %84 = vector.broadcast %cst_77 : f32 to vector<256x8xf32>
    %85 = arith.maximumf %83, %84 : vector<256x8xf32>
    %86 = vector.shape_cast %85 : vector<256x8xf32> to vector<16x16x8xf32>
    %c0_78 = arith.constant 0 : index
    %c0_79 = arith.constant 0 : index
    %c0_80 = arith.constant 0 : index
    %c0_81 = arith.constant 0 : index
    %87 = vector.load %arg7[%c0_78, %c0_79, %c0_80, %c0_81] : memref<1x16x16x8xf32, #tpu.memory_space<vmem>>, vector<1x16x16x8xf32>
    %88 = vector.shape_cast %87 : vector<1x16x16x8xf32> to vector<16x16x8xf32>
    %89 = vector.shape_cast %86 : vector<16x16x8xf32> to vector<1x16x16x8xf32>
    tpu.vector_store %arg7[%c0_78, %c0_79, %c0_80, %c0_81], %89 {strides = array<i32>} : memref<1x16x16x8xf32, #tpu.memory_space<vmem>>, vector<1x16x16x8xf32>,
    return
  }
  func.func @transform_0(%arg0: i32) -> (i32, i32, i32, i32) {
    %c0_i32 = arith.constant 0 : i32
    %c0_i32_0 = arith.constant 0 : i32
    %c0_i32_1 = arith.constant 0 : i32
    %c0_i32_2 = arith.constant 0 : i32
    return %arg0, %c0_i32, %c0_i32_0, %c0_i32_1 : i32, i32, i32, i32
  }
  func.func @transform_1(%arg0: i32) -> (i32, i32, i32) {
    %c0_i32 = arith.constant 0 : i32
    %c0_i32_0 = arith.constant 0 : i32
    %c0_i32_1 = arith.constant 0 : i32
    %c0_i32_2 = arith.constant 0 : i32
    return %c0_i32, %c0_i32_0, %c0_i32_1 : i32, i32, i32
  }
  func.func @transform_2(%arg0: i32) -> (i32, i32) {
    %c0_i32 = arith.constant 0 : i32
    %c0_i32_0 = arith.constant 0 : i32
    %c0_i32_1 = arith.constant 0 : i32
    return %c0_i32, %c0_i32_0 : i32, i32
  }
  func.func @transform_3(%arg0: i32) -> (i32, i32) {
    %c0_i32 = arith.constant 0 : i32
    %c0_i32_0 = arith.constant 0 : i32
    %c0_i32_1 = arith.constant 0 : i32
    return %c0_i32, %c0_i32_0 : i32, i32
  }
  func.func @transform_4(%arg0: i32) -> (i32, i32) {
    %c0_i32 = arith.constant 0 : i32
    %c0_i32_0 = arith.constant 0 : i32
    %c0_i32_1 = arith.constant 0 : i32
    return %c0_i32, %c0_i32_0 : i32, i32
  }
  func.func @transform_5(%arg0: i32) -> (i32, i32) {
    %c0_i32 = arith.constant 0 : i32
    %c0_i32_0 = arith.constant 0 : i32
    %c0_i32_1 = arith.constant 0 : i32
    return %c0_i32, %c0_i32_0 : i32, i32
  }
  func.func @transform_6(%arg0: i32) -> (i32, i32, i32, i32) {
    %c0_i32 = arith.constant 0 : i32
    %c0_i32_0 = arith.constant 0 : i32
    %c0_i32_1 = arith.constant 0 : i32
    %c0_i32_2 = arith.constant 0 : i32
    return %arg0, %c0_i32, %c0_i32_0, %c0_i32_1 : i32, i32, i32, i32
  }
}

</mosaic_0001>

<llo_original>
// kernel: tpu_custom_call.1
$region0: #{tpu_custom_call.1}
  #allocation0 [shape = 'u32[]', space=smem, size = 0x4, offset = 0x4, fixed_abs, tag = 'smem constant byte address 0x4 - core index']
  #allocation1 [shape = 'u32[144,128]{1,0:T(1,128)}', space=vmem, size = 0x12000, scoped, tag = 'internal scratch']
  #allocation2 [shape = 'f32[18,18,4]{2,1,0:T(8,128)}', space=vmem, size = 0x36000, scoped, tag = 'scratch operand']
  %s0 = inlined_call_operand.vmem [shape: bf16[2,16,18,4], index: 0, kind: input, shape index: {}]
  %s1 = inlined_call_operand.vmem [shape: bf16[9,4,8], index: 1, kind: input, shape index: {}]
  %s2 = inlined_call_operand.vmem [shape: bf16[4,8], index: 2, kind: input, shape index: {}]
  %s3 = inlined_call_operand.vmem [shape: f32[1,8], index: 3, kind: input, shape index: {}]
  %s4 = inlined_call_operand.vmem [shape: f32[1,8], index: 4, kind: input, shape index: {}]
  %s5 = inlined_call_operand.vmem [shape: f32[1,8], index: 5, kind: input, shape index: {}]
  %s6 = inlined_call_operand.vmem [shape: f32[2,16,16,8], index: 6, kind: output, shape index: {}]
  %s7 = sld [smem:[#allocation0]]
  $region57: #{tpu_custom_call.1} parent=0
    _
  %s9 = ssub.s32 1, %s7
  %s10 = scalar_select 0, %s9, %s7
  loop: start=0, step=1, limit=4
  $region2: #{tpu_custom_call.1} parent=0 // loop_pre_header
    _
  $region3: #{tpu_custom_call.1} parent=0 // loop_header
    %s12 = sphi 0, %s16
    %p13 = scmp.ge.s32.totalorder %s12, 4
    %s22 = sphi 0, %s24
    %s25 = sphi 0, %s22
    %s26 = sphi 0, %s25
    %s42 = sphi 0, %s26
    %s46 = sphi 0, %s46
    %s48 = sphi 0, %s46
    %s49 = sphi 0, %s48
    %s63 = sphi 0, %s49
    %s67 = sphi 0, %s67
    %s69 = sphi 0, %s67
    %s70 = sphi 0, %s69
    %s84 = sphi 0, %s70
    %s88 = sphi 0, %s88
    %s90 = sphi 0, %s88
    %s91 = sphi 0, %s90
    %s105 = sphi 0, %s91
    %s109 = sphi 0, %s109
    %s111 = sphi 0, %s109
    %s112 = sphi 0, %s111
    %s126 = sphi 0, %s112
    %s130 = sphi 0, %s130
    %s132 = sphi 0, %s130
    %s133 = sphi 0, %s132
    %s147 = sphi 0, %s133
    %s153 = sphi 0, %s155
    %s156 = sphi 0, %s153
    %s157 = sphi 0, %s156
    %s173 = sphi 0, %s157
  $region4: #{tpu_custom_call.1} parent=0 // loop_header_branch
    %15 = sbr.rel (%p13) target = $region8
  $region5: #{tpu_custom_call.1} parent=0 // loop_body
    %s17 = ssub.s32 %s12, 1
    %s18 = ssub.s32 %s12, 2
    %s19 = sadd.s32 %s12, 1
    %s20 = ssub.s32 %s12, %s19
    %p21 = scmp.eq.s32.totalorder %s20, 0
    %s23 = sadd.s32 %s22, 1
    %s24 = scalar_select %p21, %s22, %s23
    %p27 = pneg %p21
    %p28 = scmp.eq.s32.totalorder %s12, 1
    %p29 = por %p27, %p28
    %p30 = scmp.ne.s32.totalorder %s22, %s25
    %p31 = scmp.eq.s32.totalorder %s12, 0
    %p32 = por %p30, %p31
    %p33 = scmp.ne.s32.totalorder %s22, %s25
    %p34 = scmp.eq.s32.totalorder %s17, 1
    %p35 = por %p33, %p34
    %p36 = scmp.ne.s32.totalorder %s25, %s26
    %p37 = scmp.eq.s32.totalorder %s17, 0
    %p38 = por %p36, %p37
    %p39 = scmp.ne.s32.totalorder %s25, %s26
    %p40 = scmp.eq.s32.totalorder %s18, 1
    %p41 = por %p39, %p40
    %p43 = scmp.ne.s32.totalorder %s26, %s42
    %p44 = scmp.eq.s32.totalorder %s18, 0
    %p45 = por %p43, %p44
    %s47 = sadd.s32 %s46, 1
    %p50 = scmp.eq.s32.totalorder %s12, 1
    %p51 = scmp.ne.s32.totalorder %s46, %s48
    %p52 = scmp.eq.s32.totalorder %s12, 0
    %p53 = por %p51, %p52
    %p54 = scmp.ne.s32.totalorder %s46, %s48
    %p55 = scmp.eq.s32.totalorder %s17, 1
    %p56 = por %p54, %p55
    %p57 = scmp.ne.s32.totalorder %s48, %s49
    %p58 = scmp.eq.s32.totalorder %s17, 0
    %p59 = por %p57, %p58
    %p60 = scmp.ne.s32.totalorder %s48, %s49
    %p61 = scmp.eq.s32.totalorder %s18, 1
    %p62 = por %p60, %p61
    %p64 = scmp.ne.s32.totalorder %s49, %s63
    %p65 = scmp.eq.s32.totalorder %s18, 0
    %p66 = por %p64, %p65
    %s68 = sadd.s32 %s67, 1
    %p71 = scmp.eq.s32.totalorder %s12, 1
    %p72 = scmp.ne.s32.totalorder %s67, %s69
    %p73 = scmp.eq.s32.totalorder %s12, 0
    %p74 = por %p72, %p73
    %p75 = scmp.ne.s32.totalorder %s67, %s69
    %p76 = scmp.eq.s32.totalorder %s17, 1
    %p77 = por %p75, %p76
    %p78 = scmp.ne.s32.totalorder %s69, %s70
    %p79 = scmp.eq.s32.totalorder %s17, 0
    %p80 = por %p78, %p79
    %p81 = scmp.ne.s32.totalorder %s69, %s70
    %p82 = scmp.eq.s32.totalorder %s18, 1
    %p83 = por %p81, %p82
    %p85 = scmp.ne.s32.totalorder %s70, %s84
    %p86 = scmp.eq.s32.totalorder %s18, 0
    %p87 = por %p85, %p86
    %s89 = sadd.s32 %s88, 1
    %p92 = scmp.eq.s32.totalorder %s12, 1
    %p93 = scmp.ne.s32.totalorder %s88, %s90
    %p94 = scmp.eq.s32.totalorder %s12, 0
    %p95 = por %p93, %p94
    %p96 = scmp.ne.s32.totalorder %s88, %s90
    %p97 = scmp.eq.s32.totalorder %s17, 1
    %p98 = por %p96, %p97
    %p99 = scmp.ne.s32.totalorder %s90, %s91
    %p100 = scmp.eq.s32.totalorder %s17, 0
    %p101 = por %p99, %p100
    %p102 = scmp.ne.s32.totalorder %s90, %s91
    %p103 = scmp.eq.s32.totalorder %s18, 1
    %p104 = por %p102, %p103
    %p106 = scmp.ne.s32.totalorder %s91, %s105
    %p107 = scmp.eq.s32.totalorder %s18, 0
    %p108 = por %p106, %p107
    %s110 = sadd.s32 %s109, 1
    %p113 = scmp.eq.s32.totalorder %s12, 1
    %p114 = scmp.ne.s32.totalorder %s109, %s111
    %p115 = scmp.eq.s32.totalorder %s12, 0
    %p116 = por %p114, %p115
    %p117 = scmp.ne.s32.totalorder %s109, %s111
    %p118 = scmp.eq.s32.totalorder %s17, 1
    %p119 = por %p117, %p118
    %p120 = scmp.ne.s32.totalorder %s111, %s112
    %p121 = scmp.eq.s32.totalorder %s17, 0
    %p122 = por %p120, %p121
    %p123 = scmp.ne.s32.totalorder %s111, %s112
    %p124 = scmp.eq.s32.totalorder %s18, 1
    %p125 = por %p123, %p124
    %p127 = scmp.ne.s32.totalorder %s112, %s126
    %p128 = scmp.eq.s32.totalorder %s18, 0
    %p129 = por %p127, %p128
    %s131 = sadd.s32 %s130, 1
    %p134 = scmp.eq.s32.totalorder %s12, 1
    %p135 = scmp.ne.s32.totalorder %s130, %s132
    %p136 = scmp.eq.s32.totalorder %s12, 0
    %p137 = por %p135, %p136
    %p138 = scmp.ne.s32.totalorder %s130, %s132
    %p139 = scmp.eq.s32.totalorder %s17, 1
    %p140 = por %p138, %p139
    %p141 = scmp.ne.s32.totalorder %s132, %s133
    %p142 = scmp.eq.s32.totalorder %s17, 0
    %p143 = por %p141, %p142
    %p144 = scmp.ne.s32.totalorder %s132, %s133
    %p145 = scmp.eq.s32.totalorder %s18, 1
    %p146 = por %p144, %p145
    %p148 = scmp.ne.s32.totalorder %s133, %s147
    %p149 = scmp.eq.s32.totalorder %s18, 0
    %p150 = por %p148, %p149
    %s151 = ssub.s32 %s12, %s19
    %p152 = scmp.eq.s32.totalorder %s151, 0
    %s154 = sadd.s32 %s153, 1
    %s155 = scalar_select %p152, %s153, %s154
    %p158 = pneg %p152
    %p159 = scmp.eq.s32.totalorder %s12, 1
    %p160 = por %p158, %p159
    %p161 = scmp.ne.s32.totalorder %s153, %s156
    %p162 = scmp.eq.s32.totalorder %s12, 0
    %p163 = por %p161, %p162
    %p164 = scmp.ne.s32.totalorder %s153, %s156
    %p165 = scmp.eq.s32.totalorder %s17, 1
    %p166 = por %p164, %p165
    %p167 = scmp.ne.s32.totalorder %s156, %s157
    %p168 = scmp.eq.s32.totalorder %s17, 0
    %p169 = por %p167, %p168
    %p170 = scmp.ne.s32.totalorder %s156, %s157
    %p171 = scmp.eq.s32.totalorder %s18, 1
    %p172 = por %p170, %p171
    %p174 = scmp.ne.s32.totalorder %s157, %s173
    %p175 = scmp.eq.s32.totalorder %s18, 0
    %p176 = por %p174, %p175
    %p177 = scmp.le.s32.totalorder 1, %s12
    %p178 = scmp.lt.s32.totalorder %s12, 3
    %p179 = pnand %p177, %p178
    %p180 = pneg %p179
    // Predicated region
    $region9: #{tpu_custom_call.1} parent=5 // pred_check
      _
    $region10: #{tpu_custom_call.1} parent=5 // pred_check_branch
      %182 = sbr.rel (%p179) target = $region12
    $region11: #{tpu_custom_call.1} parent=5 // pred_region
      %s183 = ssub.s32 %s12, 1
      // Predicated region
      $region13: #{tpu_custom_call.1} parent=11 // pred_check
        %p184 = pneg %p59
      $region14: #{tpu_custom_call.1} parent=11 // pred_check_branch
        %186 = sbr.rel (%p184) target = $region16
      $region15: #{tpu_custom_call.1} parent=11 // pred_region
        _
      $region16: #{tpu_custom_call.1} parent=11 // pred_fallthru
        _
      // Predicated region
      $region17: #{tpu_custom_call.1} parent=11 // pred_check
        %p187 = pneg %p80
      $region18: #{tpu_custom_call.1} parent=11 // pred_check_branch
        %189 = sbr.rel (%p187) target = $region20
      $region19: #{tpu_custom_call.1} parent=11 // pred_region
        _
      $region20: #{tpu_custom_call.1} parent=11 // pred_fallthru
        _
      // Predicated region
      $region21: #{tpu_custom_call.1} parent=11 // pred_check
        %p190 = pneg %p101
      $region22: #{tpu_custom_call.1} parent=11 // pred_check_branch
        %192 = sbr.rel (%p190) target = $region24
      $region23: #{tpu_custom_call.1} parent=11 // pred_region
        _
      $region24: #{tpu_custom_call.1} parent=11 // pred_fallthru
        _
      // Predicated region
      $region25: #{tpu_custom_call.1} parent=11 // pred_check
        %p193 = pneg %p122
      $region26: #{tpu_custom_call.1} parent=11 // pred_check_branch
        %195 = sbr.rel (%p193) target = $region28
      $region27: #{tpu_custom_call.1} parent=11 // pred_region
        _
      $region28: #{tpu_custom_call.1} parent=11 // pred_fallthru
        _
      // Predicated region
      $region29: #{tpu_custom_call.1} parent=11 // pred_check
        %p196 = pneg %p143
      $region30: #{tpu_custom_call.1} parent=11 // pred_check_branch
        %198 = sbr.rel (%p196) target = $region32
      $region31: #{tpu_custom_call.1} parent=11 // pred_region
        _
      $region32: #{tpu_custom_call.1} parent=11 // pred_fallthru
        _
    $region12: #{tpu_custom_call.1} parent=5 // pred_fallthru
      _
    %p199 = scmp.lt.s32.totalorder %s12, 2
    // Predicated region
    $region33: #{tpu_custom_call.1} parent=5 // pred_check
      %p200 = pneg %p199
    $region34: #{tpu_custom_call.1} parent=5 // pred_check_branch
      %202 = sbr.rel (%p200) target = $region36
    $region35: #{tpu_custom_call.1} parent=5 // pred_region
      // Predicated region
      $region37: #{tpu_custom_call.1} parent=35 // pred_check
        %p203 = pneg %p32
      $region38: #{tpu_custom_call.1} parent=35 // pred_check_branch
        %205 = sbr.rel (%p203) target = $region40
      $region39: #{tpu_custom_call.1} parent=35 // pred_region
        %p206 = scmp.lt.s32.totalorder %s12, 1
        %s207 = scalar_select %p206, %s12, 1
        %s208 = smul.addr %s207, 48
        %s209 = smul.addr %s208, 4
        %s210 = scalar_lea.vmem %s0, %s209
      $region40: #{tpu_custom_call.1} parent=35 // pred_fallthru
        _
    $region36: #{tpu_custom_call.1} parent=5 // pred_fallthru
      _
    %p211 = scmp.le.s32.totalorder 1, %s12
    %p212 = scmp.lt.s32.totalorder %s12, 3
    %p213 = pnand %p211, %p212
    %p214 = pneg %p213
    // Predicated region
    $region41: #{tpu_custom_call.1} parent=5 // pred_check
      _
    $region42: #{tpu_custom_call.1} parent=5 // pred_check_branch
      %216 = sbr.rel (%p213) target = $region44
    $region43: #{tpu_custom_call.1} parent=5 // pred_region
      %s217 = ssub.s32 %s12, 1
      %p218 = scmp.lt.s32.totalorder %s17, 1
      %s219 = scalar_select %p218, %s17, 1
      %s220 = smul.addr %s219, 48
      %s221 = smul.addr %s220, 4
      %s222 = scalar_lea.vmem %s0, %s221
      %p223 = pneg %p38
      %p224 = pneg %p35
      %p225 = pneg %p59
      %p226 = pneg %p56
      %p227 = pneg %p80
      %p228 = pneg %p77
      %p229 = pneg %p101
      %p230 = pneg %p98
      %p231 = pneg %p122
      %p232 = pneg %p119
      %p233 = pneg %p143
      %p234 = pneg %p140
      %p235 = pneg %p169
      %p236 = pneg %p166
      %p237 = scmp.lt.s32.totalorder %s17, 1
      %s238 = scalar_select %p237, %s17, 1
      %s239 = smul.addr %s238, 32
      %s240 = smul.addr %s239, 8
      %s241 = scalar_lea.vmem %s6, %s240
      %p242 = scmp.lt.s32.totalorder %s17, 1
      %s243 = scalar_select %p242, %s17, 1
      %s244 = smul.addr %s243, 48
      %s245 = smul.addr %s244, 4
      %s246 = scalar_lea.vmem %s0, %s245
      %p247 = scmp.lt.s32.totalorder %s17, 1
      %s248 = scalar_select %p247, %s17, 1
      %s249 = smul.addr %s248, 32
      %s250 = smul.addr %s249, 8
      %s251 = scalar_lea.vmem %s6, %s250
      %vm253 = vcmask 31744
      %254 = vst.msk [vmem:[#allocation2] sm:$0xff] %vm253, 0.0
      %255 = vst.msk [vmem:[#allocation2 + $0x8] sm:$0xff] %vm253, 0.0
      %vm256 = vcmask 25600
      %257 = vst.msk [vmem:[#allocation2 + $0x10] sm:$0x3] %vm256, 0.0
      %s258 = scalar_lea.vmem [#allocation2], 408
      %259 = vst.msk [vmem:[%s258] sm:$0xff] %vm253, 0.0
      %260 = vst.msk [vmem:[%s258 + $0x8] sm:$0xff] %vm253, 0.0
      %261 = vst.msk [vmem:[%s258 + $0x10] sm:$0x3] %vm256, 0.0
      %v262 = vld [vmem:[%s246] sm:$0xf]
      %v263 = vld [vmem:[%s246 + $0x4] sm:$0xf]
      %v264 = vld [vmem:[%s246 + $0x8] sm:$0x1]
      %v265 = vld [vmem:[%s246 + $0xc] sm:$0xf]
      %v266 = vld [vmem:[%s246 + $0x10] sm:$0xf]
      %v267 = vld [vmem:[%s246 + $0x14] sm:$0x1]
      %v268 = vld [vmem:[%s246 + $0x18] sm:$0xf]
      %v269 = vld [vmem:[%s246 + $0x1c] sm:$0xf]
      %v270 = vld [vmem:[%s246 + $0x20] sm:$0x1]
      %v271 = vld [vmem:[%s246 + $0x24] sm:$0xf]
      %v272 = vld [vmem:[%s246 + $0x28] sm:$0xf]
      %v273 = vld [vmem:[%s246 + $0x2c] sm:$0x1]
      %v274 = vld [vmem:[%s246 + $0x30] sm:$0xf]
      %v275 = vld [vmem:[%s246 + $0x34] sm:$0xf]
      %v276 = vld [vmem:[%s246 + $0x38] sm:$0x1]
      %v277 = vld [vmem:[%s246 + $0x3c] sm:$0xf]
      %v278 = vld [vmem:[%s246 + $0x40] sm:$0xf]
      %v279 = vld [vmem:[%s246 + $0x44] sm:$0x1]
      %v280 = vld [vmem:[%s246 + $0x48] sm:$0xf]
      %v281 = vld [vmem:[%s246 + $0x4c] sm:$0xf]
      %v282 = vld [vmem:[%s246 + $0x50] sm:$0x1]
      %v283 = vld [vmem:[%s246 + $0x54] sm:$0xf]
      %v284 = vld [vmem:[%s246 + $0x58] sm:$0xf]
      %v285 = vld [vmem:[%s246 + $0x5c] sm:$0x1]
      %v286 = vld [vmem:[%s246 + $0x60] sm:$0xf]
      %v287 = vld [vmem:[%s246 + $0x64] sm:$0xf]
      %v288 = vld [vmem:[%s246 + $0x68] sm:$0x1]
      %v289 = vld [vmem:[%s246 + $0x6c] sm:$0xf]
      %v290 = vld [vmem:[%s246 + $0x70] sm:$0xf]
      %v291 = vld [vmem:[%s246 + $0x74] sm:$0x1]
      %v292 = vld [vmem:[%s246 + $0x78] sm:$0xf]
      %v293 = vld [vmem:[%s246 + $0x7c] sm:$0xf]
      %v294 = vld [vmem:[%s246 + $0x80] sm:$0x1]
      %v295 = vld [vmem:[%s246 + $0x84] sm:$0xf]
      %v296 = vld [vmem:[%s246 + $0x88] sm:$0xf]
      %v297 = vld [vmem:[%s246 + $0x8c] sm:$0x1]
      %v298 = vld [vmem:[%s246 + $0x90] sm:$0xf]
      %v299 = vld [vmem:[%s246 + $0x94] sm:$0xf]
      %v300 = vld [vmem:[%s246 + $0x98] sm:$0x1]
      %v301 = vld [vmem:[%s246 + $0x9c] sm:$0xf]
      %v302 = vld [vmem:[%s246 + $0xa0] sm:$0xf]
      %v303 = vld [vmem:[%s246 + $0xa4] sm:$0x1]
      %v304 = vld [vmem:[%s246 + $0xa8] sm:$0xf]
      %v305 = vld [vmem:[%s246 + $0xac] sm:$0xf]
      %v306 = vld [vmem:[%s246 + $0xb0] sm:$0x1]
      %v307 = vld [vmem:[%s246 + $0xb4] sm:$0xf]
      %v308 = vld [vmem:[%s246 + $0xb8] sm:$0xf]
      %v309 = vld [vmem:[%s246 + $0xbc] sm:$0x1]
      %v310 = vunpack.c.l.bf16 %v262
      %v311 = vunpack.c.l.bf16 %v263
      %v312 = vunpack.c.l.bf16 %v264
      %v313 = vunpack.c.l.bf16 %v265
      %v314 = vunpack.c.l.bf16 %v266
      %v315 = vunpack.c.l.bf16 %v267
      %v316 = vunpack.c.l.bf16 %v268
      %v317 = vunpack.c.l.bf16 %v269
      %v318 = vunpack.c.l.bf16 %v270
      %v319 = vunpack.c.l.bf16 %v271
      %v320 = vunpack.c.l.bf16 %v272
      %v321 = vunpack.c.l.bf16 %v273
      %v322 = vunpack.c.l.bf16 %v274
      %v323 = vunpack.c.l.bf16 %v275
      %v324 = vunpack.c.l.bf16 %v276
      %v325 = vunpack.c.l.bf16 %v277
      %v326 = vunpack.c.l.bf16 %v278
      %v327 = vunpack.c.l.bf16 %v279
      %v328 = vunpack.c.l.bf16 %v280
      %v329 = vunpack.c.l.bf16 %v281
      %v330 = vunpack.c.l.bf16 %v282
      %v331 = vunpack.c.l.bf16 %v283
      %v332 = vunpack.c.l.bf16 %v284
      %v333 = vunpack.c.l.bf16 %v285
      %v334 = vunpack.c.l.bf16 %v286
      %v335 = vunpack.c.l.bf16 %v287
      %v336 = vunpack.c.l.bf16 %v288
      %v337 = vunpack.c.l.bf16 %v289
      %v338 = vunpack.c.l.bf16 %v290
      %v339 = vunpack.c.l.bf16 %v291
      %v340 = vunpack.c.l.bf16 %v292
      %v341 = vunpack.c.l.bf16 %v293
      %v342 = vunpack.c.l.bf16 %v294
      %v343 = vunpack.c.l.bf16 %v295
      %v344 = vunpack.c.l.bf16 %v296
      %v345 = vunpack.c.l.bf16 %v297
      %v346 = vunpack.c.l.bf16 %v298
      %v347 = vunpack.c.l.bf16 %v299
      %v348 = vunpack.c.l.bf16 %v300
      %v349 = vunpack.c.l.bf16 %v301
      %v350 = vunpack.c.l.bf16 %v302
      %v351 = vunpack.c.l.bf16 %v303
      %v352 = vunpack.c.l.bf16 %v304
      %v353 = vunpack.c.l.bf16 %v305
      %v354 = vunpack.c.l.bf16 %v306
      %v355 = vunpack.c.l.bf16 %v307
      %v356 = vunpack.c.l.bf16 %v308
      %v357 = vunpack.c.l.bf16 %v309
      %s358 = scalar_lea.vmem [#allocation2], 24
      %359 = vst.msk [vmem:[%s358] sm:$0xff] %vm253, %v310
      %360 = vst.msk [vmem:[%s358 + $0x8] sm:$0xff] %vm253, %v311
      %361 = vst.msk [vmem:[%s358 + $0x10] sm:$0x3] %vm256, %v312
      %362 = vst.msk [vmem:[%s358 + $0x18] sm:$0xff] %vm253, %v313
      %363 = vst.msk [vmem:[%s358 + $0x20] sm:$0xff] %vm253, %v314
      %364 = vst.msk [vmem:[%s358 + $0x28] sm:$0x3] %vm256, %v315
      %365 = vst.msk [vmem:[%s358 + $0x30] sm:$0xff] %vm253, %v316
      %366 = vst.msk [vmem:[%s358 + $0x38] sm:$0xff] %vm253, %v317
      %367 = vst.msk [vmem:[%s358 + $0x40] sm:$0x3] %vm256, %v318
      %368 = vst.msk [vmem:[%s358 + $0x48] sm:$0xff] %vm253, %v319
      %369 = vst.msk [vmem:[%s358 + $0x50] sm:$0xff] %vm253, %v320
      %370 = vst.msk [vmem:[%s358 + $0x58] sm:$0x3] %vm256, %v321
      %371 = vst.msk [vmem:[%s358 + $0x60] sm:$0xff] %vm253, %v322
      %372 = vst.msk [vmem:[%s358 + $0x68] sm:$0xff] %vm253, %v323
      %373 = vst.msk [vmem:[%s358 + $0x70] sm:$0x3] %vm256, %v324
      %374 = vst.msk [vmem:[%s358 + $0x78] sm:$0xff] %vm253, %v325
      %375 = vst.msk [vmem:[%s358 + $0x80] sm:$0xff] %vm253, %v326
      %376 = vst.msk [vmem:[%s358 + $0x88] sm:$0x3] %vm256, %v327
      %377 = vst.msk [vmem:[%s358 + $0x90] sm:$0xff] %vm253, %v328
      %378 = vst.msk [vmem:[%s358 + $0x98] sm:$0xff] %vm253, %v329
      %379 = vst.msk [vmem:[%s358 + $0xa0] sm:$0x3] %vm256, %v330
      %380 = vst.msk [vmem:[%s358 + $0xa8] sm:$0xff] %vm253, %v331
      %381 = vst.msk [vmem:[%s358 + $0xb0] sm:$0xff] %vm253, %v332
      %382 = vst.msk [vmem:[%s358 + $0xb8] sm:$0x3] %vm256, %v333
      %383 = vst.msk [vmem:[%s358 + $0xc0] sm:$0xff] %vm253, %v334
      %384 = vst.msk [vmem:[%s358 + $0xc8] sm:$0xff] %vm253, %v335
      %385 = vst.msk [vmem:[%s358 + $0xd0] sm:$0x3] %vm256, %v336
      %386 = vst.msk [vmem:[%s358 + $0xd8] sm:$0xff] %vm253, %v337
      %387 = vst.msk [vmem:[%s358 + $0xe0] sm:$0xff] %vm253, %v338
      %388 = vst.msk [vmem:[%s358 + $0xe8] sm:$0x3] %vm256, %v339
      %389 = vst.msk [vmem:[%s358 + $0xf0] sm:$0xff] %vm253, %v340
      %390 = vst.msk [vmem:[%s358 + $0xf8] sm:$0xff] %vm253, %v341
      %391 = vst.msk [vmem:[%s358 + $0x100] sm:$0x3] %vm256, %v342
      %392 = vst.msk [vmem:[%s358 + $0x108] sm:$0xff] %vm253, %v343
      %393 = vst.msk [vmem:[%s358 + $0x110] sm:$0xff] %vm253, %v344
      %394 = vst.msk [vmem:[%s358 + $0x118] sm:$0x3] %vm256, %v345
      %395 = vst.msk [vmem:[%s358 + $0x120] sm:$0xff] %vm253, %v346
      %396 = vst.msk [vmem:[%s358 + $0x128] sm:$0xff] %vm253, %v347
      %397 = vst.msk [vmem:[%s358 + $0x130] sm:$0x3] %vm256, %v348
      %398 = vst.msk [vmem:[%s358 + $0x138] sm:$0xff] %vm253, %v349
      %399 = vst.msk [vmem:[%s358 + $0x140] sm:$0xff] %vm253, %v350
      %400 = vst.msk [vmem:[%s358 + $0x148] sm:$0x3] %vm256, %v351
      %401 = vst.msk [vmem:[%s358 + $0x150] sm:$0xff] %vm253, %v352
      %402 = vst.msk [vmem:[%s358 + $0x158] sm:$0xff] %vm253, %v353
      %403 = vst.msk [vmem:[%s358 + $0x160] sm:$0x3] %vm256, %v354
      %404 = vst.msk [vmem:[%s358 + $0x168] sm:$0xff] %vm253, %v355
      %405 = vst.msk [vmem:[%s358 + $0x170] sm:$0xff] %vm253, %v356
      %406 = vst.msk [vmem:[%s358 + $0x178] sm:$0x3] %vm256, %v357
      %v407 = vld [vmem:[#allocation2] sm:$0xff]
      %v408 = vld [vmem:[#allocation2 + $0x8] sm:$0xff]
      %v409 = vld [vmem:[#allocation2 + $0x18] sm:$0xff]
      %v410 = vld [vmem:[#allocation2 + $0x20] sm:$0xff]
      %v411 = vld [vmem:[#allocation2 + $0x30] sm:$0xff]
      %v412 = vld [vmem:[#allocation2 + $0x38] sm:$0xff]
      %v413 = vld [vmem:[#allocation2 + $0x48] sm:$0xff]
      %v414 = vld [vmem:[#allocation2 + $0x50] sm:$0xff]
      %v415 = vld [vmem:[#allocation2 + $0x60] sm:$0xff]
      %v416 = vld [vmem:[#allocation2 + $0x68] sm:$0xff]
      %v417 = vld [vmem:[#allocation2 + $0x78] sm:$0xff]
      %v418 = vld [vmem:[#allocation2 + $0x80] sm:$0xff]
      %v419 = vld [vmem:[#allocation2 + $0x90] sm:$0xff]
      %v420 = vld [vmem:[#allocation2 + $0x98] sm:$0xff]
      %v421 = vld [vmem:[#allocation2 + $0xa8] sm:$0xff]
      %v422 = vld [vmem:[#allocation2 + $0xb0] sm:$0xff]
      %v423 = vld [vmem:[#allocation2 + $0xc0] sm:$0xff]
      %v424 = vld [vmem:[#allocation2 + $0xc8] sm:$0xff]
      %v425 = vld [vmem:[#allocation2 + $0xd8] sm:$0xff]
      %v426 = vld [vmem:[#allocation2 + $0xe0] sm:$0xff]
      %v427 = vld [vmem:[#allocation2 + $0xf0] sm:$0xff]
      %v428 = vld [vmem:[#allocation2 + $0xf8] sm:$0xff]
      %v429 = vld [vmem:[#allocation2 + $0x108] sm:$0xff]
      %v430 = vld [vmem:[#allocation2 + $0x110] sm:$0xff]
      %v431 = vld [vmem:[#allocation2 + $0x120] sm:$0xff]
      %v432 = vld [vmem:[#allocation2 + $0x128] sm:$0xff]
      %v433 = vld [vmem:[#allocation2 + $0x138] sm:$0xff]
      %v434 = vld [vmem:[#allocation2 + $0x140] sm:$0xff]
      %v435 = vld [vmem:[#allocation2 + $0x150] sm:$0xff]
      %v436 = vld [vmem:[#allocation2 + $0x158] sm:$0xff]
      %v437 = vld [vmem:[#allocation2 + $0x168] sm:$0xff]
      %v438 = vld [vmem:[#allocation2 + $0x170] sm:$0xff]
      %v439 = vpack.c.bf16 %v408, %v407
      %v440 = vpack.c.bf16 %v410, %v409
      %v441 = vpack.c.bf16 %v412, %v411
      %v442 = vpack.c.bf16 %v414, %v413
      %v443 = vpack.c.bf16 %v416, %v415
      %v444 = vpack.c.bf16 %v418, %v417
      %v445 = vpack.c.bf16 %v420, %v419
      %v446 = vpack.c.bf16 %v422, %v421
      %v447 = vpack.c.bf16 %v424, %v423
      %v448 = vpack.c.bf16 %v426, %v425
      %v449 = vpack.c.bf16 %v428, %v427
      %v450 = vpack.c.bf16 %v430, %v429
      %v451 = vpack.c.bf16 %v432, %v431
      %v452 = vpack.c.bf16 %v434, %v433
      %v453 = vpack.c.bf16 %v436, %v435
      %v454 = vpack.c.bf16 %v438, %v437
      %v455 = vld [vmem:[%s1] sm:$0x3]
      %v456 = vld [vmem:[#allocation2 + $0x1] sm:$0xff]
      %v457 = vld [vmem:[#allocation2 + $0x9] sm:$0xff]
      %v458 = vld [vmem:[#allocation2 + $0x19] sm:$0xff]
      %v459 = vld [vmem:[#allocation2 + $0x21] sm:$0xff]
      %v460 = vld [vmem:[#allocation2 + $0x31] sm:$0xff]
      %v461 = vld [vmem:[#allocation2 + $0x39] sm:$0xff]
      %v462 = vld [vmem:[#allocation2 + $0x49] sm:$0xff]
      %v463 = vld [vmem:[#allocation2 + $0x51] sm:$0xff]
      %v464 = vld [vmem:[#allocation2 + $0x61] sm:$0xff]
      %v465 = vld [vmem:[#allocation2 + $0x69] sm:$0xff]
      %v466 = vld [vmem:[#allocation2 + $0x79] sm:$0xff]
      %v467 = vld [vmem:[#allocation2 + $0x81] sm:$0xff]
      %v468 = vld [vmem:[#allocation2 + $0x91] sm:$0xff]
      %v469 = vld [vmem:[#allocation2 + $0x99] sm:$0xff]
      %v470 = vld [vmem:[#allocation2 + $0xa9] sm:$0xff]
      %v471 = vld [vmem:[#allocation2 + $0xb1] sm:$0xff]
      %v472 = vld [vmem:[#allocation2 + $0xc1] sm:$0xff]
      %v473 = vld [vmem:[#allocation2 + $0xc9] sm:$0xff]
      %v474 = vld [vmem:[#allocation2 + $0xd9] sm:$0xff]
      %v475 = vld [vmem:[#allocation2 + $0xe1] sm:$0xff]
      %v476 = vld [vmem:[#allocation2 + $0xf1] sm:$0xff]
      %v477 = vld [vmem:[#allocation2 + $0xf9] sm:$0xff]
      %v478 = vld [vmem:[#allocation2 + $0x109] sm:$0xff]
      %v479 = vld [vmem:[#allocation2 + $0x111] sm:$0xff]
      %v480 = vld [vmem:[#allocation2 + $0x121] sm:$0xff]
      %v481 = vld [vmem:[#allocation2 + $0x129] sm:$0xff]
      %v482 = vld [vmem:[#allocation2 + $0x139] sm:$0xff]
      %v483 = vld [vmem:[#allocation2 + $0x141] sm:$0xff]
      %v484 = vld [vmem:[#allocation2 + $0x151] sm:$0xff]
      %v485 = vld [vmem:[#allocation2 + $0x159] sm:$0xff]
      %v486 = vld [vmem:[#allocation2 + $0x169] sm:$0xff]
      %v487 = vld [vmem:[#allocation2 + $0x171] sm:$0xff]
      %v488 = vpack.c.bf16 %v457, %v456
      %v489 = vpack.c.bf16 %v459, %v458
      %v490 = vpack.c.bf16 %v461, %v460
      %v491 = vpack.c.bf16 %v463, %v462
      %v492 = vpack.c.bf16 %v465, %v464
      %v493 = vpack.c.bf16 %v467, %v466
      %v494 = vpack.c.bf16 %v469, %v468
      %v495 = vpack.c.bf16 %v471, %v470
      %v496 = vpack.c.bf16 %v473, %v472
      %v497 = vpack.c.bf16 %v475, %v474
      %v498 = vpack.c.bf16 %v477, %v476
      %v499 = vpack.c.bf16 %v479, %v478
      %v500 = vpack.c.bf16 %v481, %v480
      %v501 = vpack.c.bf16 %v483, %v482
      %v502 = vpack.c.bf16 %v485, %v484
      %v503 = vpack.c.bf16 %v487, %v486
      %s504 = scalar_lea.vmem %s1, 2
      %v505 = vld [vmem:[%s504] sm:$0x3]
      %v507 = vsel %vm253, %v488, 0
      %v510 = vsel %vm253, %v489, 0
      %v513 = vsel %vm253, %v490, 0
      %v516 = vsel %vm253, %v491, 0
      %v519 = vsel %vm253, %v492, 0
      %v522 = vsel %vm253, %v493, 0
      %v525 = vsel %vm253, %v494, 0
      %v528 = vsel %vm253, %v495, 0
      %v531 = vsel %vm253, %v496, 0
      %v534 = vsel %vm253, %v497, 0
      %v537 = vsel %vm253, %v498, 0
      %v540 = vsel %vm253, %v499, 0
      %v543 = vsel %vm253, %v500, 0
      %v546 = vsel %vm253, %v501, 0
      %v549 = vsel %vm253, %v502, 0
      %v552 = vsel %vm253, %v503, 0
      %vm554 = vcmask 1041408
      %v556 = vsel %vm554, %v505, 0
      %558 = vmatprep.subr.bf16.mxu0 0
      %559 = vmatpush1.bf16.msra.mxu0 0
      %560 = vmatprep.subr.bf16.mxu0 0
      %561 = vmatpush1.bf16.msra.mxu0 0
      %562 = vmatprep.subr.bf16.mxu0 0
      %563 = vmatpush1.bf16.msra.mxu0 0
      %564 = vmatprep.subr.bf16.mxu0 0
      %565 = vmatpush1.bf16.msra.mxu0 0
      %566 = vmatprep.subr.bf16.mxu0 0
      %567 = vmatpush1.bf16.msra.mxu0 0
      %568 = vmatprep.subr.bf16.mxu0 0
      %569 = vmatpush1.bf16.msra.mxu0 0
      %570 = vmatprep.subr.bf16.mxu0 0
      %571 = vmatpush1.bf16.msra.mxu0 0
      %572 = vmatprep.subr.bf16.mxu0 0
      %573 = vmatpush1.bf16.msra.mxu0 %v556
      %574 = vmatprep.subr.bf16.mxu0 0
      %575 = vmatpush2.bf16.msra.mxu0 0
      %576 = vmatprep.subr.bf16.mxu0 0
      %577 = vmatpush2.bf16.msra.mxu0 0
      %578 = vmatprep.subr.bf16.mxu0 0
      %579 = vmatpush2.bf16.msra.mxu0 0
      %580 = vmatprep.subr.bf16.mxu0 0
      %581 = vmatpush2.bf16.msra.mxu0 0
      %582 = vmatprep.subr.bf16.mxu0 0
      %583 = vmatpush2.bf16.msra.mxu0 0
      %584 = vmatprep.subr.bf16.mxu0 0
      %585 = vmatpush2.bf16.msra.mxu0 0
      %586 = vmatprep.subr.bf16.mxu0 0
      %587 = vmatpush2.bf16.msra.mxu0 0
      %588 = vmatprep.subr.bf16.mxu0 0
      %589 = vmatpush2.bf16.msra.mxu0 0
      %590 = vmatprep.mubr.bf16.mxu0 0
      %591 = vmatmul.mubr.bf16.gmra.mxu0 %v507
      %v592 = vpop.f32.mrf.mxu0
      %v593 = vadd.f32 0.0, %v592
      %v594 = vpop.f32.mrf.mxu0
      %v595 = vpop.f32.mrf.mxu0
      %v596 = vadd.f32 0.0, %v595
      %v597 = vpop.f32.mrf.mxu0
      %598 = vmatprep.mubr.bf16.mxu0 0
      %599 = vmatmul.mubr.bf16.gmra.mxu0 %v510
      %v600 = vpop.f32.mrf.mxu0
      %v601 = vadd.f32 0.0, %v600
      %v602 = vpop.f32.mrf.mxu0
      %v603 = vpop.f32.mrf.mxu0
      %v604 = vadd.f32 0.0, %v603
      %v605 = vpop.f32.mrf.mxu0
      %606 = vmatprep.mubr.bf16.mxu0 0
      %607 = vmatmul.mubr.bf16.gmra.mxu0 %v513
      %v608 = vpop.f32.mrf.mxu0
      %v609 = vadd.f32 0.0, %v608
      %v610 = vpop.f32.mrf.mxu0
      %v611 = vpop.f32.mrf.mxu0
      %v612 = vadd.f32 0.0, %v611
      %v613 = vpop.f32.mrf.mxu0
      %614 = vmatprep.mubr.bf16.mxu0 0
      %615 = vmatmul.mubr.bf16.gmra.mxu0 %v516
      %v616 = vpop.f32.mrf.mxu0
      %v617 = vadd.f32 0.0, %v616
      %v618 = vpop.f32.mrf.mxu0
      %v619 = vpop.f32.mrf.mxu0
      %v620 = vadd.f32 0.0, %v619
      %v621 = vpop.f32.mrf.mxu0
      %622 = vmatprep.mubr.bf16.mxu0 0
      %623 = vmatmul.mubr.bf16.gmra.mxu0 %v519
      %v624 = vpop.f32.mrf.mxu0
      %v625 = vadd.f32 0.0, %v624
      %v626 = vpop.f32.mrf.mxu0
      %v627 = vpop.f32.mrf.mxu0
      %v628 = vadd.f32 0.0, %v627
      %v629 = vpop.f32.mrf.mxu0
      %630 = vmatprep.mubr.bf16.mxu0 0
      %631 = vmatmul.mubr.bf16.gmra.mxu0 %v522
      %v632 = vpop.f32.mrf.mxu0
      %v633 = vadd.f32 0.0, %v632
      %v634 = vpop.f32.mrf.mxu0
      %v635 = vpop.f32.mrf.mxu0
      %v636 = vadd.f32 0.0, %v635
      %v637 = vpop.f32.mrf.mxu0
      %638 = vmatprep.mubr.bf16.mxu0 0
      %639 = vmatmul.mubr.bf16.gmra.mxu0 %v525
      %v640 = vpop.f32.mrf.mxu0
      %v641 = vadd.f32 0.0, %v640
      %v642 = vpop.f32.mrf.mxu0
      %v643 = vpop.f32.mrf.mxu0
      %v644 = vadd.f32 0.0, %v643
      %v645 = vpop.f32.mrf.mxu0
      %646 = vmatprep.mubr.bf16.mxu0 0
      %647 = vmatmul.mubr.bf16.gmra.mxu0 %v528
      %v648 = vpop.f32.mrf.mxu0
      %v649 = vadd.f32 0.0, %v648
      %v650 = vpop.f32.mrf.mxu0
      %v651 = vpop.f32.mrf.mxu0
      %v652 = vadd.f32 0.0, %v651
      %v653 = vpop.f32.mrf.mxu0
      %654 = vmatprep.mubr.bf16.mxu0 0
      %655 = vmatmul.mubr.bf16.gmra.mxu0 %v531
      %v656 = vpop.f32.mrf.mxu0
      %v657 = vadd.f32 0.0, %v656
      %v658 = vpop.f32.mrf.mxu0
      %v659 = vpop.f32.mrf.mxu0
      %v660 = vadd.f32 0.0, %v659
      %v661 = vpop.f32.mrf.mxu0
      %662 = vmatprep.mubr.bf16.mxu0 0
      %663 = vmatmul.mubr.bf16.gmra.mxu0 %v534
      %v664 = vpop.f32.mrf.mxu0
      %v665 = vadd.f32 0.0, %v664
      %v666 = vpop.f32.mrf.mxu0
      %v667 = vpop.f32.mrf.mxu0
      %v668 = vadd.f32 0.0, %v667
      %v669 = vpop.f32.mrf.mxu0
      %670 = vmatprep.mubr.bf16.mxu0 0
      %671 = vmatmul.mubr.bf16.gmra.mxu0 %v537
      %v672 = vpop.f32.mrf.mxu0
      %v673 = vadd.f32 0.0, %v672
      %v674 = vpop.f32.mrf.mxu0
      %v675 = vpop.f32.mrf.mxu0
      %v676 = vadd.f32 0.0, %v675
      %v677 = vpop.f32.mrf.mxu0
      %678 = vmatprep.mubr.bf16.mxu0 0
      %679 = vmatmul.mubr.bf16.gmra.mxu0 %v540
      %v680 = vpop.f32.mrf.mxu0
      %v681 = vadd.f32 0.0, %v680
      %v682 = vpop.f32.mrf.mxu0
      %v683 = vpop.f32.mrf.mxu0
      %v684 = vadd.f32 0.0, %v683
      %v685 = vpop.f32.mrf.mxu0
      %686 = vmatprep.mubr.bf16.mxu0 0
      %687 = vmatmul.mubr.bf16.gmra.mxu0 %v543
      %v688 = vpop.f32.mrf.mxu0
      %v689 = vadd.f32 0.0, %v688
      %v690 = vpop.f32.mrf.mxu0
      %v691 = vpop.f32.mrf.mxu0
      %v692 = vadd.f32 0.0, %v691
      %v693 = vpop.f32.mrf.mxu0
      %694 = vmatprep.mubr.bf16.mxu0 0
      %695 = vmatmul.mubr.bf16.gmra.mxu0 %v546
      %v696 = vpop.f32.mrf.mxu0
      %v697 = vadd.f32 0.0, %v696
      %v698 = vpop.f32.mrf.mxu0
      %v699 = vpop.f32.mrf.mxu0
      %v700 = vadd.f32 0.0, %v699
      %v701 = vpop.f32.mrf.mxu0
      %702 = vmatprep.mubr.bf16.mxu0 0
      %703 = vmatmul.mubr.bf16.gmra.mxu0 %v549
      %v704 = vpop.f32.mrf.mxu0
      %v705 = vadd.f32 0.0, %v704
      %v706 = vpop.f32.mrf.mxu0
      %v707 = vpop.f32.mrf.mxu0
      %v708 = vadd.f32 0.0, %v707
      %v709 = vpop.f32.mrf.mxu0
      %710 = vmatprep.mubr.bf16.mxu0 0
      %711 = vmatmul.mubr.bf16.gmra.mxu0 %v552
      %v712 = vpop.f32.mrf.mxu0
      %v713 = vadd.f32 0.0, %v712
      %v714 = vpop.f32.mrf.mxu0
      %v715 = vpop.f32.mrf.mxu0
      %v716 = vadd.f32 0.0, %v715
      %v717 = vpop.f32.mrf.mxu0
      %718 = vdwg.mxu0
      %v720 = vsel %vm253, %v439, 0
      %v723 = vsel %vm253, %v440, 0
      %v726 = vsel %vm253, %v441, 0
      %v729 = vsel %vm253, %v442, 0
      %v732 = vsel %vm253, %v443, 0
      %v735 = vsel %vm253, %v444, 0
      %v738 = vsel %vm253, %v445, 0
      %v741 = vsel %vm253, %v446, 0
      %v744 = vsel %vm253, %v447, 0
      %v747 = vsel %vm253, %v448, 0
      %v750 = vsel %vm253, %v449, 0
      %v753 = vsel %vm253, %v450, 0
      %v756 = vsel %vm253, %v451, 0
      %v759 = vsel %vm253, %v452, 0
      %v762 = vsel %vm253, %v453, 0
      %v765 = vsel %vm253, %v454, 0
      %v768 = vsel %vm554, %v455, 0
      %770 = vmatprep.subr.bf16.mxu0 0
      %771 = vmatpush1.bf16.msra.mxu0 0
      %772 = vmatprep.subr.bf16.mxu0 0
      %773 = vmatpush1.bf16.msra.mxu0 0
      %774 = vmatprep.subr.bf16.mxu0 0
      %775 = vmatpush1.bf16.msra.mxu0 0
      %776 = vmatprep.subr.bf16.mxu0 0
      %777 = vmatpush1.bf16.msra.mxu0 0
      %778 = vmatprep.subr.bf16.mxu0 0
      %779 = vmatpush1.bf16.msra.mxu0 0
      %780 = vmatprep.subr.bf16.mxu0 0
      %781 = vmatpush1.bf16.msra.mxu0 0
      %782 = vmatprep.subr.bf16.mxu0 0
      %783 = vmatpush1.bf16.msra.mxu0 0
      %784 = vmatprep.subr.bf16.mxu0 0
      %785 = vmatpush1.bf16.msra.mxu0 %v768
      %786 = vmatprep.subr.bf16.mxu0 0
      %787 = vmatpush2.bf16.msra.mxu0 0
      %788 = vmatprep.subr.bf16.mxu0 0
      %789 = vmatpush2.bf16.msra.mxu0 0
      %790 = vmatprep.subr.bf16.mxu0 0
      %791 = vmatpush2.bf16.msra.mxu0 0
      %792 = vmatprep.subr.bf16.mxu0 0
      %793 = vmatpush2.bf16.msra.mxu0 0
      %794 = vmatprep.subr.bf16.mxu0 0
      %795 = vmatpush2.bf16.msra.mxu0 0
      %796 = vmatprep.subr.bf16.mxu0 0
      %797 = vmatpush2.bf16.msra.mxu0 0
      %798 = vmatprep.subr.bf16.mxu0 0
      %799 = vmatpush2.bf16.msra.mxu0 0
      %800 = vmatprep.subr.bf16.mxu0 0
      %801 = vmatpush2.bf16.msra.mxu0 0
      %802 = vmatprep.mubr.bf16.mxu0 0
      %803 = vmatmul.mubr.bf16.gmra.mxu0 %v720
      %v804 = vpop.f32.mrf.mxu0
      %v805 = vadd.f32 %v593, %v804
      %v806 = vpop.f32.mrf.mxu0
      %v807 = vpop.f32.mrf.mxu0
      %v808 = vadd.f32 %v596, %v807
      %v809 = vpop.f32.mrf.mxu0
      %810 = vmatprep.mubr.bf16.mxu0 0
      %811 = vmatmul.mubr.bf16.gmra.mxu0 %v723
      %v812 = vpop.f32.mrf.mxu0
      %v813 = vadd.f32 %v601, %v812
      %v814 = vpop.f32.mrf.mxu0
      %v815 = vpop.f32.mrf.mxu0
      %v816 = vadd.f32 %v604, %v815
      %v817 = vpop.f32.mrf.mxu0
      %818 = vmatprep.mubr.bf16.mxu0 0
      %819 = vmatmul.mubr.bf16.gmra.mxu0 %v726
      %v820 = vpop.f32.mrf.mxu0
      %v821 = vadd.f32 %v609, %v820
      %v822 = vpop.f32.mrf.mxu0
      %v823 = vpop.f32.mrf.mxu0
      %v824 = vadd.f32 %v612, %v823
      %v825 = vpop.f32.mrf.mxu0
      %826 = vmatprep.mubr.bf16.mxu0 0
      %827 = vmatmul.mubr.bf16.gmra.mxu0 %v729
      %v828 = vpop.f32.mrf.mxu0
      %v829 = vadd.f32 %v617, %v828
      %v830 = vpop.f32.mrf.mxu0
      %v831 = vpop.f32.mrf.mxu0
      %v832 = vadd.f32 %v620, %v831
      %v833 = vpop.f32.mrf.mxu0
      %834 = vmatprep.mubr.bf16.mxu0 0
      %835 = vmatmul.mubr.bf16.gmra.mxu0 %v732
      %v836 = vpop.f32.mrf.mxu0
      %v837 = vadd.f32 %v625, %v836
      %v838 = vpop.f32.mrf.mxu0
      %v839 = vpop.f32.mrf.mxu0
      %v840 = vadd.f32 %v628, %v839
      %v841 = vpop.f32.mrf.mxu0
      %842 = vmatprep.mubr.bf16.mxu0 0
      %843 = vmatmul.mubr.bf16.gmra.mxu0 %v735
      %v844 = vpop.f32.mrf.mxu0
      %v845 = vadd.f32 %v633, %v844
      %v846 = vpop.f32.mrf.mxu0
      %v847 = vpop.f32.mrf.mxu0
      %v848 = vadd.f32 %v636, %v847
      %v849 = vpop.f32.mrf.mxu0
      %850 = vmatprep.mubr.bf16.mxu0 0
      %851 = vmatmul.mubr.bf16.gmra.mxu0 %v738
      %v852 = vpop.f32.mrf.mxu0
      %v853 = vadd.f32 %v641, %v852
      %v854 = vpop.f32.mrf.mxu0
      %v855 = vpop.f32.mrf.mxu0
      %v856 = vadd.f32 %v644, %v855
      %v857 = vpop.f32.mrf.mxu0
      %858 = vmatprep.mubr.bf16.mxu0 0
      %859 = vmatmul.mubr.bf16.gmra.mxu0 %v741
      %v860 = vpop.f32.mrf.mxu0
      %v861 = vadd.f32 %v649, %v860
      %v862 = vpop.f32.mrf.mxu0
      %v863 = vpop.f32.mrf.mxu0
      %v864 = vadd.f32 %v652, %v863
      %v865 = vpop.f32.mrf.mxu0
      %866 = vmatprep.mubr.bf16.mxu0 0
      %867 = vmatmul.mubr.bf16.gmra.mxu0 %v744
      %v868 = vpop.f32.mrf.mxu0
      %v869 = vadd.f32 %v657, %v868
      %v870 = vpop.f32.mrf.mxu0
      %v871 = vpop.f32.mrf.mxu0
      %v872 = vadd.f32 %v660, %v871
      %v873 = vpop.f32.mrf.mxu0
      %874 = vmatprep.mubr.bf16.mxu0 0
      %875 = vmatmul.mubr.bf16.gmra.mxu0 %v747
      %v876 = vpop.f32.mrf.mxu0
      %v877 = vadd.f32 %v665, %v876
      %v878 = vpop.f32.mrf.mxu0
      %v879 = vpop.f32.mrf.mxu0
      %v880 = vadd.f32 %v668, %v879
      %v881 = vpop.f32.mrf.mxu0
      %882 = vmatprep.mubr.bf16.mxu0 0
      %883 = vmatmul.mubr.bf16.gmra.mxu0 %v750
      %v884 = vpop.f32.mrf.mxu0
      %v885 = vadd.f32 %v673, %v884
      %v886 = vpop.f32.mrf.mxu0
      %v887 = vpop.f32.mrf.mxu0
      %v888 = vadd.f32 %v676, %v887
      %v889 = vpop.f32.mrf.mxu0
      %890 = vmatprep.mubr.bf16.mxu0 0
      %891 = vmatmul.mubr.bf16.gmra.mxu0 %v753
      %v892 = vpop.f32.mrf.mxu0
      %v893 = vadd.f32 %v681, %v892
      %v894 = vpop.f32.mrf.mxu0
      %v895 = vpop.f32.mrf.mxu0
      %v896 = vadd.f32 %v684, %v895
      %v897 = vpop.f32.mrf.mxu0
      %898 = vmatprep.mubr.bf16.mxu0 0
      %899 = vmatmul.mubr.bf16.gmra.mxu0 %v756
      %v900 = vpop.f32.mrf.mxu0
      %v901 = vadd.f32 %v689, %v900
      %v902 = vpop.f32.mrf.mxu0
      %v903 = vpop.f32.mrf.mxu0
      %v904 = vadd.f32 %v692, %v903
      %v905 = vpop.f32.mrf.mxu0
      %906 = vmatprep.mubr.bf16.mxu0 0
      %907 = vmatmul.mubr.bf16.gmra.mxu0 %v759
      %v908 = vpop.f32.mrf.mxu0
      %v909 = vadd.f32 %v697, %v908
      %v910 = vpop.f32.mrf.mxu0
      %v911 = vpop.f32.mrf.mxu0
      %v912 = vadd.f32 %v700, %v911
      %v913 = vpop.f32.mrf.mxu0
      %914 = vmatprep.mubr.bf16.mxu0 0
      %915 = vmatmul.mubr.bf16.gmra.mxu0 %v762
      %v916 = vpop.f32.mrf.mxu0
      %v917 = vadd.f32 %v705, %v916
      %v918 = vpop.f32.mrf.mxu0
      %v919 = vpop.f32.mrf.mxu0
      %v920 = vadd.f32 %v708, %v919
      %v921 = vpop.f32.mrf.mxu0
      %922 = vmatprep.mubr.bf16.mxu0 0
      %923 = vmatmul.mubr.bf16.gmra.mxu0 %v765
      %v924 = vpop.f32.mrf.mxu0
      %v925 = vadd.f32 %v713, %v924
      %v926 = vpop.f32.mrf.mxu0
      %v927 = vpop.f32.mrf.mxu0
      %v928 = vadd.f32 %v716, %v927
      %v929 = vpop.f32.mrf.mxu0
      %930 = vdwg.mxu0
      %v931 = vld [vmem:[#allocation2 + $0x2] sm:$0xff]
      %v932 = vld [vmem:[#allocation2 + $0xa] sm:$0xff]
      %v933 = vld [vmem:[#allocation2 + $0x1a] sm:$0xff]
      %v934 = vld [vmem:[#allocation2 + $0x22] sm:$0xff]
      %v935 = vld [vmem:[#allocation2 + $0x32] sm:$0xff]
      %v936 = vld [vmem:[#allocation2 + $0x3a] sm:$0xff]
      %v937 = vld [vmem:[#allocation2 + $0x4a] sm:$0xff]
      %v938 = vld [vmem:[#allocation2 + $0x52] sm:$0xff]
      %v939 = vld [vmem:[#allocation2 + $0x62] sm:$0xff]
      %v940 = vld [vmem:[#allocation2 + $0x6a] sm:$0xff]
      %v941 = vld [vmem:[#allocation2 + $0x7a] sm:$0xff]
      %v942 = vld [vmem:[#allocation2 + $0x82] sm:$0xff]
      %v943 = vld [vmem:[#allocation2 + $0x92] sm:$0xff]
      %v944 = vld [vmem:[#allocation2 + $0x9a] sm:$0xff]
      %v945 = vld [vmem:[#allocation2 + $0xaa] sm:$0xff]
      %v946 = vld [vmem:[#allocation2 + $0xb2] sm:$0xff]
      %v947 = vld [vmem:[#allocation2 + $0xc2] sm:$0xff]
      %v948 = vld [vmem:[#allocation2 + $0xca] sm:$0xff]
      %v949 = vld [vmem:[#allocation2 + $0xda] sm:$0xff]
      %v950 = vld [vmem:[#allocation2 + $0xe2] sm:$0xff]
      %v951 = vld [vmem:[#allocation2 + $0xf2] sm:$0xff]
      %v952 = vld [vmem:[#allocation2 + $0xfa] sm:$0xff]
      %v953 = vld [vmem:[#allocation2 + $0x10a] sm:$0xff]
      %v954 = vld [vmem:[#allocation2 + $0x112] sm:$0xff]
      %v955 = vld [vmem:[#allocation2 + $0x122] sm:$0xff]
      %v956 = vld [vmem:[#allocation2 + $0x12a] sm:$0xff]
      %v957 = vld [vmem:[#allocation2 + $0x13a] sm:$0xff]
      %v958 = vld [vmem:[#allocation2 + $0x142] sm:$0xff]
      %v959 = vld [vmem:[#allocation2 + $0x152] sm:$0xff]
      %v960 = vld [vmem:[#allocation2 + $0x15a] sm:$0xff]
      %v961 = vld [vmem:[#allocation2 + $0x16a] sm:$0xff]
      %v962 = vld [vmem:[#allocation2 + $0x172] sm:$0xff]
      %v963 = vpack.c.bf16 %v932, %v931
      %v964 = vpack.c.bf16 %v934, %v933
      %v965 = vpack.c.bf16 %v936, %v935
      %v966 = vpack.c.bf16 %v938, %v937
      %v967 = vpack.c.bf16 %v940, %v939
      %v968 = vpack.c.bf16 %v942, %v941
      %v969 = vpack.c.bf16 %v944, %v943
      %v970 = vpack.c.bf16 %v946, %v945
      %v971 = vpack.c.bf16 %v948, %v947
      %v972 = vpack.c.bf16 %v950, %v949
      %v973 = vpack.c.bf16 %v952, %v951
      %v974 = vpack.c.bf16 %v954, %v953
      %v975 = vpack.c.bf16 %v956, %v955
      %v976 = vpack.c.bf16 %v958, %v957
      %v977 = vpack.c.bf16 %v960, %v959
      %v978 = vpack.c.bf16 %v962, %v961
      %s979 = scalar_lea.vmem %s1, 4
      %v980 = vld [vmem:[%s979] sm:$0x3]
      %v982 = vsel %vm253, %v963, 0
      %v985 = vsel %vm253, %v964, 0
      %v988 = vsel %vm253, %v965, 0
      %v991 = vsel %vm253, %v966, 0
      %v994 = vsel %vm253, %v967, 0
      %v997 = vsel %vm253, %v968, 0
      %v1000 = vsel %vm253, %v969, 0
      %v1003 = vsel %vm253, %v970, 0
      %v1006 = vsel %vm253, %v971, 0
      %v1009 = vsel %vm253, %v972, 0
      %v1012 = vsel %vm253, %v973, 0
      %v1015 = vsel %vm253, %v974, 0
      %v1018 = vsel %vm253, %v975, 0
      %v1021 = vsel %vm253, %v976, 0
      %v1024 = vsel %vm253, %v977, 0
      %v1027 = vsel %vm253, %v978, 0
      %v1030 = vsel %vm554, %v980, 0
      %1032 = vmatprep.subr.bf16.mxu0 0
      %1033 = vmatpush1.bf16.msra.mxu0 0
      %1034 = vmatprep.subr.bf16.mxu0 0
      %1035 = vmatpush1.bf16.msra.mxu0 0
      %1036 = vmatprep.subr.bf16.mxu0 0
      %1037 = vmatpush1.bf16.msra.mxu0 0
      %1038 = vmatprep.subr.bf16.mxu0 0
      %1039 = vmatpush1.bf16.msra.mxu0 0
      %1040 = vmatprep.subr.bf16.mxu0 0
      %1041 = vmatpush1.bf16.msra.mxu0 0
      %1042 = vmatprep.subr.bf16.mxu0 0
      %1043 = vmatpush1.bf16.msra.mxu0 0
      %1044 = vmatprep.subr.bf16.mxu0 0
      %1045 = vmatpush1.bf16.msra.mxu0 0
      %1046 = vmatprep.subr.bf16.mxu0 0
      %1047 = vmatpush1.bf16.msra.mxu0 %v1030
      %1048 = vmatprep.subr.bf16.mxu0 0
      %1049 = vmatpush2.bf16.msra.mxu0 0
      %1050 = vmatprep.subr.bf16.mxu0 0
      %1051 = vmatpush2.bf16.msra.mxu0 0
      %1052 = vmatprep.subr.bf16.mxu0 0
      %1053 = vmatpush2.bf16.msra.mxu0 0
      %1054 = vmatprep.subr.bf16.mxu0 0
      %1055 = vmatpush2.bf16.msra.mxu0 0
      %1056 = vmatprep.subr.bf16.mxu0 0
      %1057 = vmatpush2.bf16.msra.mxu0 0
      %1058 = vmatprep.subr.bf16.mxu0 0
      %1059 = vmatpush2.bf16.msra.mxu0 0
      %1060 = vmatprep.subr.bf16.mxu0 0
      %1061 = vmatpush2.bf16.msra.mxu0 0
      %1062 = vmatprep.subr.bf16.mxu0 0
      %1063 = vmatpush2.bf16.msra.mxu0 0
      %1064 = vmatprep.mubr.bf16.mxu0 0
      %1065 = vmatmul.mubr.bf16.gmra.mxu0 %v982
      %v1066 = vpop.f32.mrf.mxu0
      %v1067 = vadd.f32 0.0, %v1066
      %v1068 = vpop.f32.mrf.mxu0
      %v1069 = vpop.f32.mrf.mxu0
      %v1070 = vadd.f32 0.0, %v1069
      %v1071 = vpop.f32.mrf.mxu0
      %1072 = vmatprep.mubr.bf16.mxu0 0
      %1073 = vmatmul.mubr.bf16.gmra.mxu0 %v985
      %v1074 = vpop.f32.mrf.mxu0
      %v1075 = vadd.f32 0.0, %v1074
      %v1076 = vpop.f32.mrf.mxu0
      %v1077 = vpop.f32.mrf.mxu0
      %v1078 = vadd.f32 0.0, %v1077
      %v1079 = vpop.f32.mrf.mxu0
      %1080 = vmatprep.mubr.bf16.mxu0 0
      %1081 = vmatmul.mubr.bf16.gmra.mxu0 %v988
      %v1082 = vpop.f32.mrf.mxu0
      %v1083 = vadd.f32 0.0, %v1082
      %v1084 = vpop.f32.mrf.mxu0
      %v1085 = vpop.f32.mrf.mxu0
      %v1086 = vadd.f32 0.0, %v1085
      %v1087 = vpop.f32.mrf.mxu0
      %1088 = vmatprep.mubr.bf16.mxu0 0
      %1089 = vmatmul.mubr.bf16.gmra.mxu0 %v991
      %v1090 = vpop.f32.mrf.mxu0
      %v1091 = vadd.f32 0.0, %v1090
      %v1092 = vpop.f32.mrf.mxu0
      %v1093 = vpop.f32.mrf.mxu0
      %v1094 = vadd.f32 0.0, %v1093
      %v1095 = vpop.f32.mrf.mxu0
      %1096 = vmatprep.mubr.bf16.mxu0 0
      %1097 = vmatmul.mubr.bf16.gmra.mxu0 %v994
      %v1098 = vpop.f32.mrf.mxu0
      %v1099 = vadd.f32 0.0, %v1098
      %v1100 = vpop.f32.mrf.mxu0
      %v1101 = vpop.f32.mrf.mxu0
      %v1102 = vadd.f32 0.0, %v1101
      %v1103 = vpop.f32.mrf.mxu0
      %1104 = vmatprep.mubr.bf16.mxu0 0
      %1105 = vmatmul.mubr.bf16.gmra.mxu0 %v997
      %v1106 = vpop.f32.mrf.mxu0
      %v1107 = vadd.f32 0.0, %v1106
      %v1108 = vpop.f32.mrf.mxu0
      %v1109 = vpop.f32.mrf.mxu0
      %v1110 = vadd.f32 0.0, %v1109
      %v1111 = vpop.f32.mrf.mxu0
      %1112 = vmatprep.mubr.bf16.mxu0 0
      %1113 = vmatmul.mubr.bf16.gmra.mxu0 %v1000
      %v1114 = vpop.f32.mrf.mxu0
      %v1115 = vadd.f32 0.0, %v1114
      %v1116 = vpop.f32.mrf.mxu0
      %v1117 = vpop.f32.mrf.mxu0
      %v1118 = vadd.f32 0.0, %v1117
      %v1119 = vpop.f32.mrf.mxu0
      %1120 = vmatprep.mubr.bf16.mxu0 0
      %1121 = vmatmul.mubr.bf16.gmra.mxu0 %v1003
      %v1122 = vpop.f32.mrf.mxu0
      %v1123 = vadd.f32 0.0, %v1122
      %v1124 = vpop.f32.mrf.mxu0
      %v1125 = vpop.f32.mrf.mxu0
      %v1126 = vadd.f32 0.0, %v1125
      %v1127 = vpop.f32.mrf.mxu0
      %1128 = vmatprep.mubr.bf16.mxu0 0
      %1129 = vmatmul.mubr.bf16.gmra.mxu0 %v1006
      %v1130 = vpop.f32.mrf.mxu0
      %v1131 = vadd.f32 0.0, %v1130
      %v1132 = vpop.f32.mrf.mxu0
      %v1133 = vpop.f32.mrf.mxu0
      %v1134 = vadd.f32 0.0, %v1133
      %v1135 = vpop.f32.mrf.mxu0
      %1136 = vmatprep.mubr.bf16.mxu0 0
      %1137 = vmatmul.mubr.bf16.gmra.mxu0 %v1009
      %v1138 = vpop.f32.mrf.mxu0
      %v1139 = vadd.f32 0.0, %v1138
      %v1140 = vpop.f32.mrf.mxu0
      %v1141 = vpop.f32.mrf.mxu0
      %v1142 = vadd.f32 0.0, %v1141
      %v1143 = vpop.f32.mrf.mxu0
      %1144 = vmatprep.mubr.bf16.mxu0 0
      %1145 = vmatmul.mubr.bf16.gmra.mxu0 %v1012
      %v1146 = vpop.f32.mrf.mxu0
      %v1147 = vadd.f32 0.0, %v1146
      %v1148 = vpop.f32.mrf.mxu0
      %v1149 = vpop.f32.mrf.mxu0
      %v1150 = vadd.f32 0.0, %v1149
      %v1151 = vpop.f32.mrf.mxu0
      %1152 = vmatprep.mubr.bf16.mxu0 0
      %1153 = vmatmul.mubr.bf16.gmra.mxu0 %v1015
      %v1154 = vpop.f32.mrf.mxu0
      %v1155 = vadd.f32 0.0, %v1154
      %v1156 = vpop.f32.mrf.mxu0
      %v1157 = vpop.f32.mrf.mxu0
      %v1158 = vadd.f32 0.0, %v1157
      %v1159 = vpop.f32.mrf.mxu0
      %1160 = vmatprep.mubr.bf16.mxu0 0
      %1161 = vmatmul.mubr.bf16.gmra.mxu0 %v1018
      %v1162 = vpop.f32.mrf.mxu0
      %v1163 = vadd.f32 0.0, %v1162
      %v1164 = vpop.f32.mrf.mxu0
      %v1165 = vpop.f32.mrf.mxu0
      %v1166 = vadd.f32 0.0, %v1165
      %v1167 = vpop.f32.mrf.mxu0
      %1168 = vmatprep.mubr.bf16.mxu0 0
      %1169 = vmatmul.mubr.bf16.gmra.mxu0 %v1021
      %v1170 = vpop.f32.mrf.mxu0
      %v1171 = vadd.f32 0.0, %v1170
      %v1172 = vpop.f32.mrf.mxu0
      %v1173 = vpop.f32.mrf.mxu0
      %v1174 = vadd.f32 0.0, %v1173
      %v1175 = vpop.f32.mrf.mxu0
      %1176 = vmatprep.mubr.bf16.mxu0 0
      %1177 = vmatmul.mubr.bf16.gmra.mxu0 %v1024
      %v1178 = vpop.f32.mrf.mxu0
      %v1179 = vadd.f32 0.0, %v1178
      %v1180 = vpop.f32.mrf.mxu0
      %v1181 = vpop.f32.mrf.mxu0
      %v1182 = vadd.f32 0.0, %v1181
      %v1183 = vpop.f32.mrf.mxu0
      %1184 = vmatprep.mubr.bf16.mxu0 0
      %1185 = vmatmul.mubr.bf16.gmra.mxu0 %v1027
      %v1186 = vpop.f32.mrf.mxu0
      %v1187 = vadd.f32 0.0, %v1186
      %v1188 = vpop.f32.mrf.mxu0
      %v1189 = vpop.f32.mrf.mxu0
      %v1190 = vadd.f32 0.0, %v1189
      %v1191 = vpop.f32.mrf.mxu0
      %1192 = vdwg.mxu0
      %v1193 = vadd.f32 %v805, %v1067
      %v1194 = vadd.f32 %v808, %v1070
      %v1195 = vadd.f32 %v813, %v1075
      %v1196 = vadd.f32 %v816, %v1078
      %v1197 = vadd.f32 %v821, %v1083
      %v1198 = vadd.f32 %v824, %v1086
      %v1199 = vadd.f32 %v829, %v1091
      %v1200 = vadd.f32 %v832, %v1094
      %v1201 = vadd.f32 %v837, %v1099
      %v1202 = vadd.f32 %v840, %v1102
      %v1203 = vadd.f32 %v845, %v1107
      %v1204 = vadd.f32 %v848, %v1110
      %v1205 = vadd.f32 %v853, %v1115
      %v1206 = vadd.f32 %v856, %v1118
      %v1207 = vadd.f32 %v861, %v1123
      %v1208 = vadd.f32 %v864, %v1126
      %v1209 = vadd.f32 %v869, %v1131
      %v1210 = vadd.f32 %v872, %v1134
      %v1211 = vadd.f32 %v877, %v1139
      %v1212 = vadd.f32 %v880, %v1142
      %v1213 = vadd.f32 %v885, %v1147
      %v1214 = vadd.f32 %v888, %v1150
      %v1215 = vadd.f32 %v893, %v1155
      %v1216 = vadd.f32 %v896, %v1158
      %v1217 = vadd.f32 %v901, %v1163
      %v1218 = vadd.f32 %v904, %v1166
      %v1219 = vadd.f32 %v909, %v1171
      %v1220 = vadd.f32 %v912, %v1174
      %v1221 = vadd.f32 %v917, %v1179
      %v1222 = vadd.f32 %v920, %v1182
      %v1223 = vadd.f32 %v925, %v1187
      %v1224 = vadd.f32 %v928, %v1190
      %v1225 = vld [vmem:[%s358] sm:$0xff]
      %v1226 = vld [vmem:[%s358 + $0x8] sm:$0xff]
      %v1227 = vld [vmem:[%s358 + $0x18] sm:$0xff]
      %v1228 = vld [vmem:[%s358 + $0x20] sm:$0xff]
      %v1229 = vld [vmem:[%s358 + $0x30] sm:$0xff]
      %v1230 = vld [vmem:[%s358 + $0x38] sm:$0xff]
      %v1231 = vld [vmem:[%s358 + $0x48] sm:$0xff]
      %v1232 = vld [vmem:[%s358 + $0x50] sm:$0xff]
      %v1233 = vld [vmem:[%s358 + $0x60] sm:$0xff]
      %v1234 = vld [vmem:[%s358 + $0x68] sm:$0xff]
      %v1235 = vld [vmem:[%s358 + $0x78] sm:$0xff]
      %v1236 = vld [vmem:[%s358 + $0x80] sm:$0xff]
      %v1237 = vld [vmem:[%s358 + $0x90] sm:$0xff]
      %v1238 = vld [vmem:[%s358 + $0x98] sm:$0xff]
      %v1239 = vld [vmem:[%s358 + $0xa8] sm:$0xff]
      %v1240 = vld [vmem:[%s358 + $0xb0] sm:$0xff]
      %v1241 = vld [vmem:[%s358 + $0xc0] sm:$0xff]
      %v1242 = vld [vmem:[%s358 + $0xc8] sm:$0xff]
      %v1243 = vld [vmem:[%s358 + $0xd8] sm:$0xff]
      %v1244 = vld [vmem:[%s358 + $0xe0] sm:$0xff]
      %v1245 = vld [vmem:[%s358 + $0xf0] sm:$0xff]
      %v1246 = vld [vmem:[%s358 + $0xf8] sm:$0xff]
      %v1247 = vld [vmem:[%s358 + $0x108] sm:$0xff]
      %v1248 = vld [vmem:[%s358 + $0x110] sm:$0xff]
      %v1249 = vld [vmem:[%s358 + $0x120] sm:$0xff]
      %v1250 = vld [vmem:[%s358 + $0x128] sm:$0xff]
      %v1251 = vld [vmem:[%s358 + $0x138] sm:$0xff]
      %v1252 = vld [vmem:[%s358 + $0x140] sm:$0xff]
      %v1253 = vld [vmem:[%s358 + $0x150] sm:$0xff]
      %v1254 = vld [vmem:[%s358 + $0x158] sm:$0xff]
      %v1255 = vld [vmem:[%s358 + $0x168] sm:$0xff]
      %v1256 = vld [vmem:[%s358 + $0x170] sm:$0xff]
      %v1257 = vpack.c.bf16 %v1226, %v1225
      %v1258 = vpack.c.bf16 %v1228, %v1227
      %v1259 = vpack.c.bf16 %v1230, %v1229
      %v1260 = vpack.c.bf16 %v1232, %v1231
      %v1261 = vpack.c.bf16 %v1234, %v1233
      %v1262 = vpack.c.bf16 %v1236, %v1235
      %v1263 = vpack.c.bf16 %v1238, %v1237
      %v1264 = vpack.c.bf16 %v1240, %v1239
      %v1265 = vpack.c.bf16 %v1242, %v1241
      %v1266 = vpack.c.bf16 %v1244, %v1243
      %v1267 = vpack.c.bf16 %v1246, %v1245
      %v1268 = vpack.c.bf16 %v1248, %v1247
      %v1269 = vpack.c.bf16 %v1250, %v1249
      %v1270 = vpack.c.bf16 %v1252, %v1251
      %v1271 = vpack.c.bf16 %v1254, %v1253
      %v1272 = vpack.c.bf16 %v1256, %v1255
      %s1273 = scalar_lea.vmem %s1, 6
      %v1274 = vld [vmem:[%s1273] sm:$0x3]
      %v1276 = vsel %vm253, %v1257, 0
      %v1279 = vsel %vm253, %v1258, 0
      %v1282 = vsel %vm253, %v1259, 0
      %v1285 = vsel %vm253, %v1260, 0
      %v1288 = vsel %vm253, %v1261, 0
      %v1291 = vsel %vm253, %v1262, 0
      %v1294 = vsel %vm253, %v1263, 0
      %v1297 = vsel %vm253, %v1264, 0
      %v1300 = vsel %vm253, %v1265, 0
      %v1303 = vsel %vm253, %v1266, 0
      %v1306 = vsel %vm253, %v1267, 0
      %v1309 = vsel %vm253, %v1268, 0
      %v1312 = vsel %vm253, %v1269, 0
      %v1315 = vsel %vm253, %v1270, 0
      %v1318 = vsel %vm253, %v1271, 0
      %v1321 = vsel %vm253, %v1272, 0
      %v1324 = vsel %vm554, %v1274, 0
      %1326 = vmatprep.subr.bf16.mxu0 0
      %1327 = vmatpush1.bf16.msra.mxu0 0
      %1328 = vmatprep.subr.bf16.mxu0 0
      %1329 = vmatpush1.bf16.msra.mxu0 0
      %1330 = vmatprep.subr.bf16.mxu0 0
      %1331 = vmatpush1.bf16.msra.mxu0 0
      %1332 = vmatprep.subr.bf16.mxu0 0
      %1333 = vmatpush1.bf16.msra.mxu0 0
      %1334 = vmatprep.subr.bf16.mxu0 0
      %1335 = vmatpush1.bf16.msra.mxu0 0
      %1336 = vmatprep.subr.bf16.mxu0 0
      %1337 = vmatpush1.bf16.msra.mxu0 0
      %1338 = vmatprep.subr.bf16.mxu0 0
      %1339 = vmatpush1.bf16.msra.mxu0 0
      %1340 = vmatprep.subr.bf16.mxu0 0
      %1341 = vmatpush1.bf16.msra.mxu0 %v1324
      %1342 = vmatprep.subr.bf16.mxu0 0
      %1343 = vmatpush2.bf16.msra.mxu0 0
      %1344 = vmatprep.subr.bf16.mxu0 0
      %1345 = vmatpush2.bf16.msra.mxu0 0
      %1346 = vmatprep.subr.bf16.mxu0 0
      %1347 = vmatpush2.bf16.msra.mxu0 0
      %1348 = vmatprep.subr.bf16.mxu0 0
      %1349 = vmatpush2.bf16.msra.mxu0 0
      %1350 = vmatprep.subr.bf16.mxu0 0
      %1351 = vmatpush2.bf16.msra.mxu0 0
      %1352 = vmatprep.subr.bf16.mxu0 0
      %1353 = vmatpush2.bf16.msra.mxu0 0
      %1354 = vmatprep.subr.bf16.mxu0 0
      %1355 = vmatpush2.bf16.msra.mxu0 0
      %1356 = vmatprep.subr.bf16.mxu0 0
      %1357 = vmatpush2.bf16.msra.mxu0 0
      %1358 = vmatprep.mubr.bf16.mxu0 0
      %1359 = vmatmul.mubr.bf16.gmra.mxu0 %v1276
      %v1360 = vpop.f32.mrf.mxu0
      %v1361 = vadd.f32 0.0, %v1360
      %v1362 = vpop.f32.mrf.mxu0
      %v1363 = vpop.f32.mrf.mxu0
      %v1364 = vadd.f32 0.0, %v1363
      %v1365 = vpop.f32.mrf.mxu0
      %1366 = vmatprep.mubr.bf16.mxu0 0
      %1367 = vmatmul.mubr.bf16.gmra.mxu0 %v1279
      %v1368 = vpop.f32.mrf.mxu0
      %v1369 = vadd.f32 0.0, %v1368
      %v1370 = vpop.f32.mrf.mxu0
      %v1371 = vpop.f32.mrf.mxu0
      %v1372 = vadd.f32 0.0, %v1371
      %v1373 = vpop.f32.mrf.mxu0
      %1374 = vmatprep.mubr.bf16.mxu0 0
      %1375 = vmatmul.mubr.bf16.gmra.mxu0 %v1282
      %v1376 = vpop.f32.mrf.mxu0
      %v1377 = vadd.f32 0.0, %v1376
      %v1378 = vpop.f32.mrf.mxu0
      %v1379 = vpop.f32.mrf.mxu0
      %v1380 = vadd.f32 0.0, %v1379
      %v1381 = vpop.f32.mrf.mxu0
      %1382 = vmatprep.mubr.bf16.mxu0 0
      %1383 = vmatmul.mubr.bf16.gmra.mxu0 %v1285
      %v1384 = vpop.f32.mrf.mxu0
      %v1385 = vadd.f32 0.0, %v1384
      %v1386 = vpop.f32.mrf.mxu0
      %v1387 = vpop.f32.mrf.mxu0
      %v1388 = vadd.f32 0.0, %v1387
      %v1389 = vpop.f32.mrf.mxu0
      %1390 = vmatprep.mubr.bf16.mxu0 0
      %1391 = vmatmul.mubr.bf16.gmra.mxu0 %v1288
      %v1392 = vpop.f32.mrf.mxu0
      %v1393 = vadd.f32 0.0, %v1392
      %v1394 = vpop.f32.mrf.mxu0
      %v1395 = vpop.f32.mrf.mxu0
      %v1396 = vadd.f32 0.0, %v1395
      %v1397 = vpop.f32.mrf.mxu0
      %1398 = vmatprep.mubr.bf16.mxu0 0
      %1399 = vmatmul.mubr.bf16.gmra.mxu0 %v1291
      %v1400 = vpop.f32.mrf.mxu0
      %v1401 = vadd.f32 0.0, %v1400
      %v1402 = vpop.f32.mrf.mxu0
      %v1403 = vpop.f32.mrf.mxu0
      %v1404 = vadd.f32 0.0, %v1403
      %v1405 = vpop.f32.mrf.mxu0
      %1406 = vmatprep.mubr.bf16.mxu0 0
      %1407 = vmatmul.mubr.bf16.gmra.mxu0 %v1294
      %v1408 = vpop.f32.mrf.mxu0
      %v1409 = vadd.f32 0.0, %v1408
      %v1410 = vpop.f32.mrf.mxu0
      %v1411 = vpop.f32.mrf.mxu0
      %v1412 = vadd.f32 0.0, %v1411
      %v1413 = vpop.f32.mrf.mxu0
      %1414 = vmatprep.mubr.bf16.mxu0 0
      %1415 = vmatmul.mubr.bf16.gmra.mxu0 %v1297
      %v1416 = vpop.f32.mrf.mxu0
      %v1417 = vadd.f32 0.0, %v1416
      %v1418 = vpop.f32.mrf.mxu0
      %v1419 = vpop.f32.mrf.mxu0
      %v1420 = vadd.f32 0.0, %v1419
      %v1421 = vpop.f32.mrf.mxu0
      %1422 = vmatprep.mubr.bf16.mxu0 0
      %1423 = vmatmul.mubr.bf16.gmra.mxu0 %v1300
      %v1424 = vpop.f32.mrf.mxu0
      %v1425 = vadd.f32 0.0, %v1424
      %v1426 = vpop.f32.mrf.mxu0
      %v1427 = vpop.f32.mrf.mxu0
      %v1428 = vadd.f32 0.0, %v1427
      %v1429 = vpop.f32.mrf.mxu0
      %1430 = vmatprep.mubr.bf16.mxu0 0
      %1431 = vmatmul.mubr.bf16.gmra.mxu0 %v1303
      %v1432 = vpop.f32.mrf.mxu0
      %v1433 = vadd.f32 0.0, %v1432
      %v1434 = vpop.f32.mrf.mxu0
      %v1435 = vpop.f32.mrf.mxu0
      %v1436 = vadd.f32 0.0, %v1435
      %v1437 = vpop.f32.mrf.mxu0
      %1438 = vmatprep.mubr.bf16.mxu0 0
      %1439 = vmatmul.mubr.bf16.gmra.mxu0 %v1306
      %v1440 = vpop.f32.mrf.mxu0
      %v1441 = vadd.f32 0.0, %v1440
      %v1442 = vpop.f32.mrf.mxu0
      %v1443 = vpop.f32.mrf.mxu0
      %v1444 = vadd.f32 0.0, %v1443
      %v1445 = vpop.f32.mrf.mxu0
      %1446 = vmatprep.mubr.bf16.mxu0 0
      %1447 = vmatmul.mubr.bf16.gmra.mxu0 %v1309
      %v1448 = vpop.f32.mrf.mxu0
      %v1449 = vadd.f32 0.0, %v1448
      %v1450 = vpop.f32.mrf.mxu0
      %v1451 = vpop.f32.mrf.mxu0
      %v1452 = vadd.f32 0.0, %v1451
      %v1453 = vpop.f32.mrf.mxu0
      %1454 = vmatprep.mubr.bf16.mxu0 0
      %1455 = vmatmul.mubr.bf16.gmra.mxu0 %v1312
      %v1456 = vpop.f32.mrf.mxu0
      %v1457 = vadd.f32 0.0, %v1456
      %v1458 = vpop.f32.mrf.mxu0
      %v1459 = vpop.f32.mrf.mxu0
      %v1460 = vadd.f32 0.0, %v1459
      %v1461 = vpop.f32.mrf.mxu0
      %1462 = vmatprep.mubr.bf16.mxu0 0
      %1463 = vmatmul.mubr.bf16.gmra.mxu0 %v1315
      %v1464 = vpop.f32.mrf.mxu0
      %v1465 = vadd.f32 0.0, %v1464
      %v1466 = vpop.f32.mrf.mxu0
      %v1467 = vpop.f32.mrf.mxu0
      %v1468 = vadd.f32 0.0, %v1467
      %v1469 = vpop.f32.mrf.mxu0
      %1470 = vmatprep.mubr.bf16.mxu0 0
      %1471 = vmatmul.mubr.bf16.gmra.mxu0 %v1318
      %v1472 = vpop.f32.mrf.mxu0
      %v1473 = vadd.f32 0.0, %v1472
      %v1474 = vpop.f32.mrf.mxu0
      %v1475 = vpop.f32.mrf.mxu0
      %v1476 = vadd.f32 0.0, %v1475
      %v1477 = vpop.f32.mrf.mxu0
      %1478 = vmatprep.mubr.bf16.mxu0 0
      %1479 = vmatmul.mubr.bf16.gmra.mxu0 %v1321
      %v1480 = vpop.f32.mrf.mxu0
      %v1481 = vadd.f32 0.0, %v1480
      %v1482 = vpop.f32.mrf.mxu0
      %v1483 = vpop.f32.mrf.mxu0
      %v1484 = vadd.f32 0.0, %v1483
      %v1485 = vpop.f32.mrf.mxu0
      %1486 = vdwg.mxu0
      %v1487 = vadd.f32 %v1193, %v1361
      %v1488 = vadd.f32 %v1194, %v1364
      %v1489 = vadd.f32 %v1195, %v1369
      %v1490 = vadd.f32 %v1196, %v1372
      %v1491 = vadd.f32 %v1197, %v1377
      %v1492 = vadd.f32 %v1198, %v1380
      %v1493 = vadd.f32 %v1199, %v1385
      %v1494 = vadd.f32 %v1200, %v1388
      %v1495 = vadd.f32 %v1201, %v1393
      %v1496 = vadd.f32 %v1202, %v1396
      %v1497 = vadd.f32 %v1203, %v1401
      %v1498 = vadd.f32 %v1204, %v1404
      %v1499 = vadd.f32 %v1205, %v1409
      %v1500 = vadd.f32 %v1206, %v1412
      %v1501 = vadd.f32 %v1207, %v1417
      %v1502 = vadd.f32 %v1208, %v1420
      %v1503 = vadd.f32 %v1209, %v1425
      %v1504 = vadd.f32 %v1210, %v1428
      %v1505 = vadd.f32 %v1211, %v1433
      %v1506 = vadd.f32 %v1212, %v1436
      %v1507 = vadd.f32 %v1213, %v1441
      %v1508 = vadd.f32 %v1214, %v1444
      %v1509 = vadd.f32 %v1215, %v1449
      %v1510 = vadd.f32 %v1216, %v1452
      %v1511 = vadd.f32 %v1217, %v1457
      %v1512 = vadd.f32 %v1218, %v1460
      %v1513 = vadd.f32 %v1219, %v1465
      %v1514 = vadd.f32 %v1220, %v1468
      %v1515 = vadd.f32 %v1221, %v1473
      %v1516 = vadd.f32 %v1222, %v1476
      %v1517 = vadd.f32 %v1223, %v1481
      %v1518 = vadd.f32 %v1224, %v1484
      %v1519 = vld [vmem:[%s358 + $0x1] sm:$0xff]
      %v1520 = vld [vmem:[%s358 + $0x9] sm:$0xff]
      %v1521 = vld [vmem:[%s358 + $0x19] sm:$0xff]
      %v1522 = vld [vmem:[%s358 + $0x21] sm:$0xff]
      %v1523 = vld [vmem:[%s358 + $0x31] sm:$0xff]
      %v1524 = vld [vmem:[%s358 + $0x39] sm:$0xff]
      %v1525 = vld [vmem:[%s358 + $0x49] sm:$0xff]
      %v1526 = vld [vmem:[%s358 + $0x51] sm:$0xff]
      %v1527 = vld [vmem:[%s358 + $0x61] sm:$0xff]
      %v1528 = vld [vmem:[%s358 + $0x69] sm:$0xff]
      %v1529 = vld [vmem:[%s358 + $0x79] sm:$0xff]
      %v1530 = vld [vmem:[%s358 + $0x81] sm:$0xff]
      %v1531 = vld [vmem:[%s358 + $0x91] sm:$0xff]
      %v1532 = vld [vmem:[%s358 + $0x99] sm:$0xff]
      %v1533 = vld [vmem:[%s358 + $0xa9] sm:$0xff]
      %v1534 = vld [vmem:[%s358 + $0xb1] sm:$0xff]
      %v1535 = vld [vmem:[%s358 + $0xc1] sm:$0xff]
      %v1536 = vld [vmem:[%s358 + $0xc9] sm:$0xff]
      %v1537 = vld [vmem:[%s358 + $0xd9] sm:$0xff]
      %v1538 = vld [vmem:[%s358 + $0xe1] sm:$0xff]
      %v1539 = vld [vmem:[%s358 + $0xf1] sm:$0xff]
      %v1540 = vld [vmem:[%s358 + $0xf9] sm:$0xff]
      %v1541 = vld [vmem:[%s358 + $0x109] sm:$0xff]
      %v1542 = vld [vmem:[%s358 + $0x111] sm:$0xff]
      %v1543 = vld [vmem:[%s358 + $0x121] sm:$0xff]
      %v1544 = vld [vmem:[%s358 + $0x129] sm:$0xff]
      %v1545 = vld [vmem:[%s358 + $0x139] sm:$0xff]
      %v1546 = vld [vmem:[%s358 + $0x141] sm:$0xff]
      %v1547 = vld [vmem:[%s358 + $0x151] sm:$0xff]
      %v1548 = vld [vmem:[%s358 + $0x159] sm:$0xff]
      %v1549 = vld [vmem:[%s358 + $0x169] sm:$0xff]
      %v1550 = vld [vmem:[%s358 + $0x171] sm:$0xff]
      %v1551 = vpack.c.bf16 %v1520, %v1519
      %v1552 = vpack.c.bf16 %v1522, %v1521
      %v1553 = vpack.c.bf16 %v1524, %v1523
      %v1554 = vpack.c.bf16 %v1526, %v1525
      %v1555 = vpack.c.bf16 %v1528, %v1527
      %v1556 = vpack.c.bf16 %v1530, %v1529
      %v1557 = vpack.c.bf16 %v1532, %v1531
      %v1558 = vpack.c.bf16 %v1534, %v1533
      %v1559 = vpack.c.bf16 %v1536, %v1535
      %v1560 = vpack.c.bf16 %v1538, %v1537
      %v1561 = vpack.c.bf16 %v1540, %v1539
      %v1562 = vpack.c.bf16 %v1542, %v1541
      %v1563 = vpack.c.bf16 %v1544, %v1543
      %v1564 = vpack.c.bf16 %v1546, %v1545
      %v1565 = vpack.c.bf16 %v1548, %v1547
      %v1566 = vpack.c.bf16 %v1550, %v1549
      %s1567 = scalar_lea.vmem %s1, 8
      %v1568 = vld [vmem:[%s1567] sm:$0x3]
      %v1570 = vsel %vm253, %v1551, 0
      %v1573 = vsel %vm253, %v1552, 0
      %v1576 = vsel %vm253, %v1553, 0
      %v1579 = vsel %vm253, %v1554, 0
      %v1582 = vsel %vm253, %v1555, 0
      %v1585 = vsel %vm253, %v1556, 0
      %v1588 = vsel %vm253, %v1557, 0
      %v1591 = vsel %vm253, %v1558, 0
      %v1594 = vsel %vm253, %v1559, 0
      %v1597 = vsel %vm253, %v1560, 0
      %v1600 = vsel %vm253, %v1561, 0
      %v1603 = vsel %vm253, %v1562, 0
      %v1606 = vsel %vm253, %v1563, 0
      %v1609 = vsel %vm253, %v1564, 0
      %v1612 = vsel %vm253, %v1565, 0
      %v1615 = vsel %vm253, %v1566, 0
      %v1618 = vsel %vm554, %v1568, 0
      %1620 = vmatprep.subr.bf16.mxu0 0
      %1621 = vmatpush1.bf16.msra.mxu0 0
      %1622 = vmatprep.subr.bf16.mxu0 0
      %1623 = vmatpush1.bf16.msra.mxu0 0
      %1624 = vmatprep.subr.bf16.mxu0 0
      %1625 = vmatpush1.bf16.msra.mxu0 0
      %1626 = vmatprep.subr.bf16.mxu0 0
      %1627 = vmatpush1.bf16.msra.mxu0 0
      %1628 = vmatprep.subr.bf16.mxu0 0
      %1629 = vmatpush1.bf16.msra.mxu0 0
      %1630 = vmatprep.subr.bf16.mxu0 0
      %1631 = vmatpush1.bf16.msra.mxu0 0
      %1632 = vmatprep.subr.bf16.mxu0 0
      %1633 = vmatpush1.bf16.msra.mxu0 0
      %1634 = vmatprep.subr.bf16.mxu0 0
      %1635 = vmatpush1.bf16.msra.mxu0 %v1618
      %1636 = vmatprep.subr.bf16.mxu0 0
      %1637 = vmatpush2.bf16.msra.mxu0 0
      %1638 = vmatprep.subr.bf16.mxu0 0
      %1639 = vmatpush2.bf16.msra.mxu0 0
      %1640 = vmatprep.subr.bf16.mxu0 0
      %1641 = vmatpush2.bf16.msra.mxu0 0
      %1642 = vmatprep.subr.bf16.mxu0 0
      %1643 = vmatpush2.bf16.msra.mxu0 0
      %1644 = vmatprep.subr.bf16.mxu0 0
      %1645 = vmatpush2.bf16.msra.mxu0 0
      %1646 = vmatprep.subr.bf16.mxu0 0
      %1647 = vmatpush2.bf16.msra.mxu0 0
      %1648 = vmatprep.subr.bf16.mxu0 0
      %1649 = vmatpush2.bf16.msra.mxu0 0
      %1650 = vmatprep.subr.bf16.mxu0 0
      %1651 = vmatpush2.bf16.msra.mxu0 0
      %1652 = vmatprep.mubr.bf16.mxu0 0
      %1653 = vmatmul.mubr.bf16.gmra.mxu0 %v1570
      %v1654 = vpop.f32.mrf.mxu0
      %v1655 = vadd.f32 0.0, %v1654
      %v1656 = vpop.f32.mrf.mxu0
      %v1657 = vpop.f32.mrf.mxu0
      %v1658 = vadd.f32 0.0, %v1657
      %v1659 = vpop.f32.mrf.mxu0
      %1660 = vmatprep.mubr.bf16.mxu0 0
      %1661 = vmatmul.mubr.bf16.gmra.mxu0 %v1573
      %v1662 = vpop.f32.mrf.mxu0
      %v1663 = vadd.f32 0.0, %v1662
      %v1664 = vpop.f32.mrf.mxu0
      %v1665 = vpop.f32.mrf.mxu0
      %v1666 = vadd.f32 0.0, %v1665
      %v1667 = vpop.f32.mrf.mxu0
      %1668 = vmatprep.mubr.bf16.mxu0 0
      %1669 = vmatmul.mubr.bf16.gmra.mxu0 %v1576
      %v1670 = vpop.f32.mrf.mxu0
      %v1671 = vadd.f32 0.0, %v1670
      %v1672 = vpop.f32.mrf.mxu0
      %v1673 = vpop.f32.mrf.mxu0
      %v1674 = vadd.f32 0.0, %v1673
      %v1675 = vpop.f32.mrf.mxu0
      %1676 = vmatprep.mubr.bf16.mxu0 0
      %1677 = vmatmul.mubr.bf16.gmra.mxu0 %v1579
      %v1678 = vpop.f32.mrf.mxu0
      %v1679 = vadd.f32 0.0, %v1678
      %v1680 = vpop.f32.mrf.mxu0
      %v1681 = vpop.f32.mrf.mxu0
      %v1682 = vadd.f32 0.0, %v1681
      %v1683 = vpop.f32.mrf.mxu0
      %1684 = vmatprep.mubr.bf16.mxu0 0
      %1685 = vmatmul.mubr.bf16.gmra.mxu0 %v1582
      %v1686 = vpop.f32.mrf.mxu0
      %v1687 = vadd.f32 0.0, %v1686
      %v1688 = vpop.f32.mrf.mxu0
      %v1689 = vpop.f32.mrf.mxu0
      %v1690 = vadd.f32 0.0, %v1689
      %v1691 = vpop.f32.mrf.mxu0
      %1692 = vmatprep.mubr.bf16.mxu0 0
      %1693 = vmatmul.mubr.bf16.gmra.mxu0 %v1585
      %v1694 = vpop.f32.mrf.mxu0
      %v1695 = vadd.f32 0.0, %v1694
      %v1696 = vpop.f32.mrf.mxu0
      %v1697 = vpop.f32.mrf.mxu0
      %v1698 = vadd.f32 0.0, %v1697
      %v1699 = vpop.f32.mrf.mxu0
      %1700 = vmatprep.mubr.bf16.mxu0 0
      %1701 = vmatmul.mubr.bf16.gmra.mxu0 %v1588
      %v1702 = vpop.f32.mrf.mxu0
      %v1703 = vadd.f32 0.0, %v1702
      %v1704 = vpop.f32.mrf.mxu0
      %v1705 = vpop.f32.mrf.mxu0
      %v1706 = vadd.f32 0.0, %v1705
      %v1707 = vpop.f32.mrf.mxu0
      %1708 = vmatprep.mubr.bf16.mxu0 0
      %1709 = vmatmul.mubr.bf16.gmra.mxu0 %v1591
      %v1710 = vpop.f32.mrf.mxu0
      %v1711 = vadd.f32 0.0, %v1710
      %v1712 = vpop.f32.mrf.mxu0
      %v1713 = vpop.f32.mrf.mxu0
      %v1714 = vadd.f32 0.0, %v1713
      %v1715 = vpop.f32.mrf.mxu0
      %1716 = vmatprep.mubr.bf16.mxu0 0
      %1717 = vmatmul.mubr.bf16.gmra.mxu0 %v1594
      %v1718 = vpop.f32.mrf.mxu0
      %v1719 = vadd.f32 0.0, %v1718
      %v1720 = vpop.f32.mrf.mxu0
      %v1721 = vpop.f32.mrf.mxu0
      %v1722 = vadd.f32 0.0, %v1721
      %v1723 = vpop.f32.mrf.mxu0
      %1724 = vmatprep.mubr.bf16.mxu0 0
      %1725 = vmatmul.mubr.bf16.gmra.mxu0 %v1597
      %v1726 = vpop.f32.mrf.mxu0
      %v1727 = vadd.f32 0.0, %v1726
      %v1728 = vpop.f32.mrf.mxu0
      %v1729 = vpop.f32.mrf.mxu0
      %v1730 = vadd.f32 0.0, %v1729
      %v1731 = vpop.f32.mrf.mxu0
      %1732 = vmatprep.mubr.bf16.mxu0 0
      %1733 = vmatmul.mubr.bf16.gmra.mxu0 %v1600
      %v1734 = vpop.f32.mrf.mxu0
      %v1735 = vadd.f32 0.0, %v1734
      %v1736 = vpop.f32.mrf.mxu0
      %v1737 = vpop.f32.mrf.mxu0
      %v1738 = vadd.f32 0.0, %v1737
      %v1739 = vpop.f32.mrf.mxu0
      %1740 = vmatprep.mubr.bf16.mxu0 0
      %1741 = vmatmul.mubr.bf16.gmra.mxu0 %v1603
      %v1742 = vpop.f32.mrf.mxu0
      %v1743 = vadd.f32 0.0, %v1742
      %v1744 = vpop.f32.mrf.mxu0
      %v1745 = vpop.f32.mrf.mxu0
      %v1746 = vadd.f32 0.0, %v1745
      %v1747 = vpop.f32.mrf.mxu0
      %1748 = vmatprep.mubr.bf16.mxu0 0
      %1749 = vmatmul.mubr.bf16.gmra.mxu0 %v1606
      %v1750 = vpop.f32.mrf.mxu0
      %v1751 = vadd.f32 0.0, %v1750
      %v1752 = vpop.f32.mrf.mxu0
      %v1753 = vpop.f32.mrf.mxu0
      %v1754 = vadd.f32 0.0, %v1753
      %v1755 = vpop.f32.mrf.mxu0
      %1756 = vmatprep.mubr.bf16.mxu0 0
      %1757 = vmatmul.mubr.bf16.gmra.mxu0 %v1609
      %v1758 = vpop.f32.mrf.mxu0
      %v1759 = vadd.f32 0.0, %v1758
      %v1760 = vpop.f32.mrf.mxu0
      %v1761 = vpop.f32.mrf.mxu0
      %v1762 = vadd.f32 0.0, %v1761
      %v1763 = vpop.f32.mrf.mxu0
      %1764 = vmatprep.mubr.bf16.mxu0 0
      %1765 = vmatmul.mubr.bf16.gmra.mxu0 %v1612
      %v1766 = vpop.f32.mrf.mxu0
      %v1767 = vadd.f32 0.0, %v1766
      %v1768 = vpop.f32.mrf.mxu0
      %v1769 = vpop.f32.mrf.mxu0
      %v1770 = vadd.f32 0.0, %v1769
      %v1771 = vpop.f32.mrf.mxu0
      %1772 = vmatprep.mubr.bf16.mxu0 0
      %1773 = vmatmul.mubr.bf16.gmra.mxu0 %v1615
      %v1774 = vpop.f32.mrf.mxu0
      %v1775 = vadd.f32 0.0, %v1774
      %v1776 = vpop.f32.mrf.mxu0
      %v1777 = vpop.f32.mrf.mxu0
      %v1778 = vadd.f32 0.0, %v1777
      %v1779 = vpop.f32.mrf.mxu0
      %1780 = vdwg.mxu0
      %v1781 = vadd.f32 %v1487, %v1655
      %v1782 = vadd.f32 %v1488, %v1658
      %v1783 = vadd.f32 %v1489, %v1663
      %v1784 = vadd.f32 %v1490, %v1666
      %v1785 = vadd.f32 %v1491, %v1671
      %v1786 = vadd.f32 %v1492, %v1674
      %v1787 = vadd.f32 %v1493, %v1679
      %v1788 = vadd.f32 %v1494, %v1682
      %v1789 = vadd.f32 %v1495, %v1687
      %v1790 = vadd.f32 %v1496, %v1690
      %v1791 = vadd.f32 %v1497, %v1695
      %v1792 = vadd.f32 %v1498, %v1698
      %v1793 = vadd.f32 %v1499, %v1703
      %v1794 = vadd.f32 %v1500, %v1706
      %v1795 = vadd.f32 %v1501, %v1711
      %v1796 = vadd.f32 %v1502, %v1714
      %v1797 = vadd.f32 %v1503, %v1719
      %v1798 = vadd.f32 %v1504, %v1722
      %v1799 = vadd.f32 %v1505, %v1727
      %v1800 = vadd.f32 %v1506, %v1730
      %v1801 = vadd.f32 %v1507, %v1735
      %v1802 = vadd.f32 %v1508, %v1738
      %v1803 = vadd.f32 %v1509, %v1743
      %v1804 = vadd.f32 %v1510, %v1746
      %v1805 = vadd.f32 %v1511, %v1751
      %v1806 = vadd.f32 %v1512, %v1754
      %v1807 = vadd.f32 %v1513, %v1759
      %v1808 = vadd.f32 %v1514, %v1762
      %v1809 = vadd.f32 %v1515, %v1767
      %v1810 = vadd.f32 %v1516, %v1770
      %v1811 = vadd.f32 %v1517, %v1775
      %v1812 = vadd.f32 %v1518, %v1778
      %v1813 = vld [vmem:[%s2] sm:$0x3]
      %v1815 = vsel %vm554, %v1813, 0
      %1817 = vmatprep.subr.bf16.mxu0 0
      %1818 = vmatpush1.bf16.msra.mxu0 0
      %1819 = vmatprep.subr.bf16.mxu0 0
      %1820 = vmatpush1.bf16.msra.mxu0 0
      %1821 = vmatprep.subr.bf16.mxu0 0
      %1822 = vmatpush1.bf16.msra.mxu0 0
      %1823 = vmatprep.subr.bf16.mxu0 0
      %1824 = vmatpush1.bf16.msra.mxu0 0
      %1825 = vmatprep.subr.bf16.mxu0 0
      %1826 = vmatpush1.bf16.msra.mxu0 0
      %1827 = vmatprep.subr.bf16.mxu0 0
      %1828 = vmatpush1.bf16.msra.mxu0 0
      %1829 = vmatprep.subr.bf16.mxu0 0
      %1830 = vmatpush1.bf16.msra.mxu0 0
      %1831 = vmatprep.subr.bf16.mxu0 0
      %1832 = vmatpush1.bf16.msra.mxu0 %v1815
      %1833 = vmatprep.subr.bf16.mxu0 0
      %1834 = vmatpush2.bf16.msra.mxu0 0
      %1835 = vmatprep.subr.bf16.mxu0 0
      %1836 = vmatpush2.bf16.msra.mxu0 0
      %1837 = vmatprep.subr.bf16.mxu0 0
      %1838 = vmatpush2.bf16.msra.mxu0 0
      %1839 = vmatprep.subr.bf16.mxu0 0
      %1840 = vmatpush2.bf16.msra.mxu0 0
      %1841 = vmatprep.subr.bf16.mxu0 0
      %1842 = vmatpush2.bf16.msra.mxu0 0
      %1843 = vmatprep.subr.bf16.mxu0 0
      %1844 = vmatpush2.bf16.msra.mxu0 0
      %1845 = vmatprep.subr.bf16.mxu0 0
      %1846 = vmatpush2.bf16.msra.mxu0 0
      %1847 = vmatprep.subr.bf16.mxu0 0
      %1848 = vmatpush2.bf16.msra.mxu0 0
      %1849 = vmatprep.mubr.bf16.mxu0 0
      %1850 = vmatmul.mubr.bf16.gmra.mxu0 %v1570
      %v1851 = vpop.f32.mrf.mxu0
      %v1852 = vadd.f32 0.0, %v1851
      %v1853 = vpop.f32.mrf.mxu0
      %v1854 = vpop.f32.mrf.mxu0
      %v1855 = vadd.f32 0.0, %v1854
      %v1856 = vpop.f32.mrf.mxu0
      %1857 = vmatprep.mubr.bf16.mxu0 0
      %1858 = vmatmul.mubr.bf16.gmra.mxu0 %v1573
      %v1859 = vpop.f32.mrf.mxu0
      %v1860 = vadd.f32 0.0, %v1859
      %v1861 = vpop.f32.mrf.mxu0
      %v1862 = vpop.f32.mrf.mxu0
      %v1863 = vadd.f32 0.0, %v1862
      %v1864 = vpop.f32.mrf.mxu0
      %1865 = vmatprep.mubr.bf16.mxu0 0
      %1866 = vmatmul.mubr.bf16.gmra.mxu0 %v1576
      %v1867 = vpop.f32.mrf.mxu0
      %v1868 = vadd.f32 0.0, %v1867
      %v1869 = vpop.f32.mrf.mxu0
      %v1870 = vpop.f32.mrf.mxu0
      %v1871 = vadd.f32 0.0, %v1870
      %v1872 = vpop.f32.mrf.mxu0
      %1873 = vmatprep.mubr.bf16.mxu0 0
      %1874 = vmatmul.mubr.bf16.gmra.mxu0 %v1579
      %v1875 = vpop.f32.mrf.mxu0
      %v1876 = vadd.f32 0.0, %v1875
      %v1877 = vpop.f32.mrf.mxu0
      %v1878 = vpop.f32.mrf.mxu0
      %v1879 = vadd.f32 0.0, %v1878
      %v1880 = vpop.f32.mrf.mxu0
      %1881 = vmatprep.mubr.bf16.mxu0 0
      %1882 = vmatmul.mubr.bf16.gmra.mxu0 %v1582
      %v1883 = vpop.f32.mrf.mxu0
      %v1884 = vadd.f32 0.0, %v1883
      %v1885 = vpop.f32.mrf.mxu0
      %v1886 = vpop.f32.mrf.mxu0
      %v1887 = vadd.f32 0.0, %v1886
      %v1888 = vpop.f32.mrf.mxu0
      %1889 = vmatprep.mubr.bf16.mxu0 0
      %1890 = vmatmul.mubr.bf16.gmra.mxu0 %v1585
      %v1891 = vpop.f32.mrf.mxu0
      %v1892 = vadd.f32 0.0, %v1891
      %v1893 = vpop.f32.mrf.mxu0
      %v1894 = vpop.f32.mrf.mxu0
      %v1895 = vadd.f32 0.0, %v1894
      %v1896 = vpop.f32.mrf.mxu0
      %1897 = vmatprep.mubr.bf16.mxu0 0
      %1898 = vmatmul.mubr.bf16.gmra.mxu0 %v1588
      %v1899 = vpop.f32.mrf.mxu0
      %v1900 = vadd.f32 0.0, %v1899
      %v1901 = vpop.f32.mrf.mxu0
      %v1902 = vpop.f32.mrf.mxu0
      %v1903 = vadd.f32 0.0, %v1902
      %v1904 = vpop.f32.mrf.mxu0
      %1905 = vmatprep.mubr.bf16.mxu0 0
      %1906 = vmatmul.mubr.bf16.gmra.mxu0 %v1591
      %v1907 = vpop.f32.mrf.mxu0
      %v1908 = vadd.f32 0.0, %v1907
      %v1909 = vpop.f32.mrf.mxu0
      %v1910 = vpop.f32.mrf.mxu0
      %v1911 = vadd.f32 0.0, %v1910
      %v1912 = vpop.f32.mrf.mxu0
      %1913 = vmatprep.mubr.bf16.mxu0 0
      %1914 = vmatmul.mubr.bf16.gmra.mxu0 %v1594
      %v1915 = vpop.f32.mrf.mxu0
      %v1916 = vadd.f32 0.0, %v1915
      %v1917 = vpop.f32.mrf.mxu0
      %v1918 = vpop.f32.mrf.mxu0
      %v1919 = vadd.f32 0.0, %v1918
      %v1920 = vpop.f32.mrf.mxu0
      %1921 = vmatprep.mubr.bf16.mxu0 0
      %1922 = vmatmul.mubr.bf16.gmra.mxu0 %v1597
      %v1923 = vpop.f32.mrf.mxu0
      %v1924 = vadd.f32 0.0, %v1923
      %v1925 = vpop.f32.mrf.mxu0
      %v1926 = vpop.f32.mrf.mxu0
      %v1927 = vadd.f32 0.0, %v1926
      %v1928 = vpop.f32.mrf.mxu0
      %1929 = vmatprep.mubr.bf16.mxu0 0
      %1930 = vmatmul.mubr.bf16.gmra.mxu0 %v1600
      %v1931 = vpop.f32.mrf.mxu0
      %v1932 = vadd.f32 0.0, %v1931
      %v1933 = vpop.f32.mrf.mxu0
      %v1934 = vpop.f32.mrf.mxu0
      %v1935 = vadd.f32 0.0, %v1934
      %v1936 = vpop.f32.mrf.mxu0
      %1937 = vmatprep.mubr.bf16.mxu0 0
      %1938 = vmatmul.mubr.bf16.gmra.mxu0 %v1603
      %v1939 = vpop.f32.mrf.mxu0
      %v1940 = vadd.f32 0.0, %v1939
      %v1941 = vpop.f32.mrf.mxu0
      %v1942 = vpop.f32.mrf.mxu0
      %v1943 = vadd.f32 0.0, %v1942
      %v1944 = vpop.f32.mrf.mxu0
      %1945 = vmatprep.mubr.bf16.mxu0 0
      %1946 = vmatmul.mubr.bf16.gmra.mxu0 %v1606
      %v1947 = vpop.f32.mrf.mxu0
      %v1948 = vadd.f32 0.0, %v1947
      %v1949 = vpop.f32.mrf.mxu0
      %v1950 = vpop.f32.mrf.mxu0
      %v1951 = vadd.f32 0.0, %v1950
      %v1952 = vpop.f32.mrf.mxu0
      %1953 = vmatprep.mubr.bf16.mxu0 0
      %1954 = vmatmul.mubr.bf16.gmra.mxu0 %v1609
      %v1955 = vpop.f32.mrf.mxu0
      %v1956 = vadd.f32 0.0, %v1955
      %v1957 = vpop.f32.mrf.mxu0
      %v1958 = vpop.f32.mrf.mxu0
      %v1959 = vadd.f32 0.0, %v1958
      %v1960 = vpop.f32.mrf.mxu0
      %1961 = vmatprep.mubr.bf16.mxu0 0
      %1962 = vmatmul.mubr.bf16.gmra.mxu0 %v1612
      %v1963 = vpop.f32.mrf.mxu0
      %v1964 = vadd.f32 0.0, %v1963
      %v1965 = vpop.f32.mrf.mxu0
      %v1966 = vpop.f32.mrf.mxu0
      %v1967 = vadd.f32 0.0, %v1966
      %v1968 = vpop.f32.mrf.mxu0
      %1969 = vmatprep.mubr.bf16.mxu0 0
      %1970 = vmatmul.mubr.bf16.gmra.mxu0 %v1615
      %v1971 = vpop.f32.mrf.mxu0
      %v1972 = vadd.f32 0.0, %v1971
      %v1973 = vpop.f32.mrf.mxu0
      %v1974 = vpop.f32.mrf.mxu0
      %v1975 = vadd.f32 0.0, %v1974
      %v1976 = vpop.f32.mrf.mxu0
      %1977 = vdwg.mxu0
      %v1978 = vld [vmem:[%s358 + $0x2] sm:$0xff]
      %v1979 = vld [vmem:[%s358 + $0xa] sm:$0xff]
      %v1980 = vld [vmem:[%s358 + $0x1a] sm:$0xff]
      %v1981 = vld [vmem:[%s358 + $0x22] sm:$0xff]
      %v1982 = vld [vmem:[%s358 + $0x32] sm:$0xff]
      %v1983 = vld [vmem:[%s358 + $0x3a] sm:$0xff]
      %v1984 = vld [vmem:[%s358 + $0x4a] sm:$0xff]
      %v1985 = vld [vmem:[%s358 + $0x52] sm:$0xff]
      %v1986 = vld [vmem:[%s358 + $0x62] sm:$0xff]
      %v1987 = vld [vmem:[%s358 + $0x6a] sm:$0xff]
      %v1988 = vld [vmem:[%s358 + $0x7a] sm:$0xff]
      %v1989 = vld [vmem:[%s358 + $0x82] sm:$0xff]
      %v1990 = vld [vmem:[%s358 + $0x92] sm:$0xff]
      %v1991 = vld [vmem:[%s358 + $0x9a] sm:$0xff]
      %v1992 = vld [vmem:[%s358 + $0xaa] sm:$0xff]
      %v1993 = vld [vmem:[%s358 + $0xb2] sm:$0xff]
      %v1994 = vld [vmem:[%s358 + $0xc2] sm:$0xff]
      %v1995 = vld [vmem:[%s358 + $0xca] sm:$0xff]
      %v1996 = vld [vmem:[%s358 + $0xda] sm:$0xff]
      %v1997 = vld [vmem:[%s358 + $0xe2] sm:$0xff]
      %v1998 = vld [vmem:[%s358 + $0xf2] sm:$0xff]
      %v1999 = vld [vmem:[%s358 + $0xfa] sm:$0xff]
      %v2000 = vld [vmem:[%s358 + $0x10a] sm:$0xff]
      %v2001 = vld [vmem:[%s358 + $0x112] sm:$0xff]
      %v2002 = vld [vmem:[%s358 + $0x122] sm:$0xff]
      %v2003 = vld [vmem:[%s358 + $0x12a] sm:$0xff]
      %v2004 = vld [vmem:[%s358 + $0x13a] sm:$0xff]
      %v2005 = vld [vmem:[%s358 + $0x142] sm:$0xff]
      %v2006 = vld [vmem:[%s358 + $0x152] sm:$0xff]
      %v2007 = vld [vmem:[%s358 + $0x15a] sm:$0xff]
      %v2008 = vld [vmem:[%s358 + $0x16a] sm:$0xff]
      %v2009 = vld [vmem:[%s358 + $0x172] sm:$0xff]
      %v2010 = vpack.c.bf16 %v1979, %v1978
      %v2011 = vpack.c.bf16 %v1981, %v1980
      %v2012 = vpack.c.bf16 %v1983, %v1982
      %v2013 = vpack.c.bf16 %v1985, %v1984
      %v2014 = vpack.c.bf16 %v1987, %v1986
      %v2015 = vpack.c.bf16 %v1989, %v1988
      %v2016 = vpack.c.bf16 %v1991, %v1990
      %v2017 = vpack.c.bf16 %v1993, %v1992
      %v2018 = vpack.c.bf16 %v1995, %v1994
      %v2019 = vpack.c.bf16 %v1997, %v1996
      %v2020 = vpack.c.bf16 %v1999, %v1998
      %v2021 = vpack.c.bf16 %v2001, %v2000
      %v2022 = vpack.c.bf16 %v2003, %v2002
      %v2023 = vpack.c.bf16 %v2005, %v2004
      %v2024 = vpack.c.bf16 %v2007, %v2006
      %v2025 = vpack.c.bf16 %v2009, %v2008
      %s2026 = scalar_lea.vmem %s1, 10
      %v2027 = vld [vmem:[%s2026] sm:$0x3]
      %v2029 = vsel %vm253, %v2010, 0
      %v2032 = vsel %vm253, %v2011, 0
      %v2035 = vsel %vm253, %v2012, 0
      %v2038 = vsel %vm253, %v2013, 0
      %v2041 = vsel %vm253, %v2014, 0
      %v2044 = vsel %vm253, %v2015, 0
      %v2047 = vsel %vm253, %v2016, 0
      %v2050 = vsel %vm253, %v2017, 0
      %v2053 = vsel %vm253, %v2018, 0
      %v2056 = vsel %vm253, %v2019, 0
      %v2059 = vsel %vm253, %v2020, 0
      %v2062 = vsel %vm253, %v2021, 0
      %v2065 = vsel %vm253, %v2022, 0
      %v2068 = vsel %vm253, %v2023, 0
      %v2071 = vsel %vm253, %v2024, 0
      %v2074 = vsel %vm253, %v2025, 0
      %v2077 = vsel %vm554, %v2027, 0
      %2079 = vmatprep.subr.bf16.mxu0 0
      %2080 = vmatpush1.bf16.msra.mxu0 0
      %2081 = vmatprep.subr.bf16.mxu0 0
      %2082 = vmatpush1.bf16.msra.mxu0 0
      %2083 = vmatprep.subr.bf16.mxu0 0
      %2084 = vmatpush1.bf16.msra.mxu0 0
      %2085 = vmatprep.subr.bf16.mxu0 0
      %2086 = vmatpush1.bf16.msra.mxu0 0
      %2087 = vmatprep.subr.bf16.mxu0 0
      %2088 = vmatpush1.bf16.msra.mxu0 0
      %2089 = vmatprep.subr.bf16.mxu0 0
      %2090 = vmatpush1.bf16.msra.mxu0 0
      %2091 = vmatprep.subr.bf16.mxu0 0
      %2092 = vmatpush1.bf16.msra.mxu0 0
      %2093 = vmatprep.subr.bf16.mxu0 0
      %2094 = vmatpush1.bf16.msra.mxu0 %v2077
      %2095 = vmatprep.subr.bf16.mxu0 0
      %2096 = vmatpush2.bf16.msra.mxu0 0
      %2097 = vmatprep.subr.bf16.mxu0 0
      %2098 = vmatpush2.bf16.msra.mxu0 0
      %2099 = vmatprep.subr.bf16.mxu0 0
      %2100 = vmatpush2.bf16.msra.mxu0 0
      %2101 = vmatprep.subr.bf16.mxu0 0
      %2102 = vmatpush2.bf16.msra.mxu0 0
      %2103 = vmatprep.subr.bf16.mxu0 0
      %2104 = vmatpush2.bf16.msra.mxu0 0
      %2105 = vmatprep.subr.bf16.mxu0 0
      %2106 = vmatpush2.bf16.msra.mxu0 0
      %2107 = vmatprep.subr.bf16.mxu0 0
      %2108 = vmatpush2.bf16.msra.mxu0 0
      %2109 = vmatprep.subr.bf16.mxu0 0
      %2110 = vmatpush2.bf16.msra.mxu0 0
      %2111 = vmatprep.mubr.bf16.mxu0 0
      %2112 = vmatmul.mubr.bf16.gmra.mxu0 %v2029
      %v2113 = vpop.f32.mrf.mxu0
      %v2114 = vadd.f32 0.0, %v2113
      %v2115 = vpop.f32.mrf.mxu0
      %v2116 = vpop.f32.mrf.mxu0
      %v2117 = vadd.f32 0.0, %v2116
      %v2118 = vpop.f32.mrf.mxu0
      %2119 = vmatprep.mubr.bf16.mxu0 0
      %2120 = vmatmul.mubr.bf16.gmra.mxu0 %v2032
      %v2121 = vpop.f32.mrf.mxu0
      %v2122 = vadd.f32 0.0, %v2121
      %v2123 = vpop.f32.mrf.mxu0
      %v2124 = vpop.f32.mrf.mxu0
      %v2125 = vadd.f32 0.0, %v2124
      %v2126 = vpop.f32.mrf.mxu0
      %2127 = vmatprep.mubr.bf16.mxu0 0
      %2128 = vmatmul.mubr.bf16.gmra.mxu0 %v2035
      %v2129 = vpop.f32.mrf.mxu0
      %v2130 = vadd.f32 0.0, %v2129
      %v2131 = vpop.f32.mrf.mxu0
      %v2132 = vpop.f32.mrf.mxu0
      %v2133 = vadd.f32 0.0, %v2132
      %v2134 = vpop.f32.mrf.mxu0
      %2135 = vmatprep.mubr.bf16.mxu0 0
      %2136 = vmatmul.mubr.bf16.gmra.mxu0 %v2038
      %v2137 = vpop.f32.mrf.mxu0
      %v2138 = vadd.f32 0.0, %v2137
      %v2139 = vpop.f32.mrf.mxu0
      %v2140 = vpop.f32.mrf.mxu0
      %v2141 = vadd.f32 0.0, %v2140
      %v2142 = vpop.f32.mrf.mxu0
      %2143 = vmatprep.mubr.bf16.mxu0 0
      %2144 = vmatmul.mubr.bf16.gmra.mxu0 %v2041
      %v2145 = vpop.f32.mrf.mxu0
      %v2146 = vadd.f32 0.0, %v2145
      %v2147 = vpop.f32.mrf.mxu0
      %v2148 = vpop.f32.mrf.mxu0
      %v2149 = vadd.f32 0.0, %v2148
      %v2150 = vpop.f32.mrf.mxu0
      %2151 = vmatprep.mubr.bf16.mxu0 0
      %2152 = vmatmul.mubr.bf16.gmra.mxu0 %v2044
      %v2153 = vpop.f32.mrf.mxu0
      %v2154 = vadd.f32 0.0, %v2153
      %v2155 = vpop.f32.mrf.mxu0
      %v2156 = vpop.f32.mrf.mxu0
      %v2157 = vadd.f32 0.0, %v2156
      %v2158 = vpop.f32.mrf.mxu0
      %2159 = vmatprep.mubr.bf16.mxu0 0
      %2160 = vmatmul.mubr.bf16.gmra.mxu0 %v2047
      %v2161 = vpop.f32.mrf.mxu0
      %v2162 = vadd.f32 0.0, %v2161
      %v2163 = vpop.f32.mrf.mxu0
      %v2164 = vpop.f32.mrf.mxu0
      %v2165 = vadd.f32 0.0, %v2164
      %v2166 = vpop.f32.mrf.mxu0
      %2167 = vmatprep.mubr.bf16.mxu0 0
      %2168 = vmatmul.mubr.bf16.gmra.mxu0 %v2050
      %v2169 = vpop.f32.mrf.mxu0
      %v2170 = vadd.f32 0.0, %v2169
      %v2171 = vpop.f32.mrf.mxu0
      %v2172 = vpop.f32.mrf.mxu0
      %v2173 = vadd.f32 0.0, %v2172
      %v2174 = vpop.f32.mrf.mxu0
      %2175 = vmatprep.mubr.bf16.mxu0 0
      %2176 = vmatmul.mubr.bf16.gmra.mxu0 %v2053
      %v2177 = vpop.f32.mrf.mxu0
      %v2178 = vadd.f32 0.0, %v2177
      %v2179 = vpop.f32.mrf.mxu0
      %v2180 = vpop.f32.mrf.mxu0
      %v2181 = vadd.f32 0.0, %v2180
      %v2182 = vpop.f32.mrf.mxu0
      %2183 = vmatprep.mubr.bf16.mxu0 0
      %2184 = vmatmul.mubr.bf16.gmra.mxu0 %v2056
      %v2185 = vpop.f32.mrf.mxu0
      %v2186 = vadd.f32 0.0, %v2185
      %v2187 = vpop.f32.mrf.mxu0
      %v2188 = vpop.f32.mrf.mxu0
      %v2189 = vadd.f32 0.0, %v2188
      %v2190 = vpop.f32.mrf.mxu0
      %2191 = vmatprep.mubr.bf16.mxu0 0
      %2192 = vmatmul.mubr.bf16.gmra.mxu0 %v2059
      %v2193 = vpop.f32.mrf.mxu0
      %v2194 = vadd.f32 0.0, %v2193
      %v2195 = vpop.f32.mrf.mxu0
      %v2196 = vpop.f32.mrf.mxu0
      %v2197 = vadd.f32 0.0, %v2196
      %v2198 = vpop.f32.mrf.mxu0
      %2199 = vmatprep.mubr.bf16.mxu0 0
      %2200 = vmatmul.mubr.bf16.gmra.mxu0 %v2062
      %v2201 = vpop.f32.mrf.mxu0
      %v2202 = vadd.f32 0.0, %v2201
      %v2203 = vpop.f32.mrf.mxu0
      %v2204 = vpop.f32.mrf.mxu0
      %v2205 = vadd.f32 0.0, %v2204
      %v2206 = vpop.f32.mrf.mxu0
      %2207 = vmatprep.mubr.bf16.mxu0 0
      %2208 = vmatmul.mubr.bf16.gmra.mxu0 %v2065
      %v2209 = vpop.f32.mrf.mxu0
      %v2210 = vadd.f32 0.0, %v2209
      %v2211 = vpop.f32.mrf.mxu0
      %v2212 = vpop.f32.mrf.mxu0
      %v2213 = vadd.f32 0.0, %v2212
      %v2214 = vpop.f32.mrf.mxu0
      %2215 = vmatprep.mubr.bf16.mxu0 0
      %2216 = vmatmul.mubr.bf16.gmra.mxu0 %v2068
      %v2217 = vpop.f32.mrf.mxu0
      %v2218 = vadd.f32 0.0, %v2217
      %v2219 = vpop.f32.mrf.mxu0
      %v2220 = vpop.f32.mrf.mxu0
      %v2221 = vadd.f32 0.0, %v2220
      %v2222 = vpop.f32.mrf.mxu0
      %2223 = vmatprep.mubr.bf16.mxu0 0
      %2224 = vmatmul.mubr.bf16.gmra.mxu0 %v2071
      %v2225 = vpop.f32.mrf.mxu0
      %v2226 = vadd.f32 0.0, %v2225
      %v2227 = vpop.f32.mrf.mxu0
      %v2228 = vpop.f32.mrf.mxu0
      %v2229 = vadd.f32 0.0, %v2228
      %v2230 = vpop.f32.mrf.mxu0
      %2231 = vmatprep.mubr.bf16.mxu0 0
      %2232 = vmatmul.mubr.bf16.gmra.mxu0 %v2074
      %v2233 = vpop.f32.mrf.mxu0
      %v2234 = vadd.f32 0.0, %v2233
      %v2235 = vpop.f32.mrf.mxu0
      %v2236 = vpop.f32.mrf.mxu0
      %v2237 = vadd.f32 0.0, %v2236
      %v2238 = vpop.f32.mrf.mxu0
      %2239 = vdwg.mxu0
      %v2240 = vadd.f32 %v1781, %v2114
      %v2241 = vadd.f32 %v1782, %v2117
      %v2242 = vadd.f32 %v1783, %v2122
      %v2243 = vadd.f32 %v1784, %v2125
      %v2244 = vadd.f32 %v1785, %v2130
      %v2245 = vadd.f32 %v1786, %v2133
      %v2246 = vadd.f32 %v1787, %v2138
      %v2247 = vadd.f32 %v1788, %v2141
      %v2248 = vadd.f32 %v1789, %v2146
      %v2249 = vadd.f32 %v1790, %v2149
      %v2250 = vadd.f32 %v1791, %v2154
      %v2251 = vadd.f32 %v1792, %v2157
      %v2252 = vadd.f32 %v1793, %v2162
      %v2253 = vadd.f32 %v1794, %v2165
      %v2254 = vadd.f32 %v1795, %v2170
      %v2255 = vadd.f32 %v1796, %v2173
      %v2256 = vadd.f32 %v1797, %v2178
      %v2257 = vadd.f32 %v1798, %v2181
      %v2258 = vadd.f32 %v1799, %v2186
      %v2259 = vadd.f32 %v1800, %v2189
      %v2260 = vadd.f32 %v1801, %v2194
      %v2261 = vadd.f32 %v1802, %v2197
      %v2262 = vadd.f32 %v1803, %v2202
      %v2263 = vadd.f32 %v1804, %v2205
      %v2264 = vadd.f32 %v1805, %v2210
      %v2265 = vadd.f32 %v1806, %v2213
      %v2266 = vadd.f32 %v1807, %v2218
      %v2267 = vadd.f32 %v1808, %v2221
      %v2268 = vadd.f32 %v1809, %v2226
      %v2269 = vadd.f32 %v1810, %v2229
      %v2270 = vadd.f32 %v1811, %v2234
      %v2271 = vadd.f32 %v1812, %v2237
      %s2272 = scalar_lea.vmem [#allocation2], 48
      %v2273 = vld [vmem:[%s2272] sm:$0xff]
      %v2274 = vld [vmem:[%s2272 + $0x8] sm:$0xff]
      %v2275 = vld [vmem:[%s2272 + $0x18] sm:$0xff]
      %v2276 = vld [vmem:[%s2272 + $0x20] sm:$0xff]
      %v2277 = vld [vmem:[%s2272 + $0x30] sm:$0xff]
      %v2278 = vld [vmem:[%s2272 + $0x38] sm:$0xff]
      %v2279 = vld [vmem:[%s2272 + $0x48] sm:$0xff]
      %v2280 = vld [vmem:[%s2272 + $0x50] sm:$0xff]
      %v2281 = vld [vmem:[%s2272 + $0x60] sm:$0xff]
      %v2282 = vld [vmem:[%s2272 + $0x68] sm:$0xff]
      %v2283 = vld [vmem:[%s2272 + $0x78] sm:$0xff]
      %v2284 = vld [vmem:[%s2272 + $0x80] sm:$0xff]
      %v2285 = vld [vmem:[%s2272 + $0x90] sm:$0xff]
      %v2286 = vld [vmem:[%s2272 + $0x98] sm:$0xff]
      %v2287 = vld [vmem:[%s2272 + $0xa8] sm:$0xff]
      %v2288 = vld [vmem:[%s2272 + $0xb0] sm:$0xff]
      %v2289 = vld [vmem:[%s2272 + $0xc0] sm:$0xff]
      %v2290 = vld [vmem:[%s2272 + $0xc8] sm:$0xff]
      %v2291 = vld [vmem:[%s2272 + $0xd8] sm:$0xff]
      %v2292 = vld [vmem:[%s2272 + $0xe0] sm:$0xff]
      %v2293 = vld [vmem:[%s2272 + $0xf0] sm:$0xff]
      %v2294 = vld [vmem:[%s2272 + $0xf8] sm:$0xff]
      %v2295 = vld [vmem:[%s2272 + $0x108] sm:$0xff]
      %v2296 = vld [vmem:[%s2272 + $0x110] sm:$0xff]
      %v2297 = vld [vmem:[%s2272 + $0x120] sm:$0xff]
      %v2298 = vld [vmem:[%s2272 + $0x128] sm:$0xff]
      %v2299 = vld [vmem:[%s2272 + $0x138] sm:$0xff]
      %v2300 = vld [vmem:[%s2272 + $0x140] sm:$0xff]
      %v2301 = vld [vmem:[%s2272 + $0x150] sm:$0xff]
      %v2302 = vld [vmem:[%s2272 + $0x158] sm:$0xff]
      %v2303 = vld [vmem:[%s2272 + $0x168] sm:$0xff]
      %v2304 = vld [vmem:[%s2272 + $0x170] sm:$0xff]
      %v2305 = vpack.c.bf16 %v2274, %v2273
      %v2306 = vpack.c.bf16 %v2276, %v2275
      %v2307 = vpack.c.bf16 %v2278, %v2277
      %v2308 = vpack.c.bf16 %v2280, %v2279
      %v2309 = vpack.c.bf16 %v2282, %v2281
      %v2310 = vpack.c.bf16 %v2284, %v2283
      %v2311 = vpack.c.bf16 %v2286, %v2285
      %v2312 = vpack.c.bf16 %v2288, %v2287
      %v2313 = vpack.c.bf16 %v2290, %v2289
      %v2314 = vpack.c.bf16 %v2292, %v2291
      %v2315 = vpack.c.bf16 %v2294, %v2293
      %v2316 = vpack.c.bf16 %v2296, %v2295
      %v2317 = vpack.c.bf16 %v2298, %v2297
      %v2318 = vpack.c.bf16 %v2300, %v2299
      %v2319 = vpack.c.bf16 %v2302, %v2301
      %v2320 = vpack.c.bf16 %v2304, %v2303
      %s2321 = scalar_lea.vmem %s1, 12
      %v2322 = vld [vmem:[%s2321] sm:$0x3]
      %v2324 = vsel %vm253, %v2305, 0
      %v2327 = vsel %vm253, %v2306, 0
      %v2330 = vsel %vm253, %v2307, 0
      %v2333 = vsel %vm253, %v2308, 0
      %v2336 = vsel %vm253, %v2309, 0
      %v2339 = vsel %vm253, %v2310, 0
      %v2342 = vsel %vm253, %v2311, 0
      %v2345 = vsel %vm253, %v2312, 0
      %v2348 = vsel %vm253, %v2313, 0
      %v2351 = vsel %vm253, %v2314, 0
      %v2354 = vsel %vm253, %v2315, 0
      %v2357 = vsel %vm253, %v2316, 0
      %v2360 = vsel %vm253, %v2317, 0
      %v2363 = vsel %vm253, %v2318, 0
      %v2366 = vsel %vm253, %v2319, 0
      %v2369 = vsel %vm253, %v2320, 0
      %v2372 = vsel %vm554, %v2322, 0
      %2374 = vmatprep.subr.bf16.mxu0 0
      %2375 = vmatpush1.bf16.msra.mxu0 0
      %2376 = vmatprep.subr.bf16.mxu0 0
      %2377 = vmatpush1.bf16.msra.mxu0 0
      %2378 = vmatprep.subr.bf16.mxu0 0
      %2379 = vmatpush1.bf16.msra.mxu0 0
      %2380 = vmatprep.subr.bf16.mxu0 0
      %2381 = vmatpush1.bf16.msra.mxu0 0
      %2382 = vmatprep.subr.bf16.mxu0 0
      %2383 = vmatpush1.bf16.msra.mxu0 0
      %2384 = vmatprep.subr.bf16.mxu0 0
      %2385 = vmatpush1.bf16.msra.mxu0 0
      %2386 = vmatprep.subr.bf16.mxu0 0
      %2387 = vmatpush1.bf16.msra.mxu0 0
      %2388 = vmatprep.subr.bf16.mxu0 0
      %2389 = vmatpush1.bf16.msra.mxu0 %v2372
      %2390 = vmatprep.subr.bf16.mxu0 0
      %2391 = vmatpush2.bf16.msra.mxu0 0
      %2392 = vmatprep.subr.bf16.mxu0 0
      %2393 = vmatpush2.bf16.msra.mxu0 0
      %2394 = vmatprep.subr.bf16.mxu0 0
      %2395 = vmatpush2.bf16.msra.mxu0 0
      %2396 = vmatprep.subr.bf16.mxu0 0
      %2397 = vmatpush2.bf16.msra.mxu0 0
      %2398 = vmatprep.subr.bf16.mxu0 0
      %2399 = vmatpush2.bf16.msra.mxu0 0
      %2400 = vmatprep.subr.bf16.mxu0 0
      %2401 = vmatpush2.bf16.msra.mxu0 0
      %2402 = vmatprep.subr.bf16.mxu0 0
      %2403 = vmatpush2.bf16.msra.mxu0 0
      %2404 = vmatprep.subr.bf16.mxu0 0
      %2405 = vmatpush2.bf16.msra.mxu0 0
      %2406 = vmatprep.mubr.bf16.mxu0 0
      %2407 = vmatmul.mubr.bf16.gmra.mxu0 %v2324
      %v2408 = vpop.f32.mrf.mxu0
      %v2409 = vadd.f32 0.0, %v2408
      %v2410 = vpop.f32.mrf.mxu0
      %v2411 = vpop.f32.mrf.mxu0
      %v2412 = vadd.f32 0.0, %v2411
      %v2413 = vpop.f32.mrf.mxu0
      %2414 = vmatprep.mubr.bf16.mxu0 0
      %2415 = vmatmul.mubr.bf16.gmra.mxu0 %v2327
      %v2416 = vpop.f32.mrf.mxu0
      %v2417 = vadd.f32 0.0, %v2416
      %v2418 = vpop.f32.mrf.mxu0
      %v2419 = vpop.f32.mrf.mxu0
      %v2420 = vadd.f32 0.0, %v2419
      %v2421 = vpop.f32.mrf.mxu0
      %2422 = vmatprep.mubr.bf16.mxu0 0
      %2423 = vmatmul.mubr.bf16.gmra.mxu0 %v2330
      %v2424 = vpop.f32.mrf.mxu0
      %v2425 = vadd.f32 0.0, %v2424
      %v2426 = vpop.f32.mrf.mxu0
      %v2427 = vpop.f32.mrf.mxu0
      %v2428 = vadd.f32 0.0, %v2427
      %v2429 = vpop.f32.mrf.mxu0
      %2430 = vmatprep.mubr.bf16.mxu0 0
      %2431 = vmatmul.mubr.bf16.gmra.mxu0 %v2333
      %v2432 = vpop.f32.mrf.mxu0
      %v2433 = vadd.f32 0.0, %v2432
      %v2434 = vpop.f32.mrf.mxu0
      %v2435 = vpop.f32.mrf.mxu0
      %v2436 = vadd.f32 0.0, %v2435
      %v2437 = vpop.f32.mrf.mxu0
      %2438 = vmatprep.mubr.bf16.mxu0 0
      %2439 = vmatmul.mubr.bf16.gmra.mxu0 %v2336
      %v2440 = vpop.f32.mrf.mxu0
      %v2441 = vadd.f32 0.0, %v2440
      %v2442 = vpop.f32.mrf.mxu0
      %v2443 = vpop.f32.mrf.mxu0
      %v2444 = vadd.f32 0.0, %v2443
      %v2445 = vpop.f32.mrf.mxu0
      %2446 = vmatprep.mubr.bf16.mxu0 0
      %2447 = vmatmul.mubr.bf16.gmra.mxu0 %v2339
      %v2448 = vpop.f32.mrf.mxu0
      %v2449 = vadd.f32 0.0, %v2448
      %v2450 = vpop.f32.mrf.mxu0
      %v2451 = vpop.f32.mrf.mxu0
      %v2452 = vadd.f32 0.0, %v2451
      %v2453 = vpop.f32.mrf.mxu0
      %2454 = vmatprep.mubr.bf16.mxu0 0
      %2455 = vmatmul.mubr.bf16.gmra.mxu0 %v2342
      %v2456 = vpop.f32.mrf.mxu0
      %v2457 = vadd.f32 0.0, %v2456
      %v2458 = vpop.f32.mrf.mxu0
      %v2459 = vpop.f32.mrf.mxu0
      %v2460 = vadd.f32 0.0, %v2459
      %v2461 = vpop.f32.mrf.mxu0
      %2462 = vmatprep.mubr.bf16.mxu0 0
      %2463 = vmatmul.mubr.bf16.gmra.mxu0 %v2345
      %v2464 = vpop.f32.mrf.mxu0
      %v2465 = vadd.f32 0.0, %v2464
      %v2466 = vpop.f32.mrf.mxu0
      %v2467 = vpop.f32.mrf.mxu0
      %v2468 = vadd.f32 0.0, %v2467
      %v2469 = vpop.f32.mrf.mxu0
      %2470 = vmatprep.mubr.bf16.mxu0 0
      %2471 = vmatmul.mubr.bf16.gmra.mxu0 %v2348
      %v2472 = vpop.f32.mrf.mxu0
      %v2473 = vadd.f32 0.0, %v2472
      %v2474 = vpop.f32.mrf.mxu0
      %v2475 = vpop.f32.mrf.mxu0
      %v2476 = vadd.f32 0.0, %v2475
      %v2477 = vpop.f32.mrf.mxu0
      %2478 = vmatprep.mubr.bf16.mxu0 0
      %2479 = vmatmul.mubr.bf16.gmra.mxu0 %v2351
      %v2480 = vpop.f32.mrf.mxu0
      %v2481 = vadd.f32 0.0, %v2480
      %v2482 = vpop.f32.mrf.mxu0
      %v2483 = vpop.f32.mrf.mxu0
      %v2484 = vadd.f32 0.0, %v2483
      %v2485 = vpop.f32.mrf.mxu0
      %2486 = vmatprep.mubr.bf16.mxu0 0
      %2487 = vmatmul.mubr.bf16.gmra.mxu0 %v2354
      %v2488 = vpop.f32.mrf.mxu0
      %v2489 = vadd.f32 0.0, %v2488
      %v2490 = vpop.f32.mrf.mxu0
      %v2491 = vpop.f32.mrf.mxu0
      %v2492 = vadd.f32 0.0, %v2491
      %v2493 = vpop.f32.mrf.mxu0
      %2494 = vmatprep.mubr.bf16.mxu0 0
      %2495 = vmatmul.mubr.bf16.gmra.mxu0 %v2357
      %v2496 = vpop.f32.mrf.mxu0
      %v2497 = vadd.f32 0.0, %v2496
      %v2498 = vpop.f32.mrf.mxu0
      %v2499 = vpop.f32.mrf.mxu0
      %v2500 = vadd.f32 0.0, %v2499
      %v2501 = vpop.f32.mrf.mxu0
      %2502 = vmatprep.mubr.bf16.mxu0 0
      %2503 = vmatmul.mubr.bf16.gmra.mxu0 %v2360
      %v2504 = vpop.f32.mrf.mxu0
      %v2505 = vadd.f32 0.0, %v2504
      %v2506 = vpop.f32.mrf.mxu0
      %v2507 = vpop.f32.mrf.mxu0
      %v2508 = vadd.f32 0.0, %v2507
      %v2509 = vpop.f32.mrf.mxu0
      %2510 = vmatprep.mubr.bf16.mxu0 0
      %2511 = vmatmul.mubr.bf16.gmra.mxu0 %v2363
      %v2512 = vpop.f32.mrf.mxu0
      %v2513 = vadd.f32 0.0, %v2512
      %v2514 = vpop.f32.mrf.mxu0
      %v2515 = vpop.f32.mrf.mxu0
      %v2516 = vadd.f32 0.0, %v2515
      %v2517 = vpop.f32.mrf.mxu0
      %2518 = vmatprep.mubr.bf16.mxu0 0
      %2519 = vmatmul.mubr.bf16.gmra.mxu0 %v2366
      %v2520 = vpop.f32.mrf.mxu0
      %v2521 = vadd.f32 0.0, %v2520
      %v2522 = vpop.f32.mrf.mxu0
      %v2523 = vpop.f32.mrf.mxu0
      %v2524 = vadd.f32 0.0, %v2523
      %v2525 = vpop.f32.mrf.mxu0
      %2526 = vmatprep.mubr.bf16.mxu0 0
      %2527 = vmatmul.mubr.bf16.gmra.mxu0 %v2369
      %v2528 = vpop.f32.mrf.mxu0
      %v2529 = vadd.f32 0.0, %v2528
      %v2530 = vpop.f32.mrf.mxu0
      %v2531 = vpop.f32.mrf.mxu0
      %v2532 = vadd.f32 0.0, %v2531
      %v2533 = vpop.f32.mrf.mxu0
      %2534 = vdwg.mxu0
      %v2535 = vadd.f32 %v2240, %v2409
      %v2536 = vadd.f32 %v2241, %v2412
      %v2537 = vadd.f32 %v2242, %v2417
      %v2538 = vadd.f32 %v2243, %v2420
      %v2539 = vadd.f32 %v2244, %v2425
      %v2540 = vadd.f32 %v2245, %v2428
      %v2541 = vadd.f32 %v2246, %v2433
      %v2542 = vadd.f32 %v2247, %v2436
      %v2543 = vadd.f32 %v2248, %v2441
      %v2544 = vadd.f32 %v2249, %v2444
      %v2545 = vadd.f32 %v2250, %v2449
      %v2546 = vadd.f32 %v2251, %v2452
      %v2547 = vadd.f32 %v2252, %v2457
      %v2548 = vadd.f32 %v2253, %v2460
      %v2549 = vadd.f32 %v2254, %v2465
      %v2550 = vadd.f32 %v2255, %v2468
      %v2551 = vadd.f32 %v2256, %v2473
      %v2552 = vadd.f32 %v2257, %v2476
      %v2553 = vadd.f32 %v2258, %v2481
      %v2554 = vadd.f32 %v2259, %v2484
      %v2555 = vadd.f32 %v2260, %v2489
      %v2556 = vadd.f32 %v2261, %v2492
      %v2557 = vadd.f32 %v2262, %v2497
      %v2558 = vadd.f32 %v2263, %v2500
      %v2559 = vadd.f32 %v2264, %v2505
      %v2560 = vadd.f32 %v2265, %v2508
      %v2561 = vadd.f32 %v2266, %v2513
      %v2562 = vadd.f32 %v2267, %v2516
      %v2563 = vadd.f32 %v2268, %v2521
      %v2564 = vadd.f32 %v2269, %v2524
      %v2565 = vadd.f32 %v2270, %v2529
      %v2566 = vadd.f32 %v2271, %v2532
      %v2567 = vld [vmem:[%s2272 + $0x1] sm:$0xff]
      %v2568 = vld [vmem:[%s2272 + $0x9] sm:$0xff]
      %v2569 = vld [vmem:[%s2272 + $0x19] sm:$0xff]
      %v2570 = vld [vmem:[%s2272 + $0x21] sm:$0xff]
      %v2571 = vld [vmem:[%s2272 + $0x31] sm:$0xff]
      %v2572 = vld [vmem:[%s2272 + $0x39] sm:$0xff]
      %v2573 = vld [vmem:[%s2272 + $0x49] sm:$0xff]
      %v2574 = vld [vmem:[%s2272 + $0x51] sm:$0xff]
      %v2575 = vld [vmem:[%s2272 + $0x61] sm:$0xff]
      %v2576 = vld [vmem:[%s2272 + $0x69] sm:$0xff]
      %v2577 = vld [vmem:[%s2272 + $0x79] sm:$0xff]
      %v2578 = vld [vmem:[%s2272 + $0x81] sm:$0xff]
      %v2579 = vld [vmem:[%s2272 + $0x91] sm:$0xff]
      %v2580 = vld [vmem:[%s2272 + $0x99] sm:$0xff]
      %v2581 = vld [vmem:[%s2272 + $0xa9] sm:$0xff]
      %v2582 = vld [vmem:[%s2272 + $0xb1] sm:$0xff]
      %v2583 = vld [vmem:[%s2272 + $0xc1] sm:$0xff]
      %v2584 = vld [vmem:[%s2272 + $0xc9] sm:$0xff]
      %v2585 = vld [vmem:[%s2272 + $0xd9] sm:$0xff]
      %v2586 = vld [vmem:[%s2272 + $0xe1] sm:$0xff]
      %v2587 = vld [vmem:[%s2272 + $0xf1] sm:$0xff]
      %v2588 = vld [vmem:[%s2272 + $0xf9] sm:$0xff]
      %v2589 = vld [vmem:[%s2272 + $0x109] sm:$0xff]
      %v2590 = vld [vmem:[%s2272 + $0x111] sm:$0xff]
      %v2591 = vld [vmem:[%s2272 + $0x121] sm:$0xff]
      %v2592 = vld [vmem:[%s2272 + $0x129] sm:$0xff]
      %v2593 = vld [vmem:[%s2272 + $0x139] sm:$0xff]
      %v2594 = vld [vmem:[%s2272 + $0x141] sm:$0xff]
      %v2595 = vld [vmem:[%s2272 + $0x151] sm:$0xff]
      %v2596 = vld [vmem:[%s2272 + $0x159] sm:$0xff]
      %v2597 = vld [vmem:[%s2272 + $0x169] sm:$0xff]
      %v2598 = vld [vmem:[%s2272 + $0x171] sm:$0xff]
      %v2599 = vpack.c.bf16 %v2568, %v2567
      %v2600 = vpack.c.bf16 %v2570, %v2569
      %v2601 = vpack.c.bf16 %v2572, %v2571
      %v2602 = vpack.c.bf16 %v2574, %v2573
      %v2603 = vpack.c.bf16 %v2576, %v2575
      %v2604 = vpack.c.bf16 %v2578, %v2577
      %v2605 = vpack.c.bf16 %v2580, %v2579
      %v2606 = vpack.c.bf16 %v2582, %v2581
      %v2607 = vpack.c.bf16 %v2584, %v2583
      %v2608 = vpack.c.bf16 %v2586, %v2585
      %v2609 = vpack.c.bf16 %v2588, %v2587
      %v2610 = vpack.c.bf16 %v2590, %v2589
      %v2611 = vpack.c.bf16 %v2592, %v2591
      %v2612 = vpack.c.bf16 %v2594, %v2593
      %v2613 = vpack.c.bf16 %v2596, %v2595
      %v2614 = vpack.c.bf16 %v2598, %v2597
      %s2615 = scalar_lea.vmem %s1, 14
      %v2616 = vld [vmem:[%s2615] sm:$0x3]
      %v2618 = vsel %vm253, %v2599, 0
      %v2621 = vsel %vm253, %v2600, 0
      %v2624 = vsel %vm253, %v2601, 0
      %v2627 = vsel %vm253, %v2602, 0
      %v2630 = vsel %vm253, %v2603, 0
      %v2633 = vsel %vm253, %v2604, 0
      %v2636 = vsel %vm253, %v2605, 0
      %v2639 = vsel %vm253, %v2606, 0
      %v2642 = vsel %vm253, %v2607, 0
      %v2645 = vsel %vm253, %v2608, 0
      %v2648 = vsel %vm253, %v2609, 0
      %v2651 = vsel %vm253, %v2610, 0
      %v2654 = vsel %vm253, %v2611, 0
      %v2657 = vsel %vm253, %v2612, 0
      %v2660 = vsel %vm253, %v2613, 0
      %v2663 = vsel %vm253, %v2614, 0
      %v2666 = vsel %vm554, %v2616, 0
      %2668 = vmatprep.subr.bf16.mxu0 0
      %2669 = vmatpush1.bf16.msra.mxu0 0
      %2670 = vmatprep.subr.bf16.mxu0 0
      %2671 = vmatpush1.bf16.msra.mxu0 0
      %2672 = vmatprep.subr.bf16.mxu0 0
      %2673 = vmatpush1.bf16.msra.mxu0 0
      %2674 = vmatprep.subr.bf16.mxu0 0
      %2675 = vmatpush1.bf16.msra.mxu0 0
      %2676 = vmatprep.subr.bf16.mxu0 0
      %2677 = vmatpush1.bf16.msra.mxu0 0
      %2678 = vmatprep.subr.bf16.mxu0 0
      %2679 = vmatpush1.bf16.msra.mxu0 0
      %2680 = vmatprep.subr.bf16.mxu0 0
      %2681 = vmatpush1.bf16.msra.mxu0 0
      %2682 = vmatprep.subr.bf16.mxu0 0
      %2683 = vmatpush1.bf16.msra.mxu0 %v2666
      %2684 = vmatprep.subr.bf16.mxu0 0
      %2685 = vmatpush2.bf16.msra.mxu0 0
      %2686 = vmatprep.subr.bf16.mxu0 0
      %2687 = vmatpush2.bf16.msra.mxu0 0
      %2688 = vmatprep.subr.bf16.mxu0 0
      %2689 = vmatpush2.bf16.msra.mxu0 0
      %2690 = vmatprep.subr.bf16.mxu0 0
      %2691 = vmatpush2.bf16.msra.mxu0 0
      %2692 = vmatprep.subr.bf16.mxu0 0
      %2693 = vmatpush2.bf16.msra.mxu0 0
      %2694 = vmatprep.subr.bf16.mxu0 0
      %2695 = vmatpush2.bf16.msra.mxu0 0
      %2696 = vmatprep.subr.bf16.mxu0 0
      %2697 = vmatpush2.bf16.msra.mxu0 0
      %2698 = vmatprep.subr.bf16.mxu0 0
      %2699 = vmatpush2.bf16.msra.mxu0 0
      %2700 = vmatprep.mubr.bf16.mxu0 0
      %2701 = vmatmul.mubr.bf16.gmra.mxu0 %v2618
      %v2702 = vpop.f32.mrf.mxu0
      %v2703 = vadd.f32 0.0, %v2702
      %v2704 = vpop.f32.mrf.mxu0
      %v2705 = vpop.f32.mrf.mxu0
      %v2706 = vadd.f32 0.0, %v2705
      %v2707 = vpop.f32.mrf.mxu0
      %2708 = vmatprep.mubr.bf16.mxu0 0
      %2709 = vmatmul.mubr.bf16.gmra.mxu0 %v2621
      %v2710 = vpop.f32.mrf.mxu0
      %v2711 = vadd.f32 0.0, %v2710
      %v2712 = vpop.f32.mrf.mxu0
      %v2713 = vpop.f32.mrf.mxu0
      %v2714 = vadd.f32 0.0, %v2713
      %v2715 = vpop.f32.mrf.mxu0
      %2716 = vmatprep.mubr.bf16.mxu0 0
      %2717 = vmatmul.mubr.bf16.gmra.mxu0 %v2624
      %v2718 = vpop.f32.mrf.mxu0
      %v2719 = vadd.f32 0.0, %v2718
      %v2720 = vpop.f32.mrf.mxu0
      %v2721 = vpop.f32.mrf.mxu0
      %v2722 = vadd.f32 0.0, %v2721
      %v2723 = vpop.f32.mrf.mxu0
      %2724 = vmatprep.mubr.bf16.mxu0 0
      %2725 = vmatmul.mubr.bf16.gmra.mxu0 %v2627
      %v2726 = vpop.f32.mrf.mxu0
      %v2727 = vadd.f32 0.0, %v2726
      %v2728 = vpop.f32.mrf.mxu0
      %v2729 = vpop.f32.mrf.mxu0
      %v2730 = vadd.f32 0.0, %v2729
      %v2731 = vpop.f32.mrf.mxu0
      %2732 = vmatprep.mubr.bf16.mxu0 0
      %2733 = vmatmul.mubr.bf16.gmra.mxu0 %v2630
      %v2734 = vpop.f32.mrf.mxu0
      %v2735 = vadd.f32 0.0, %v2734
      %v2736 = vpop.f32.mrf.mxu0
      %v2737 = vpop.f32.mrf.mxu0
      %v2738 = vadd.f32 0.0, %v2737
      %v2739 = vpop.f32.mrf.mxu0
      %2740 = vmatprep.mubr.bf16.mxu0 0
      %2741 = vmatmul.mubr.bf16.gmra.mxu0 %v2633
      %v2742 = vpop.f32.mrf.mxu0
      %v2743 = vadd.f32 0.0, %v2742
      %v2744 = vpop.f32.mrf.mxu0
      %v2745 = vpop.f32.mrf.mxu0
      %v2746 = vadd.f32 0.0, %v2745
      %v2747 = vpop.f32.mrf.mxu0
      %2748 = vmatprep.mubr.bf16.mxu0 0
      %2749 = vmatmul.mubr.bf16.gmra.mxu0 %v2636
      %v2750 = vpop.f32.mrf.mxu0
      %v2751 = vadd.f32 0.0, %v2750
      %v2752 = vpop.f32.mrf.mxu0
      %v2753 = vpop.f32.mrf.mxu0
      %v2754 = vadd.f32 0.0, %v2753
      %v2755 = vpop.f32.mrf.mxu0
      %2756 = vmatprep.mubr.bf16.mxu0 0
      %2757 = vmatmul.mubr.bf16.gmra.mxu0 %v2639
      %v2758 = vpop.f32.mrf.mxu0
      %v2759 = vadd.f32 0.0, %v2758
      %v2760 = vpop.f32.mrf.mxu0
      %v2761 = vpop.f32.mrf.mxu0
      %v2762 = vadd.f32 0.0, %v2761
      %v2763 = vpop.f32.mrf.mxu0
      %2764 = vmatprep.mubr.bf16.mxu0 0
      %2765 = vmatmul.mubr.bf16.gmra.mxu0 %v2642
      %v2766 = vpop.f32.mrf.mxu0
      %v2767 = vadd.f32 0.0, %v2766
      %v2768 = vpop.f32.mrf.mxu0
      %v2769 = vpop.f32.mrf.mxu0
      %v2770 = vadd.f32 0.0, %v2769
      %v2771 = vpop.f32.mrf.mxu0
      %2772 = vmatprep.mubr.bf16.mxu0 0
      %2773 = vmatmul.mubr.bf16.gmra.mxu0 %v2645
      %v2774 = vpop.f32.mrf.mxu0
      %v2775 = vadd.f32 0.0, %v2774
      %v2776 = vpop.f32.mrf.mxu0
      %v2777 = vpop.f32.mrf.mxu0
      %v2778 = vadd.f32 0.0, %v2777
      %v2779 = vpop.f32.mrf.mxu0
      %2780 = vmatprep.mubr.bf16.mxu0 0
      %2781 = vmatmul.mubr.bf16.gmra.mxu0 %v2648
      %v2782 = vpop.f32.mrf.mxu0
      %v2783 = vadd.f32 0.0, %v2782
      %v2784 = vpop.f32.mrf.mxu0
      %v2785 = vpop.f32.mrf.mxu0
      %v2786 = vadd.f32 0.0, %v2785
      %v2787 = vpop.f32.mrf.mxu0
      %2788 = vmatprep.mubr.bf16.mxu0 0
      %2789 = vmatmul.mubr.bf16.gmra.mxu0 %v2651
      %v2790 = vpop.f32.mrf.mxu0
      %v2791 = vadd.f32 0.0, %v2790
      %v2792 = vpop.f32.mrf.mxu0
      %v2793 = vpop.f32.mrf.mxu0
      %v2794 = vadd.f32 0.0, %v2793
      %v2795 = vpop.f32.mrf.mxu0
      %2796 = vmatprep.mubr.bf16.mxu0 0
      %2797 = vmatmul.mubr.bf16.gmra.mxu0 %v2654
      %v2798 = vpop.f32.mrf.mxu0
      %v2799 = vadd.f32 0.0, %v2798
      %v2800 = vpop.f32.mrf.mxu0
      %v2801 = vpop.f32.mrf.mxu0
      %v2802 = vadd.f32 0.0, %v2801
      %v2803 = vpop.f32.mrf.mxu0
      %2804 = vmatprep.mubr.bf16.mxu0 0
      %2805 = vmatmul.mubr.bf16.gmra.mxu0 %v2657
      %v2806 = vpop.f32.mrf.mxu0
      %v2807 = vadd.f32 0.0, %v2806
      %v2808 = vpop.f32.mrf.mxu0
      %v2809 = vpop.f32.mrf.mxu0
      %v2810 = vadd.f32 0.0, %v2809
      %v2811 = vpop.f32.mrf.mxu0
      %2812 = vmatprep.mubr.bf16.mxu0 0
      %2813 = vmatmul.mubr.bf16.gmra.mxu0 %v2660
      %v2814 = vpop.f32.mrf.mxu0
      %v2815 = vadd.f32 0.0, %v2814
      %v2816 = vpop.f32.mrf.mxu0
      %v2817 = vpop.f32.mrf.mxu0
      %v2818 = vadd.f32 0.0, %v2817
      %v2819 = vpop.f32.mrf.mxu0
      %2820 = vmatprep.mubr.bf16.mxu0 0
      %2821 = vmatmul.mubr.bf16.gmra.mxu0 %v2663
      %v2822 = vpop.f32.mrf.mxu0
      %v2823 = vadd.f32 0.0, %v2822
      %v2824 = vpop.f32.mrf.mxu0
      %v2825 = vpop.f32.mrf.mxu0
      %v2826 = vadd.f32 0.0, %v2825
      %v2827 = vpop.f32.mrf.mxu0
      %2828 = vdwg.mxu0
      %v2829 = vadd.f32 %v2535, %v2703
      %v2830 = vadd.f32 %v2536, %v2706
      %v2831 = vadd.f32 %v2537, %v2711
      %v2832 = vadd.f32 %v2538, %v2714
      %v2833 = vadd.f32 %v2539, %v2719
      %v2834 = vadd.f32 %v2540, %v2722
      %v2835 = vadd.f32 %v2541, %v2727
      %v2836 = vadd.f32 %v2542, %v2730
      %v2837 = vadd.f32 %v2543, %v2735
      %v2838 = vadd.f32 %v2544, %v2738
      %v2839 = vadd.f32 %v2545, %v2743
      %v2840 = vadd.f32 %v2546, %v2746
      %v2841 = vadd.f32 %v2547, %v2751
      %v2842 = vadd.f32 %v2548, %v2754
      %v2843 = vadd.f32 %v2549, %v2759
      %v2844 = vadd.f32 %v2550, %v2762
      %v2845 = vadd.f32 %v2551, %v2767
      %v2846 = vadd.f32 %v2552, %v2770
      %v2847 = vadd.f32 %v2553, %v2775
      %v2848 = vadd.f32 %v2554, %v2778
      %v2849 = vadd.f32 %v2555, %v2783
      %v2850 = vadd.f32 %v2556, %v2786
      %v2851 = vadd.f32 %v2557, %v2791
      %v2852 = vadd.f32 %v2558, %v2794
      %v2853 = vadd.f32 %v2559, %v2799
      %v2854 = vadd.f32 %v2560, %v2802
      %v2855 = vadd.f32 %v2561, %v2807
      %v2856 = vadd.f32 %v2562, %v2810
      %v2857 = vadd.f32 %v2563, %v2815
      %v2858 = vadd.f32 %v2564, %v2818
      %v2859 = vadd.f32 %v2565, %v2823
      %v2860 = vadd.f32 %v2566, %v2826
      %v2861 = vld [vmem:[%s2272 + $0x2] sm:$0xff]
      %v2862 = vld [vmem:[%s2272 + $0xa] sm:$0xff]
      %v2863 = vld [vmem:[%s2272 + $0x1a] sm:$0xff]
      %v2864 = vld [vmem:[%s2272 + $0x22] sm:$0xff]
      %v2865 = vld [vmem:[%s2272 + $0x32] sm:$0xff]
      %v2866 = vld [vmem:[%s2272 + $0x3a] sm:$0xff]
      %v2867 = vld [vmem:[%s2272 + $0x4a] sm:$0xff]
      %v2868 = vld [vmem:[%s2272 + $0x52] sm:$0xff]
      %v2869 = vld [vmem:[%s2272 + $0x62] sm:$0xff]
      %v2870 = vld [vmem:[%s2272 + $0x6a] sm:$0xff]
      %v2871 = vld [vmem:[%s2272 + $0x7a] sm:$0xff]
      %v2872 = vld [vmem:[%s2272 + $0x82] sm:$0xff]
      %v2873 = vld [vmem:[%s2272 + $0x92] sm:$0xff]
      %v2874 = vld [vmem:[%s2272 + $0x9a] sm:$0xff]
      %v2875 = vld [vmem:[%s2272 + $0xaa] sm:$0xff]
      %v2876 = vld [vmem:[%s2272 + $0xb2] sm:$0xff]
      %v2877 = vld [vmem:[%s2272 + $0xc2] sm:$0xff]
      %v2878 = vld [vmem:[%s2272 + $0xca] sm:$0xff]
      %v2879 = vld [vmem:[%s2272 + $0xda] sm:$0xff]
      %v2880 = vld [vmem:[%s2272 + $0xe2] sm:$0xff]
      %v2881 = vld [vmem:[%s2272 + $0xf2] sm:$0xff]
      %v2882 = vld [vmem:[%s2272 + $0xfa] sm:$0xff]
      %v2883 = vld [vmem:[%s2272 + $0x10a] sm:$0xff]
      %v2884 = vld [vmem:[%s2272 + $0x112] sm:$0xff]
      %v2885 = vld [vmem:[%s2272 + $0x122] sm:$0xff]
      %v2886 = vld [vmem:[%s2272 + $0x12a] sm:$0xff]
      %v2887 = vld [vmem:[%s2272 + $0x13a] sm:$0xff]
      %v2888 = vld [vmem:[%s2272 + $0x142] sm:$0xff]
      %v2889 = vld [vmem:[%s2272 + $0x152] sm:$0xff]
      %v2890 = vld [vmem:[%s2272 + $0x15a] sm:$0xff]
      %v2891 = vld [vmem:[%s2272 + $0x16a] sm:$0xff]
      %v2892 = vld [vmem:[%s2272 + $0x172] sm:$0xff]
      %v2893 = vpack.c.bf16 %v2862, %v2861
      %v2894 = vpack.c.bf16 %v2864, %v2863
      %v2895 = vpack.c.bf16 %v2866, %v2865
      %v2896 = vpack.c.bf16 %v2868, %v2867
      %v2897 = vpack.c.bf16 %v2870, %v2869
      %v2898 = vpack.c.bf16 %v2872, %v2871
      %v2899 = vpack.c.bf16 %v2874, %v2873
      %v2900 = vpack.c.bf16 %v2876, %v2875
      %v2901 = vpack.c.bf16 %v2878, %v2877
      %v2902 = vpack.c.bf16 %v2880, %v2879
      %v2903 = vpack.c.bf16 %v2882, %v2881
      %v2904 = vpack.c.bf16 %v2884, %v2883
      %v2905 = vpack.c.bf16 %v2886, %v2885
      %v2906 = vpack.c.bf16 %v2888, %v2887
      %v2907 = vpack.c.bf16 %v2890, %v2889
      %v2908 = vpack.c.bf16 %v2892, %v2891
      %s2909 = scalar_lea.vmem %s1, 16
      %v2910 = vld [vmem:[%s2909] sm:$0x3]
      %v2912 = vsel %vm253, %v2893, 0
      %v2915 = vsel %vm253, %v2894, 0
      %v2918 = vsel %vm253, %v2895, 0
      %v2921 = vsel %vm253, %v2896, 0
      %v2924 = vsel %vm253, %v2897, 0
      %v2927 = vsel %vm253, %v2898, 0
      %v2930 = vsel %vm253, %v2899, 0
      %v2933 = vsel %vm253, %v2900, 0
      %v2936 = vsel %vm253, %v2901, 0
      %v2939 = vsel %vm253, %v2902, 0
      %v2942 = vsel %vm253, %v2903, 0
      %v2945 = vsel %vm253, %v2904, 0
      %v2948 = vsel %vm253, %v2905, 0
      %v2951 = vsel %vm253, %v2906, 0
      %v2954 = vsel %vm253, %v2907, 0
      %v2957 = vsel %vm253, %v2908, 0
      %v2960 = vsel %vm554, %v2910, 0
      %2962 = vmatprep.subr.bf16.mxu0 0
      %2963 = vmatpush1.bf16.msra.mxu0 0
      %2964 = vmatprep.subr.bf16.mxu0 0
      %2965 = vmatpush1.bf16.msra.mxu0 0
      %2966 = vmatprep.subr.bf16.mxu0 0
      %2967 = vmatpush1.bf16.msra.mxu0 0
      %2968 = vmatprep.subr.bf16.mxu0 0
      %2969 = vmatpush1.bf16.msra.mxu0 0
      %2970 = vmatprep.subr.bf16.mxu0 0
      %2971 = vmatpush1.bf16.msra.mxu0 0
      %2972 = vmatprep.subr.bf16.mxu0 0
      %2973 = vmatpush1.bf16.msra.mxu0 0
      %2974 = vmatprep.subr.bf16.mxu0 0
      %2975 = vmatpush1.bf16.msra.mxu0 0
      %2976 = vmatprep.subr.bf16.mxu0 0
      %2977 = vmatpush1.bf16.msra.mxu0 %v2960
      %2978 = vmatprep.subr.bf16.mxu0 0
      %2979 = vmatpush2.bf16.msra.mxu0 0
      %2980 = vmatprep.subr.bf16.mxu0 0
      %2981 = vmatpush2.bf16.msra.mxu0 0
      %2982 = vmatprep.subr.bf16.mxu0 0
      %2983 = vmatpush2.bf16.msra.mxu0 0
      %2984 = vmatprep.subr.bf16.mxu0 0
      %2985 = vmatpush2.bf16.msra.mxu0 0
      %2986 = vmatprep.subr.bf16.mxu0 0
      %2987 = vmatpush2.bf16.msra.mxu0 0
      %2988 = vmatprep.subr.bf16.mxu0 0
      %2989 = vmatpush2.bf16.msra.mxu0 0
      %2990 = vmatprep.subr.bf16.mxu0 0
      %2991 = vmatpush2.bf16.msra.mxu0 0
      %2992 = vmatprep.subr.bf16.mxu0 0
      %2993 = vmatpush2.bf16.msra.mxu0 0
      %2994 = vmatprep.mubr.bf16.mxu0 0
      %2995 = vmatmul.mubr.bf16.gmra.mxu0 %v2912
      %v2996 = vpop.f32.mrf.mxu0
      %v2997 = vadd.f32 0.0, %v2996
      %v2998 = vpop.f32.mrf.mxu0
      %v2999 = vpop.f32.mrf.mxu0
      %v3000 = vadd.f32 0.0, %v2999
      %v3001 = vpop.f32.mrf.mxu0
      %3002 = vmatprep.mubr.bf16.mxu0 0
      %3003 = vmatmul.mubr.bf16.gmra.mxu0 %v2915
      %v3004 = vpop.f32.mrf.mxu0
      %v3005 = vadd.f32 0.0, %v3004
      %v3006 = vpop.f32.mrf.mxu0
      %v3007 = vpop.f32.mrf.mxu0
      %v3008 = vadd.f32 0.0, %v3007
      %v3009 = vpop.f32.mrf.mxu0
      %3010 = vmatprep.mubr.bf16.mxu0 0
      %3011 = vmatmul.mubr.bf16.gmra.mxu0 %v2918
      %v3012 = vpop.f32.mrf.mxu0
      %v3013 = vadd.f32 0.0, %v3012
      %v3014 = vpop.f32.mrf.mxu0
      %v3015 = vpop.f32.mrf.mxu0
      %v3016 = vadd.f32 0.0, %v3015
      %v3017 = vpop.f32.mrf.mxu0
      %3018 = vmatprep.mubr.bf16.mxu0 0
      %3019 = vmatmul.mubr.bf16.gmra.mxu0 %v2921
      %v3020 = vpop.f32.mrf.mxu0
      %v3021 = vadd.f32 0.0, %v3020
      %v3022 = vpop.f32.mrf.mxu0
      %v3023 = vpop.f32.mrf.mxu0
      %v3024 = vadd.f32 0.0, %v3023
      %v3025 = vpop.f32.mrf.mxu0
      %3026 = vmatprep.mubr.bf16.mxu0 0
      %3027 = vmatmul.mubr.bf16.gmra.mxu0 %v2924
      %v3028 = vpop.f32.mrf.mxu0
      %v3029 = vadd.f32 0.0, %v3028
      %v3030 = vpop.f32.mrf.mxu0
      %v3031 = vpop.f32.mrf.mxu0
      %v3032 = vadd.f32 0.0, %v3031
      %v3033 = vpop.f32.mrf.mxu0
      %3034 = vmatprep.mubr.bf16.mxu0 0
      %3035 = vmatmul.mubr.bf16.gmra.mxu0 %v2927
      %v3036 = vpop.f32.mrf.mxu0
      %v3037 = vadd.f32 0.0, %v3036
      %v3038 = vpop.f32.mrf.mxu0
      %v3039 = vpop.f32.mrf.mxu0
      %v3040 = vadd.f32 0.0, %v3039
      %v3041 = vpop.f32.mrf.mxu0
      %3042 = vmatprep.mubr.bf16.mxu0 0
      %3043 = vmatmul.mubr.bf16.gmra.mxu0 %v2930
      %v3044 = vpop.f32.mrf.mxu0
      %v3045 = vadd.f32 0.0, %v3044
      %v3046 = vpop.f32.mrf.mxu0
      %v3047 = vpop.f32.mrf.mxu0
      %v3048 = vadd.f32 0.0, %v3047
      %v3049 = vpop.f32.mrf.mxu0
      %3050 = vmatprep.mubr.bf16.mxu0 0
      %3051 = vmatmul.mubr.bf16.gmra.mxu0 %v2933
      %v3052 = vpop.f32.mrf.mxu0
      %v3053 = vadd.f32 0.0, %v3052
      %v3054 = vpop.f32.mrf.mxu0
      %v3055 = vpop.f32.mrf.mxu0
      %v3056 = vadd.f32 0.0, %v3055
      %v3057 = vpop.f32.mrf.mxu0
      %3058 = vmatprep.mubr.bf16.mxu0 0
      %3059 = vmatmul.mubr.bf16.gmra.mxu0 %v2936
      %v3060 = vpop.f32.mrf.mxu0
      %v3061 = vadd.f32 0.0, %v3060
      %v3062 = vpop.f32.mrf.mxu0
      %v3063 = vpop.f32.mrf.mxu0
      %v3064 = vadd.f32 0.0, %v3063
      %v3065 = vpop.f32.mrf.mxu0
      %3066 = vmatprep.mubr.bf16.mxu0 0
      %3067 = vmatmul.mubr.bf16.gmra.mxu0 %v2939
      %v3068 = vpop.f32.mrf.mxu0
      %v3069 = vadd.f32 0.0, %v3068
      %v3070 = vpop.f32.mrf.mxu0
      %v3071 = vpop.f32.mrf.mxu0
      %v3072 = vadd.f32 0.0, %v3071
      %v3073 = vpop.f32.mrf.mxu0
      %3074 = vmatprep.mubr.bf16.mxu0 0
      %3075 = vmatmul.mubr.bf16.gmra.mxu0 %v2942
      %v3076 = vpop.f32.mrf.mxu0
      %v3077 = vadd.f32 0.0, %v3076
      %v3078 = vpop.f32.mrf.mxu0
      %v3079 = vpop.f32.mrf.mxu0
      %v3080 = vadd.f32 0.0, %v3079
      %v3081 = vpop.f32.mrf.mxu0
      %3082 = vmatprep.mubr.bf16.mxu0 0
      %3083 = vmatmul.mubr.bf16.gmra.mxu0 %v2945
      %v3084 = vpop.f32.mrf.mxu0
      %v3085 = vadd.f32 0.0, %v3084
      %v3086 = vpop.f32.mrf.mxu0
      %v3087 = vpop.f32.mrf.mxu0
      %v3088 = vadd.f32 0.0, %v3087
      %v3089 = vpop.f32.mrf.mxu0
      %3090 = vmatprep.mubr.bf16.mxu0 0
      %3091 = vmatmul.mubr.bf16.gmra.mxu0 %v2948
      %v3092 = vpop.f32.mrf.mxu0
      %v3093 = vadd.f32 0.0, %v3092
      %v3094 = vpop.f32.mrf.mxu0
      %v3095 = vpop.f32.mrf.mxu0
      %v3096 = vadd.f32 0.0, %v3095
      %v3097 = vpop.f32.mrf.mxu0
      %3098 = vmatprep.mubr.bf16.mxu0 0
      %3099 = vmatmul.mubr.bf16.gmra.mxu0 %v2951
      %v3100 = vpop.f32.mrf.mxu0
      %v3101 = vadd.f32 0.0, %v3100
      %v3102 = vpop.f32.mrf.mxu0
      %v3103 = vpop.f32.mrf.mxu0
      %v3104 = vadd.f32 0.0, %v3103
      %v3105 = vpop.f32.mrf.mxu0
      %3106 = vmatprep.mubr.bf16.mxu0 0
      %3107 = vmatmul.mubr.bf16.gmra.mxu0 %v2954
      %v3108 = vpop.f32.mrf.mxu0
      %v3109 = vadd.f32 0.0, %v3108
      %v3110 = vpop.f32.mrf.mxu0
      %v3111 = vpop.f32.mrf.mxu0
      %v3112 = vadd.f32 0.0, %v3111
      %v3113 = vpop.f32.mrf.mxu0
      %3114 = vmatprep.mubr.bf16.mxu0 0
      %3115 = vmatmul.mubr.bf16.gmra.mxu0 %v2957
      %v3116 = vpop.f32.mrf.mxu0
      %v3117 = vadd.f32 0.0, %v3116
      %v3118 = vpop.f32.mrf.mxu0
      %v3119 = vpop.f32.mrf.mxu0
      %v3120 = vadd.f32 0.0, %v3119
      %v3121 = vpop.f32.mrf.mxu0
      %3122 = vdwg.mxu0
      %v3123 = vadd.f32 %v2829, %v2997
      %v3124 = vadd.f32 %v2830, %v3000
      %v3125 = vadd.f32 %v2831, %v3005
      %v3126 = vadd.f32 %v2832, %v3008
      %v3127 = vadd.f32 %v2833, %v3013
      %v3128 = vadd.f32 %v2834, %v3016
      %v3129 = vadd.f32 %v2835, %v3021
      %v3130 = vadd.f32 %v2836, %v3024
      %v3131 = vadd.f32 %v2837, %v3029
      %v3132 = vadd.f32 %v2838, %v3032
      %v3133 = vadd.f32 %v2839, %v3037
      %v3134 = vadd.f32 %v2840, %v3040
      %v3135 = vadd.f32 %v2841, %v3045
      %v3136 = vadd.f32 %v2842, %v3048
      %v3137 = vadd.f32 %v2843, %v3053
      %v3138 = vadd.f32 %v2844, %v3056
      %v3139 = vadd.f32 %v2845, %v3061
      %v3140 = vadd.f32 %v2846, %v3064
      %v3141 = vadd.f32 %v2847, %v3069
      %v3142 = vadd.f32 %v2848, %v3072
      %v3143 = vadd.f32 %v2849, %v3077
      %v3144 = vadd.f32 %v2850, %v3080
      %v3145 = vadd.f32 %v2851, %v3085
      %v3146 = vadd.f32 %v2852, %v3088
      %v3147 = vadd.f32 %v2853, %v3093
      %v3148 = vadd.f32 %v2854, %v3096
      %v3149 = vadd.f32 %v2855, %v3101
      %v3150 = vadd.f32 %v2856, %v3104
      %v3151 = vadd.f32 %v2857, %v3109
      %v3152 = vadd.f32 %v2858, %v3112
      %v3153 = vadd.f32 %v2859, %v3117
      %v3154 = vadd.f32 %v2860, %v3120
      %v3155 = vld [vmem:[%s4] sm:$0x1]
      %v3157 = vlaneseq
      %v3158 = vshrl.u32 %v3157, 7
      %v3159 = vsub.s32 0, %v3158
      %v3160 = vrot.slane %v3155, %v3159
      %v3162 = vadd.f32 %v3123, %v3160
      %v3163 = vadd.f32 %v3124, %v3160
      %v3164 = vadd.f32 %v3125, %v3160
      %v3165 = vadd.f32 %v3126, %v3160
      %v3166 = vadd.f32 %v3127, %v3160
      %v3167 = vadd.f32 %v3128, %v3160
      %v3168 = vadd.f32 %v3129, %v3160
      %v3169 = vadd.f32 %v3130, %v3160
      %v3170 = vadd.f32 %v3131, %v3160
      %v3171 = vadd.f32 %v3132, %v3160
      %v3172 = vadd.f32 %v3133, %v3160
      %v3173 = vadd.f32 %v3134, %v3160
      %v3174 = vadd.f32 %v3135, %v3160
      %v3175 = vadd.f32 %v3136, %v3160
      %v3176 = vadd.f32 %v3137, %v3160
      %v3177 = vadd.f32 %v3138, %v3160
      %v3178 = vadd.f32 %v3139, %v3160
      %v3179 = vadd.f32 %v3140, %v3160
      %v3180 = vadd.f32 %v3141, %v3160
      %v3181 = vadd.f32 %v3142, %v3160
      %v3182 = vadd.f32 %v3143, %v3160
      %v3183 = vadd.f32 %v3144, %v3160
      %v3184 = vadd.f32 %v3145, %v3160
      %v3185 = vadd.f32 %v3146, %v3160
      %v3186 = vadd.f32 %v3147, %v3160
      %v3187 = vadd.f32 %v3148, %v3160
      %v3188 = vadd.f32 %v3149, %v3160
      %v3189 = vadd.f32 %v3150, %v3160
      %v3190 = vadd.f32 %v3151, %v3160
      %v3191 = vadd.f32 %v3152, %v3160
      %v3192 = vadd.f32 %v3153, %v3160
      %v3193 = vadd.f32 %v3154, %v3160
      %v3194 = vmax.f32 %v3162, 0.0
      %v3195 = vmax.f32 %v3163, 0.0
      %v3196 = vmax.f32 %v3164, 0.0
      %v3197 = vmax.f32 %v3165, 0.0
      %v3198 = vmax.f32 %v3166, 0.0
      %v3199 = vmax.f32 %v3167, 0.0
      %v3200 = vmax.f32 %v3168, 0.0
      %v3201 = vmax.f32 %v3169, 0.0
      %v3202 = vmax.f32 %v3170, 0.0
      %v3203 = vmax.f32 %v3171, 0.0
      %v3204 = vmax.f32 %v3172, 0.0
      %v3205 = vmax.f32 %v3173, 0.0
      %v3206 = vmax.f32 %v3174, 0.0
      %v3207 = vmax.f32 %v3175, 0.0
      %v3208 = vmax.f32 %v3176, 0.0
      %v3209 = vmax.f32 %v3177, 0.0
      %v3210 = vmax.f32 %v3178, 0.0
      %v3211 = vmax.f32 %v3179, 0.0
      %v3212 = vmax.f32 %v3180, 0.0
      %v3213 = vmax.f32 %v3181, 0.0
      %v3214 = vmax.f32 %v3182, 0.0
      %v3215 = vmax.f32 %v3183, 0.0
      %v3216 = vmax.f32 %v3184, 0.0
      %v3217 = vmax.f32 %v3185, 0.0
      %v3218 = vmax.f32 %v3186, 0.0
      %v3219 = vmax.f32 %v3187, 0.0
      %v3220 = vmax.f32 %v3188, 0.0
      %v3221 = vmax.f32 %v3189, 0.0
      %v3222 = vmax.f32 %v3190, 0.0
      %v3223 = vmax.f32 %v3191, 0.0
      %v3224 = vmax.f32 %v3192, 0.0
      %v3225 = vmax.f32 %v3193, 0.0
      %v3226 = vld [vmem:[%s3] sm:$0x1]
      %v3228 = vlaneseq
      %v3229 = vshrl.u32 %v3228, 7
      %v3230 = vsub.s32 0, %v3229
      %v3231 = vrot.slane %v3226, %v3230
      %v3233 = vmul.f32 %v3194, %v3231
      %v3234 = vmul.f32 %v3195, %v3231
      %v3235 = vmul.f32 %v3196, %v3231
      %v3236 = vmul.f32 %v3197, %v3231
      %v3237 = vmul.f32 %v3198, %v3231
      %v3238 = vmul.f32 %v3199, %v3231
      %v3239 = vmul.f32 %v3200, %v3231
      %v3240 = vmul.f32 %v3201, %v3231
      %v3241 = vmul.f32 %v3202, %v3231
      %v3242 = vmul.f32 %v3203, %v3231
      %v3243 = vmul.f32 %v3204, %v3231
      %v3244 = vmul.f32 %v3205, %v3231
      %v3245 = vmul.f32 %v3206, %v3231
      %v3246 = vmul.f32 %v3207, %v3231
      %v3247 = vmul.f32 %v3208, %v3231
      %v3248 = vmul.f32 %v3209, %v3231
      %v3249 = vmul.f32 %v3210, %v3231
      %v3250 = vmul.f32 %v3211, %v3231
      %v3251 = vmul.f32 %v3212, %v3231
      %v3252 = vmul.f32 %v3213, %v3231
      %v3253 = vmul.f32 %v3214, %v3231
      %v3254 = vmul.f32 %v3215, %v3231
      %v3255 = vmul.f32 %v3216, %v3231
      %v3256 = vmul.f32 %v3217, %v3231
      %v3257 = vmul.f32 %v3218, %v3231
      %v3258 = vmul.f32 %v3219, %v3231
      %v3259 = vmul.f32 %v3220, %v3231
      %v3260 = vmul.f32 %v3221, %v3231
      %v3261 = vmul.f32 %v3222, %v3231
      %v3262 = vmul.f32 %v3223, %v3231
      %v3263 = vmul.f32 %v3224, %v3231
      %v3264 = vmul.f32 %v3225, %v3231
      %v3265 = vadd.f32 %v3233, %v1852
      %v3266 = vadd.f32 %v3234, %v1855
      %v3267 = vadd.f32 %v3235, %v1860
      %v3268 = vadd.f32 %v3236, %v1863
      %v3269 = vadd.f32 %v3237, %v1868
      %v3270 = vadd.f32 %v3238, %v1871
      %v3271 = vadd.f32 %v3239, %v1876
      %v3272 = vadd.f32 %v3240, %v1879
      %v3273 = vadd.f32 %v3241, %v1884
      %v3274 = vadd.f32 %v3242, %v1887
      %v3275 = vadd.f32 %v3243, %v1892
      %v3276 = vadd.f32 %v3244, %v1895
      %v3277 = vadd.f32 %v3245, %v1900
      %v3278 = vadd.f32 %v3246, %v1903
      %v3279 = vadd.f32 %v3247, %v1908
      %v3280 = vadd.f32 %v3248, %v1911
      %v3281 = vadd.f32 %v3249, %v1916
      %v3282 = vadd.f32 %v3250, %v1919
      %v3283 = vadd.f32 %v3251, %v1924
      %v3284 = vadd.f32 %v3252, %v1927
      %v3285 = vadd.f32 %v3253, %v1932
      %v3286 = vadd.f32 %v3254, %v1935
      %v3287 = vadd.f32 %v3255, %v1940
      %v3288 = vadd.f32 %v3256, %v1943
      %v3289 = vadd.f32 %v3257, %v1948
      %v3290 = vadd.f32 %v3258, %v1951
      %v3291 = vadd.f32 %v3259, %v1956
      %v3292 = vadd.f32 %v3260, %v1959
      %v3293 = vadd.f32 %v3261, %v1964
      %v3294 = vadd.f32 %v3262, %v1967
      %v3295 = vadd.f32 %v3263, %v1972
      %v3296 = vadd.f32 %v3264, %v1975
      %v3297 = vld [vmem:[%s5] sm:$0x1]
      %v3299 = vlaneseq
      %v3300 = vshrl.u32 %v3299, 7
      %v3301 = vsub.s32 0, %v3300
      %v3302 = vrot.slane %v3297, %v3301
      %v3304 = vadd.f32 %v3265, %v3302
      %v3305 = vadd.f32 %v3266, %v3302
      %v3306 = vadd.f32 %v3267, %v3302
      %v3307 = vadd.f32 %v3268, %v3302
      %v3308 = vadd.f32 %v3269, %v3302
      %v3309 = vadd.f32 %v3270, %v3302
      %v3310 = vadd.f32 %v3271, %v3302
      %v3311 = vadd.f32 %v3272, %v3302
      %v3312 = vadd.f32 %v3273, %v3302
      %v3313 = vadd.f32 %v3274, %v3302
      %v3314 = vadd.f32 %v3275, %v3302
      %v3315 = vadd.f32 %v3276, %v3302
      %v3316 = vadd.f32 %v3277, %v3302
      %v3317 = vadd.f32 %v3278, %v3302
      %v3318 = vadd.f32 %v3279, %v3302
      %v3319 = vadd.f32 %v3280, %v3302
      %v3320 = vadd.f32 %v3281, %v3302
      %v3321 = vadd.f32 %v3282, %v3302
      %v3322 = vadd.f32 %v3283, %v3302
      %v3323 = vadd.f32 %v3284, %v3302
      %v3324 = vadd.f32 %v3285, %v3302
      %v3325 = vadd.f32 %v3286, %v3302
      %v3326 = vadd.f32 %v3287, %v3302
      %v3327 = vadd.f32 %v3288, %v3302
      %v3328 = vadd.f32 %v3289, %v3302
      %v3329 = vadd.f32 %v3290, %v3302
      %v3330 = vadd.f32 %v3291, %v3302
      %v3331 = vadd.f32 %v3292, %v3302
      %v3332 = vadd.f32 %v3293, %v3302
      %v3333 = vadd.f32 %v3294, %v3302
      %v3334 = vadd.f32 %v3295, %v3302
      %v3335 = vadd.f32 %v3296, %v3302
      %v3336 = vmax.f32 %v3304, 0.0
      %v3337 = vmax.f32 %v3305, 0.0
      %v3338 = vmax.f32 %v3306, 0.0
      %v3339 = vmax.f32 %v3307, 0.0
      %v3340 = vmax.f32 %v3308, 0.0
      %v3341 = vmax.f32 %v3309, 0.0
      %v3342 = vmax.f32 %v3310, 0.0
      %v3343 = vmax.f32 %v3311, 0.0
      %v3344 = vmax.f32 %v3312, 0.0
      %v3345 = vmax.f32 %v3313, 0.0
      %v3346 = vmax.f32 %v3314, 0.0
      %v3347 = vmax.f32 %v3315, 0.0
      %v3348 = vmax.f32 %v3316, 0.0
      %v3349 = vmax.f32 %v3317, 0.0
      %v3350 = vmax.f32 %v3318, 0.0
      %v3351 = vmax.f32 %v3319, 0.0
      %v3352 = vmax.f32 %v3320, 0.0
      %v3353 = vmax.f32 %v3321, 0.0
      %v3354 = vmax.f32 %v3322, 0.0
      %v3355 = vmax.f32 %v3323, 0.0
      %v3356 = vmax.f32 %v3324, 0.0
      %v3357 = vmax.f32 %v3325, 0.0
      %v3358 = vmax.f32 %v3326, 0.0
      %v3359 = vmax.f32 %v3327, 0.0
      %v3360 = vmax.f32 %v3328, 0.0
      %v3361 = vmax.f32 %v3329, 0.0
      %v3362 = vmax.f32 %v3330, 0.0
      %v3363 = vmax.f32 %v3331, 0.0
      %v3364 = vmax.f32 %v3332, 0.0
      %v3365 = vmax.f32 %v3333, 0.0
      %v3366 = vmax.f32 %v3334, 0.0
      %v3367 = vmax.f32 %v3335, 0.0
      %vm3368 = vcmask 64512
      %3369 = vst.msk [vmem:[%s251] sm:$0xff] %vm3368, %v3336
      %3370 = vst.msk [vmem:[%s251 + $0x8] sm:$0xff] %vm3368, %v3337
      %3371 = vst.msk [vmem:[%s251 + $0x10] sm:$0xff] %vm3368, %v3338
      %3372 = vst.msk [vmem:[%s251 + $0x18] sm:$0xff] %vm3368, %v3339
      %3373 = vst.msk [vmem:[%s251 + $0x20] sm:$0xff] %vm3368, %v3340
      %3374 = vst.msk [vmem:[%s251 + $0x28] sm:$0xff] %vm3368, %v3341
      %3375 = vst.msk [vmem:[%s251 + $0x30] sm:$0xff] %vm3368, %v3342
      %3376 = vst.msk [vmem:[%s251 + $0x38] sm:$0xff] %vm3368, %v3343
      %3377 = vst.msk [vmem:[%s251 + $0x40] sm:$0xff] %vm3368, %v3344
      %3378 = vst.msk [vmem:[%s251 + $0x48] sm:$0xff] %vm3368, %v3345
      %3379 = vst.msk [vmem:[%s251 + $0x50] sm:$0xff] %vm3368, %v3346
      %3380 = vst.msk [vmem:[%s251 + $0x58] sm:$0xff] %vm3368, %v3347
      %3381 = vst.msk [vmem:[%s251 + $0x60] sm:$0xff] %vm3368, %v3348
      %3382 = vst.msk [vmem:[%s251 + $0x68] sm:$0xff] %vm3368, %v3349
      %3383 = vst.msk [vmem:[%s251 + $0x70] sm:$0xff] %vm3368, %v3350
      %3384 = vst.msk [vmem:[%s251 + $0x78] sm:$0xff] %vm3368, %v3351
      %3385 = vst.msk [vmem:[%s251 + $0x80] sm:$0xff] %vm3368, %v3352
      %3386 = vst.msk [vmem:[%s251 + $0x88] sm:$0xff] %vm3368, %v3353
      %3387 = vst.msk [vmem:[%s251 + $0x90] sm:$0xff] %vm3368, %v3354
      %3388 = vst.msk [vmem:[%s251 + $0x98] sm:$0xff] %vm3368, %v3355
      %3389 = vst.msk [vmem:[%s251 + $0xa0] sm:$0xff] %vm3368, %v3356
      %3390 = vst.msk [vmem:[%s251 + $0xa8] sm:$0xff] %vm3368, %v3357
      %3391 = vst.msk [vmem:[%s251 + $0xb0] sm:$0xff] %vm3368, %v3358
      %3392 = vst.msk [vmem:[%s251 + $0xb8] sm:$0xff] %vm3368, %v3359
      %3393 = vst.msk [vmem:[%s251 + $0xc0] sm:$0xff] %vm3368, %v3360
      %3394 = vst.msk [vmem:[%s251 + $0xc8] sm:$0xff] %vm3368, %v3361
      %3395 = vst.msk [vmem:[%s251 + $0xd0] sm:$0xff] %vm3368, %v3362
      %3396 = vst.msk [vmem:[%s251 + $0xd8] sm:$0xff] %vm3368, %v3363
      %3397 = vst.msk [vmem:[%s251 + $0xe0] sm:$0xff] %vm3368, %v3364
      %3398 = vst.msk [vmem:[%s251 + $0xe8] sm:$0xff] %vm3368, %v3365
      %3399 = vst.msk [vmem:[%s251 + $0xf0] sm:$0xff] %vm3368, %v3366
      %3400 = vst.msk [vmem:[%s251 + $0xf8] sm:$0xff] %vm3368, %v3367
      %p3401 = scmp.lt.s32.totalorder %s17, 1
      %s3402 = scalar_select %p3401, %s17, 1
      %s3403 = smul.addr %s3402, 32
      %s3404 = smul.addr %s3403, 8
      %s3405 = scalar_lea.vmem %s6, %s3404
      // Predicated region
      $region45: #{tpu_custom_call.1} parent=43 // pred_check
        %p3406 = pneg %p166
      $region46: #{tpu_custom_call.1} parent=43 // pred_check_branch
        %3408 = sbr.rel (%p3406) target = $region48
      $region47: #{tpu_custom_call.1} parent=43 // pred_region
        _
      $region48: #{tpu_custom_call.1} parent=43 // pred_fallthru
        _
    $region44: #{tpu_custom_call.1} parent=5 // pred_fallthru
      _
    %p3409 = scmp.le.s32.totalorder 2, %s12
    // Predicated region
    $region49: #{tpu_custom_call.1} parent=5 // pred_check
      %p3410 = pneg %p3409
    $region50: #{tpu_custom_call.1} parent=5 // pred_check_branch
      %3412 = sbr.rel (%p3410) target = $region52
    $region51: #{tpu_custom_call.1} parent=5 // pred_region
      %s3413 = ssub.s32 %s12, 2
      // Predicated region
      $region53: #{tpu_custom_call.1} parent=51 // pred_check
        %p3414 = pneg %p172
      $region54: #{tpu_custom_call.1} parent=51 // pred_check_branch
        %3416 = sbr.rel (%p3414) target = $region56
      $region55: #{tpu_custom_call.1} parent=51 // pred_region
        %p3417 = scmp.lt.s32.totalorder %s18, 1
        %s3418 = scalar_select %p3417, %s18, 1
        %s3419 = smul.addr %s3418, 32
        %s3420 = smul.addr %s3419, 8
        %s3421 = scalar_lea.vmem %s6, %s3420
      $region56: #{tpu_custom_call.1} parent=51 // pred_fallthru
        _
    $region52: #{tpu_custom_call.1} parent=5 // pred_fallthru
      _
  $region6: #{tpu_custom_call.1} parent=0 // loop_footer
    %s16 = sadd.s32 1, %s12
  $region7: #{tpu_custom_call.1} parent=0 // loop_footer_branch
    %11 = sbr.rel target = $region3
  $region8: #{tpu_custom_call.1} parent=0 // loop_exit
    _

</llo_original>
